<compile_context>
chip_gen: v7x
topology: tpu7x:2x2x1
jax: 0.10.0
libtpu: 0.0.40
codegen_flags: <defaults>
</compile_context>

<pallas_src>
import jax
import jax.numpy as jnp
from jax import lax
from jax.experimental import pallas as pl
from jax.experimental.pallas import tpu as pltpu

EPS = 1e-5


# ----------------------------------------------------------------------------------------------
# Kernel
# ----------------------------------------------------------------------------------------------
def _down3d_kernel(x_ref, m1_ref, m2_ref, g1_ref, be1_ref, g2_ref, be2_ref,
                   sel_ref, selt_ref, out_ref, pad_ref):
    N, Dp, Hp, lanes_in = x_ref.shape
    kw1 = lanes_in // 8                    # Wp * Cin   (conv1 K per (kd,kh) tap)
    wq = out_ref.shape[-1]                 # Wp * Cout  (lane width of activations / output)
    Cout = g1_ref.shape[-1]
    M = N * Dp * Hp                        # matmul M dimension (rows of every matmul / output)
    cnt = float(M * (wq // Cout))          # elements per channel for the BN statistics

    # ---------------- MaxPool3d(kernel=2, stride=2) ----------------
    # The 8 voxels of each 2x2x2 window live in the 8 lane-eighths of the input (wrapper layout),
    # so pooling is 7 lane-aligned vector maxes producing lane index = wp*Cin + ci.
    pooled = x_ref[:, :, :, 0:kw1]
    for k in range(1, 8):
        pooled = jnp.maximum(pooled, x_ref[:, :, :, k * kw1:(k + 1) * kw1])

    # ---------------- shared (D, H)-halo scratch ----------------
    # W zero-padding is encoded inside the banded weight matrices; only D/H need halos.
    # Zero the whole (tiny) scratch once so no lane is ever read uninitialized, then store the
    # pooled interior (lanes [0:kw1]).
    pad_ref[...] = jnp.zeros_like(pad_ref)
    pad_ref[:, 1:Dp + 1, 1:Hp + 1, 0:kw1] = pooled

    sel = sel_ref[...]       # (wq, Cout)  0/1 selector: lane -> channel
    selt = selt_ref[...]     # (Cout, wq)  transpose (channel -> lanes broadcast)

    def conv_bn_relu(kin, m_ref, gamma, beta):
        # 3x3x3 conv = 9 (kd, kh) matmuls against W-banded weight matrices:
        #   LHS (M, kin) = halo-padded activations, RHS (kin, wq);
        #   the kw taps + W zero padding live in the banded matrix, D/H padding in the halo.
        acc = jnp.zeros((M, wq), jnp.float32)
        for kd in range(3):
            for kh in range(3):
                lhs = pad_ref[:, kd:kd + Dp, kh:kh + Hp, 0:kin].reshape(M, kin)
                acc = acc + jnp.dot(lhs.astype(m_ref.dtype), m_ref[kd, kh],
                                    preferred_element_type=jnp.float32)
        # Training-mode BatchNorm3d (batch mean / biased variance), two-pass (centred) for
        # numerical safety, fused with ReLU.  The conv bias is intentionally omitted: the
        # batch-mean subtraction cancels it exactly (training-mode BN only).
        mean_c = jnp.dot(jnp.sum(acc, axis=0, keepdims=True), sel,
                         preferred_element_type=jnp.float32) / cnt          # (1, Cout)
        mean_l = jnp.dot(mean_c, selt, preferred_element_type=jnp.float32)  # (1, wq)
        diff = acc - mean_l
        var_c = jnp.dot(jnp.sum(diff * diff, axis=0, keepdims=True), sel,
                        preferred_element_type=jnp.float32) / cnt           # (1, Cout)
        scale_l = jnp.dot(gamma * lax.rsqrt(var_c + EPS), selt,
                          preferred_element_type=jnp.float32)               # (1, wq)
        shift_l = jnp.dot(beta, selt, preferred_element_type=jnp.float32)   # (1, wq)
        return jnp.maximum(diff * scale_l + shift_l, 0.0)                   # (M, wq)

    h1 = conv_bn_relu(kw1, m1_ref, g1_ref[...], be1_ref[...])
    # Conv1 activations go straight into the shared halo scratch interior (all wq lanes).
    pad_ref[:, 1:Dp + 1, 1:Hp + 1, :] = h1.reshape(N, Dp, Hp, wq)
    h2 = conv_bn_relu(wq, m2_ref, g2_ref[...], be2_ref[...])
    out_ref[...] = h2


# ----------------------------------------------------------------------------------------------
# Wrapper
# ----------------------------------------------------------------------------------------------
def _w_banded(wk, Wp):
    """wk: (3,3,3,Ci,Co) -> (3, 3, Wp*Ci, Wp*Co) W-banded matrices.

    M[kd,kh][wi*Ci+ci, wo*Co+co] = wk[kd, kh, wi-wo+1, ci, co] (zero outside the 3-tap window),
    so 'same' zero padding along W is encoded in the matrix; D/H padding stays in the halo.
    """
    rows = []
    for kd in range(3):
        row = []
        for kh in range(3):
            m = None
            for kw in range(3):
                e = jnp.eye(Wp, Wp, k=1 - kw, dtype=wk.dtype)
                t = jnp.kron(e, wk[kd, kh, kw])
                m = t if m is None else m + t
            row.append(m)
        rows.append(jnp.stack(row))
    return jnp.stack(rows)


def _vmem_cap_bytes():
    try:
        cap = getattr(pltpu.get_tpu_info(), "vmem_capacity_bytes", None)
        if cap:
            return int(cap)
    except Exception:
        pass
    return 64 << 20  # conservative: v7x per-TensorCore capacity


def down3d_forward(x_ncdhw, params, *, matmul_dtype=jnp.bfloat16):
    """x_ncdhw: (N, Cin, D, H, W) f32 (PyTorch layout). Returns (N, Cout, D//2, H//2, W//2).

    matmul_dtype=jnp.bfloat16 (default) halves weight DMA/VMEM and uses the MXU's native rate;
    pass jnp.float32 for bit-tight verification against the reference.
    """
    w1, b1, g1, be1, w2, b2, g2, be2 = params    # b1, b2 unused: cancelled by training-mode BN
    N, Cin, D, H, W = x_ncdhw.shape
    assert D % 2 == 0 and H % 2 == 0 and W % 2 == 0
    Dp, Hp, Wp = D // 2, H // 2, W // 2
    Cout = w1.shape[-1]
    kw1, wq = Wp * Cin, Wp * Cout
    M = N * Dp * Hp

    # NCDHW -> (N, Dp, Hp, [8 pooling parities] x Wp x Cin): one wrapper-side XLA transpose.
    # TODO(synk): on v5e fold this transpose / the pooling into a gridded DMA pre-pass to avoid
    #             the extra HBM round-trip over x at production sizes.
    x = jnp.transpose(x_ncdhw, (0, 2, 3, 4, 1))
    x = x.reshape(N, Dp, 2, Hp, 2, Wp, 2, Cin)
    x = jnp.transpose(x, (0, 1, 3, 2, 4, 6, 5, 7)).reshape(N, Dp, Hp, 8 * kw1)

    m1 = _w_banded(w1, Wp).astype(matmul_dtype)   # (3, 3, kw1, wq)
    m2 = _w_banded(w2, Wp).astype(matmul_dtype)   # (3, 3, wq,  wq)
    sel = ((jnp.arange(wq) % Cout)[:, None] == jnp.arange(Cout)[None, :]).astype(jnp.float32)
    selt = sel.T

    # Scoped-VMEM budget from the actual buffers plus in-kernel temporaries (acc/diff/h1/h2 and
    # the per-(kd,kh) LHS slabs), clamped below the per-generation VMEM capacity (v7x: 64 MiB).
    itemsz = jnp.dtype(matmul_dtype).itemsize
    vmem_need = (x.size * 4 + (m1.size + m2.size) * itemsz + 2 * sel.size * 4 + 8 * Cout * 4
                 + M * wq * 4                                   # output
                 + N * (Dp + 2) * (Hp + 2) * wq * 4             # halo scratch
                 + 4 * M * wq * 4                               # acc / diff / h1 / h2
                 + 9 * M * (kw1 + wq) * 4)                      # LHS slabs (worst case)
    vmem_limit = int(min(_vmem_cap_bytes() - (16 << 20), max(16 << 20, 4 * vmem_need)))

    flops = int(2 * 9 * M * (kw1 + wq) * wq + 2 * 10 * M * wq)
    bytes_accessed = int(x.size * 4 + (m1.size + m2.size) * itemsz
                         + 2 * sel.size * 4 + 8 * Cout * 4 + M * wq * 4)

    vmem = pl.BlockSpec(memory_space=pltpu.MemorySpace.VMEM)
    out = pl.pallas_call(
        _down3d_kernel,
        out_shape=jax.ShapeDtypeStruct((M, wq), jnp.float32),
        in_specs=[vmem] * 9,
        out_specs=vmem,
        scratch_shapes=[pltpu.VMEM((N, Dp + 2, Hp + 2, wq), jnp.float32)],
        compiler_params=pltpu.CompilerParams(vmem_limit_bytes=vmem_limit),
        cost_estimate=pl.CostEstimate(flops=flops, transcendentals=2 * Cout,
                                      bytes_accessed=bytes_accessed),
    )(x, m1, m2, g1, be1, g2, be2, sel, selt)

    out = out.reshape(N, Dp, Hp, Wp, Cout)
    return jnp.transpose(out, (0, 4, 1, 2, 3))                   # back to NCDHW


# ----------------------------------------------------------------------------------------------
# Params / reference / test
# ----------------------------------------------------------------------------------------------
def init_params(key, cin, cout):
    # Conv weights stored as (kD, kH, kW, Cin, Cout); torch's (Cout, Cin, kD, kH, kW) transposed.
    # Kaiming-uniform-like bounds; BN gamma=1 / beta=0 (torch defaults). Conv biases are kept in
    # the param tuple for interface fidelity but are a no-op under training-mode BN.
    k1, k2, k3, k4 = jax.random.split(key, 4)
    bound1 = 1.0 / float(jnp.sqrt(cin * 27.0))
    bound2 = 1.0 / float(jnp.sqrt(cout * 27.0))
    w1 = jax.random.uniform(k1, (3, 3, 3, cin, cout), jnp.float32, -bound1, bound1)
    b1 = jax.random.uniform(k2, (1, cout), jnp.float32, -bound1, bound1)
    w2 = jax.random.uniform(k3, (3, 3, 3, cout, cout), jnp.float32, -bound2, bound2)
    b2 = jax.random.uniform(k4, (1, cout), jnp.float32, -bound2, bound2)
    g1 = jnp.ones((1, cout), jnp.float32)
    be1 = jnp.zeros((1, cout), jnp.float32)
    g2 = jnp.ones((1, cout), jnp.float32)
    be2 = jnp.zeros((1, cout), jnp.float32)
    return (w1, b1, g1, be1, w2, b2, g2, be2)


def down3d_reference(x_ncdhw, params):
    """Pure-JAX reference (same training-mode BN semantics; includes the conv bias, which BN
    cancels — demonstrating the kernel's bias-drop is exact)."""
    w1, b1, g1, be1, w2, b2, g2, be2 = params
    x = jnp.transpose(x_ncdhw, (0, 2, 3, 4, 1))
    p = lax.reduce_window(x, -jnp.inf, lax.max, (1, 2, 2, 2, 1), (1, 2, 2, 2, 1), 'VALID')
    dn = ('NDHWC', 'DHWIO', 'NDHWC')

    def block(h, w, bb, g, be):
        c = lax.conv_general_dilated(h, w, (1, 1, 1), 'SAME', dimension_numbers=dn,
                                     precision=lax.Precision.HIGHEST)
        c = c + bb.reshape(1, 1, 1, 1, -1)
        mu = jnp.mean(c, axis=(0, 1, 2, 3), keepdims=True)
        var = jnp.mean(jnp.square(c - mu), axis=(0, 1, 2, 3), keepdims=True)
        y = (c - mu) * lax.rsqrt(var + EPS) * g.reshape(1, 1, 1, 1, -1) + be.reshape(1, 1, 1, 1, -1)
        return jnp.maximum(y, 0.0)

    h = block(p, w1, b1, g1, be1)
    h = block(h, w2, b2, g2, be2)
    return jnp.transpose(h, (0, 4, 1, 2, 3))


if __name__ == "__main__":
    key = jax.random.PRNGKey(0)
    kx, kp = jax.random.split(key)
    N, Cin, Cout, D, H, W = 2, 4, 8, 16, 16, 16
    x = jax.random.normal(kx, (N, Cin, D, H, W), jnp.float32)
    params = init_params(kp, Cin, Cout)

    y_ref = down3d_reference(x, params)

    # Exact-math path (f32 matmuls): tight check.
    y32 = jax.block_until_ready(down3d_forward(x, params, matmul_dtype=jnp.float32))
    assert y32.shape == (N, Cout, D // 2, H // 2, W // 2)
    err32 = float(jnp.max(jnp.abs(y32 - y_ref)))
    assert err32 < 2e-3, f"f32 max abs diff vs reference: {err32}"

    # Default path (bf16 matmuls, f32 accumulation): BN re-normalizes, so only a small
    # quantization-level absolute error remains.
    y = jax.block_until_ready(down3d_forward(x, params))
    assert y.shape == (N, Cout, D // 2, H // 2, W // 2)
    err_max = float(jnp.max(jnp.abs(y - y_ref)))
    err_mean = float(jnp.mean(jnp.abs(y - y_ref)))
    assert err_max < 2e-1 and err_mean < 2e-2, f"bf16 diff: max={err_max} mean={err_mean}"

    print("KERNEL_OK")
</pallas_src>

<mosaic_0001>
module attributes {stable_mosaic.version = 11 : i64} {
  func.func @_down3d_kernel(%arg0: memref<2x8x8x256xf32, #tpu.memory_space<vmem>>, %arg1: memref<3x3x32x64xf32, #tpu.memory_space<vmem>>, %arg2: memref<3x3x64x64xf32, #tpu.memory_space<vmem>>, %arg3: memref<1x8xf32, #tpu.memory_space<vmem>>, %arg4: memref<1x8xf32, #tpu.memory_space<vmem>>, %arg5: memref<1x8xf32, #tpu.memory_space<vmem>>, %arg6: memref<1x8xf32, #tpu.memory_space<vmem>>, %arg7: memref<64x8xf32, #tpu.memory_space<vmem>>, %arg8: memref<8x64xf32, #tpu.memory_space<vmem>>, %arg9: memref<128x64xf32, #tpu.memory_space<vmem>>, %arg10: memref<2x10x10x64xf32, #tpu.memory_space<vmem>>) attributes {dimension_semantics = [], scalar_prefetch = 0 : i64, scratch_operands = 1 : i64, tpu.core_type = #tpu.core_type<tc>} {
    %c0 = arith.constant 0 : index
    %c0_0 = arith.constant 0 : index
    %c0_1 = arith.constant 0 : index
    %c0_2 = arith.constant 0 : index
    %0 = vector.load %arg0[%c0, %c0_0, %c0_1, %c0_2] : memref<2x8x8x256xf32, #tpu.memory_space<vmem>>, vector<2x8x8x32xf32>
    %c0_3 = arith.constant 0 : index
    %c0_4 = arith.constant 0 : index
    %c0_5 = arith.constant 0 : index
    %c32 = arith.constant 32 : index
    %1 = vector.load %arg0[%c0_3, %c0_4, %c0_5, %c32] : memref<2x8x8x256xf32, #tpu.memory_space<vmem>>, vector<2x8x8x32xf32>
    %2 = arith.maximumf %0, %1 : vector<2x8x8x32xf32>
    %c0_6 = arith.constant 0 : index
    %c0_7 = arith.constant 0 : index
    %c0_8 = arith.constant 0 : index
    %c64 = arith.constant 64 : index
    %3 = vector.load %arg0[%c0_6, %c0_7, %c0_8, %c64] : memref<2x8x8x256xf32, #tpu.memory_space<vmem>>, vector<2x8x8x32xf32>
    %4 = arith.maximumf %2, %3 : vector<2x8x8x32xf32>
    %c0_9 = arith.constant 0 : index
    %c0_10 = arith.constant 0 : index
    %c0_11 = arith.constant 0 : index
    %c96 = arith.constant 96 : index
    %5 = vector.load %arg0[%c0_9, %c0_10, %c0_11, %c96] : memref<2x8x8x256xf32, #tpu.memory_space<vmem>>, vector<2x8x8x32xf32>
    %6 = arith.maximumf %4, %5 : vector<2x8x8x32xf32>
    %c0_12 = arith.constant 0 : index
    %c0_13 = arith.constant 0 : index
    %c0_14 = arith.constant 0 : index
    %c128 = arith.constant 128 : index
    %7 = vector.load %arg0[%c0_12, %c0_13, %c0_14, %c128] : memref<2x8x8x256xf32, #tpu.memory_space<vmem>>, vector<2x8x8x32xf32>
    %8 = arith.maximumf %6, %7 : vector<2x8x8x32xf32>
    %c0_15 = arith.constant 0 : index
    %c0_16 = arith.constant 0 : index
    %c0_17 = arith.constant 0 : index
    %c160 = arith.constant 160 : index
    %9 = vector.load %arg0[%c0_15, %c0_16, %c0_17, %c160] : memref<2x8x8x256xf32, #tpu.memory_space<vmem>>, vector<2x8x8x32xf32>
    %10 = arith.maximumf %8, %9 : vector<2x8x8x32xf32>
    %c0_18 = arith.constant 0 : index
    %c0_19 = arith.constant 0 : index
    %c0_20 = arith.constant 0 : index
    %c192 = arith.constant 192 : index
    %11 = vector.load %arg0[%c0_18, %c0_19, %c0_20, %c192] : memref<2x8x8x256xf32, #tpu.memory_space<vmem>>, vector<2x8x8x32xf32>
    %12 = arith.maximumf %10, %11 : vector<2x8x8x32xf32>
    %c0_21 = arith.constant 0 : index
    %c0_22 = arith.constant 0 : index
    %c0_23 = arith.constant 0 : index
    %c224 = arith.constant 224 : index
    %13 = vector.load %arg0[%c0_21, %c0_22, %c0_23, %c224] : memref<2x8x8x256xf32, #tpu.memory_space<vmem>>, vector<2x8x8x32xf32>
    %14 = arith.maximumf %12, %13 : vector<2x8x8x32xf32>
    %cst = arith.constant 0.000000e+00 : f32
    %15 = vector.broadcast %cst : f32 to vector<2x10x10x64xf32>
    %c0_24 = arith.constant 0 : index
    %c0_25 = arith.constant 0 : index
    %c0_26 = arith.constant 0 : index
    %c0_27 = arith.constant 0 : index
    %16 = vector.load %arg10[%c0_24, %c0_25, %c0_26, %c0_27] : memref<2x10x10x64xf32, #tpu.memory_space<vmem>>, vector<2x10x10x64xf32>
    tpu.vector_store %arg10[%c0_24, %c0_25, %c0_26, %c0_27], %15 {strides = array<i32>} : memref<2x10x10x64xf32, #tpu.memory_space<vmem>>, vector<2x10x10x64xf32>,
    %c0_28 = arith.constant 0 : index
    %c1 = arith.constant 1 : index
    %c1_29 = arith.constant 1 : index
    %c0_30 = arith.constant 0 : index
    %17 = vector.load %arg10[%c0_28, %c1, %c1_29, %c0_30] : memref<2x10x10x64xf32, #tpu.memory_space<vmem>>, vector<2x8x8x32xf32>
    tpu.vector_store %arg10[%c0_28, %c1, %c1_29, %c0_30], %14 {strides = array<i32>} : memref<2x10x10x64xf32, #tpu.memory_space<vmem>>, vector<2x8x8x32xf32>,
    %c0_31 = arith.constant 0 : index
    %c0_32 = arith.constant 0 : index
    %18 = vector.load %arg7[%c0_31, %c0_32] : memref<64x8xf32, #tpu.memory_space<vmem>>, vector<64x8xf32>
    %c0_33 = arith.constant 0 : index
    %c0_34 = arith.constant 0 : index
    %19 = vector.load %arg8[%c0_33, %c0_34] : memref<8x64xf32, #tpu.memory_space<vmem>>, vector<8x64xf32>
    %c0_35 = arith.constant 0 : index
    %c0_36 = arith.constant 0 : index
    %20 = vector.load %arg3[%c0_35, %c0_36] : memref<1x8xf32, #tpu.memory_space<vmem>>, vector<1x8xf32>
    %c0_37 = arith.constant 0 : index
    %c0_38 = arith.constant 0 : index
    %21 = vector.load %arg4[%c0_37, %c0_38] : memref<1x8xf32, #tpu.memory_space<vmem>>, vector<1x8xf32>
    %cst_39 = arith.constant 0.000000e+00 : f32
    %22 = vector.broadcast %cst_39 : f32 to vector<128x64xf32>
    %c0_40 = arith.constant 0 : index
    %c0_41 = arith.constant 0 : index
    %c0_42 = arith.constant 0 : index
    %c0_43 = arith.constant 0 : index
    %23 = vector.load %arg10[%c0_40, %c0_41, %c0_42, %c0_43] : memref<2x10x10x64xf32, #tpu.memory_space<vmem>>, vector<2x8x8x32xf32>
    %24 = vector.shape_cast %23 : vector<2x8x8x32xf32> to vector<128x32xf32>
    %c0_44 = arith.constant 0 : index
    %c0_45 = arith.constant 0 : index
    %c0_46 = arith.constant 0 : index
    %c0_47 = arith.constant 0 : index
    %25 = vector.load %arg1[%c0_44, %c0_45, %c0_46, %c0_47] : memref<3x3x32x64xf32, #tpu.memory_space<vmem>>, vector<1x1x32x64xf32>
    %26 = vector.shape_cast %25 : vector<1x1x32x64xf32> to vector<32x64xf32>
    %cst_48 = arith.constant dense<0.000000e+00> : vector<128x64xf32>
    %27 = tpu.matmul %24, %26, %cst_48 {dimension_numbers = #tpu.dot_dimension_numbers<[1], [0], [0], [1], [0, 0, 1, 1], [], []>} : vector<128x32xf32>, vector<32x64xf32>, vector<128x64xf32> -> vector<128x64xf32>
    %28 = arith.addf %22, %27 : vector<128x64xf32>
    %c0_49 = arith.constant 0 : index
    %c0_50 = arith.constant 0 : index
    %c1_51 = arith.constant 1 : index
    %c0_52 = arith.constant 0 : index
    %29 = vector.load %arg10[%c0_49, %c0_50, %c1_51, %c0_52] : memref<2x10x10x64xf32, #tpu.memory_space<vmem>>, vector<2x8x8x32xf32>
    %30 = vector.shape_cast %29 : vector<2x8x8x32xf32> to vector<128x32xf32>
    %c0_53 = arith.constant 0 : index
    %c1_54 = arith.constant 1 : index
    %c0_55 = arith.constant 0 : index
    %c0_56 = arith.constant 0 : index
    %31 = vector.load %arg1[%c0_53, %c1_54, %c0_55, %c0_56] : memref<3x3x32x64xf32, #tpu.memory_space<vmem>>, vector<1x1x32x64xf32>
    %32 = vector.shape_cast %31 : vector<1x1x32x64xf32> to vector<32x64xf32>
    %cst_57 = arith.constant dense<0.000000e+00> : vector<128x64xf32>
    %33 = tpu.matmul %30, %32, %cst_57 {dimension_numbers = #tpu.dot_dimension_numbers<[1], [0], [0], [1], [0, 0, 1, 1], [], []>} : vector<128x32xf32>, vector<32x64xf32>, vector<128x64xf32> -> vector<128x64xf32>
    %34 = arith.addf %28, %33 : vector<128x64xf32>
    %c0_58 = arith.constant 0 : index
    %c0_59 = arith.constant 0 : index
    %c2 = arith.constant 2 : index
    %c0_60 = arith.constant 0 : index
    %35 = vector.load %arg10[%c0_58, %c0_59, %c2, %c0_60] : memref<2x10x10x64xf32, #tpu.memory_space<vmem>>, vector<2x8x8x32xf32>
    %36 = vector.shape_cast %35 : vector<2x8x8x32xf32> to vector<128x32xf32>
    %c0_61 = arith.constant 0 : index
    %c2_62 = arith.constant 2 : index
    %c0_63 = arith.constant 0 : index
    %c0_64 = arith.constant 0 : index
    %37 = vector.load %arg1[%c0_61, %c2_62, %c0_63, %c0_64] : memref<3x3x32x64xf32, #tpu.memory_space<vmem>>, vector<1x1x32x64xf32>
    %38 = vector.shape_cast %37 : vector<1x1x32x64xf32> to vector<32x64xf32>
    %cst_65 = arith.constant dense<0.000000e+00> : vector<128x64xf32>
    %39 = tpu.matmul %36, %38, %cst_65 {dimension_numbers = #tpu.dot_dimension_numbers<[1], [0], [0], [1], [0, 0, 1, 1], [], []>} : vector<128x32xf32>, vector<32x64xf32>, vector<128x64xf32> -> vector<128x64xf32>
    %40 = arith.addf %34, %39 : vector<128x64xf32>
    %c0_66 = arith.constant 0 : index
    %c1_67 = arith.constant 1 : index
    %c0_68 = arith.constant 0 : index
    %c0_69 = arith.constant 0 : index
    %41 = vector.load %arg10[%c0_66, %c1_67, %c0_68, %c0_69] : memref<2x10x10x64xf32, #tpu.memory_space<vmem>>, vector<2x8x8x32xf32>
    %42 = vector.shape_cast %41 : vector<2x8x8x32xf32> to vector<128x32xf32>
    %c1_70 = arith.constant 1 : index
    %c0_71 = arith.constant 0 : index
    %c0_72 = arith.constant 0 : index
    %c0_73 = arith.constant 0 : index
    %43 = vector.load %arg1[%c1_70, %c0_71, %c0_72, %c0_73] : memref<3x3x32x64xf32, #tpu.memory_space<vmem>>, vector<1x1x32x64xf32>
    %44 = vector.shape_cast %43 : vector<1x1x32x64xf32> to vector<32x64xf32>
    %cst_74 = arith.constant dense<0.000000e+00> : vector<128x64xf32>
    %45 = tpu.matmul %42, %44, %cst_74 {dimension_numbers = #tpu.dot_dimension_numbers<[1], [0], [0], [1], [0, 0, 1, 1], [], []>} : vector<128x32xf32>, vector<32x64xf32>, vector<128x64xf32> -> vector<128x64xf32>
    %46 = arith.addf %40, %45 : vector<128x64xf32>
    %c0_75 = arith.constant 0 : index
    %c1_76 = arith.constant 1 : index
    %c1_77 = arith.constant 1 : index
    %c0_78 = arith.constant 0 : index
    %47 = vector.load %arg10[%c0_75, %c1_76, %c1_77, %c0_78] : memref<2x10x10x64xf32, #tpu.memory_space<vmem>>, vector<2x8x8x32xf32>
    %48 = vector.shape_cast %47 : vector<2x8x8x32xf32> to vector<128x32xf32>
    %c1_79 = arith.constant 1 : index
    %c1_80 = arith.constant 1 : index
    %c0_81 = arith.constant 0 : index
    %c0_82 = arith.constant 0 : index
    %49 = vector.load %arg1[%c1_79, %c1_80, %c0_81, %c0_82] : memref<3x3x32x64xf32, #tpu.memory_space<vmem>>, vector<1x1x32x64xf32>
    %50 = vector.shape_cast %49 : vector<1x1x32x64xf32> to vector<32x64xf32>
    %cst_83 = arith.constant dense<0.000000e+00> : vector<128x64xf32>
    %51 = tpu.matmul %48, %50, %cst_83 {dimension_numbers = #tpu.dot_dimension_numbers<[1], [0], [0], [1], [0, 0, 1, 1], [], []>} : vector<128x32xf32>, vector<32x64xf32>, vector<128x64xf32> -> vector<128x64xf32>
    %52 = arith.addf %46, %51 : vector<128x64xf32>
    %c0_84 = arith.constant 0 : index
    %c1_85 = arith.constant 1 : index
    %c2_86 = arith.constant 2 : index
    %c0_87 = arith.constant 0 : index
    %53 = vector.load %arg10[%c0_84, %c1_85, %c2_86, %c0_87] : memref<2x10x10x64xf32, #tpu.memory_space<vmem>>, vector<2x8x8x32xf32>
    %54 = vector.shape_cast %53 : vector<2x8x8x32xf32> to vector<128x32xf32>
    %c1_88 = arith.constant 1 : index
    %c2_89 = arith.constant 2 : index
    %c0_90 = arith.constant 0 : index
    %c0_91 = arith.constant 0 : index
    %55 = vector.load %arg1[%c1_88, %c2_89, %c0_90, %c0_91] : memref<3x3x32x64xf32, #tpu.memory_space<vmem>>, vector<1x1x32x64xf32>
    %56 = vector.shape_cast %55 : vector<1x1x32x64xf32> to vector<32x64xf32>
    %cst_92 = arith.constant dense<0.000000e+00> : vector<128x64xf32>
    %57 = tpu.matmul %54, %56, %cst_92 {dimension_numbers = #tpu.dot_dimension_numbers<[1], [0], [0], [1], [0, 0, 1, 1], [], []>} : vector<128x32xf32>, vector<32x64xf32>, vector<128x64xf32> -> vector<128x64xf32>
    %58 = arith.addf %52, %57 : vector<128x64xf32>
    %c0_93 = arith.constant 0 : index
    %c2_94 = arith.constant 2 : index
    %c0_95 = arith.constant 0 : index
    %c0_96 = arith.constant 0 : index
    %59 = vector.load %arg10[%c0_93, %c2_94, %c0_95, %c0_96] : memref<2x10x10x64xf32, #tpu.memory_space<vmem>>, vector<2x8x8x32xf32>
    %60 = vector.shape_cast %59 : vector<2x8x8x32xf32> to vector<128x32xf32>
    %c2_97 = arith.constant 2 : index
    %c0_98 = arith.constant 0 : index
    %c0_99 = arith.constant 0 : index
    %c0_100 = arith.constant 0 : index
    %61 = vector.load %arg1[%c2_97, %c0_98, %c0_99, %c0_100] : memref<3x3x32x64xf32, #tpu.memory_space<vmem>>, vector<1x1x32x64xf32>
    %62 = vector.shape_cast %61 : vector<1x1x32x64xf32> to vector<32x64xf32>
    %cst_101 = arith.constant dense<0.000000e+00> : vector<128x64xf32>
    %63 = tpu.matmul %60, %62, %cst_101 {dimension_numbers = #tpu.dot_dimension_numbers<[1], [0], [0], [1], [0, 0, 1, 1], [], []>} : vector<128x32xf32>, vector<32x64xf32>, vector<128x64xf32> -> vector<128x64xf32>
    %64 = arith.addf %58, %63 : vector<128x64xf32>
    %c0_102 = arith.constant 0 : index
    %c2_103 = arith.constant 2 : index
    %c1_104 = arith.constant 1 : index
    %c0_105 = arith.constant 0 : index
    %65 = vector.load %arg10[%c0_102, %c2_103, %c1_104, %c0_105] : memref<2x10x10x64xf32, #tpu.memory_space<vmem>>, vector<2x8x8x32xf32>
    %66 = vector.shape_cast %65 : vector<2x8x8x32xf32> to vector<128x32xf32>
    %c2_106 = arith.constant 2 : index
    %c1_107 = arith.constant 1 : index
    %c0_108 = arith.constant 0 : index
    %c0_109 = arith.constant 0 : index
    %67 = vector.load %arg1[%c2_106, %c1_107, %c0_108, %c0_109] : memref<3x3x32x64xf32, #tpu.memory_space<vmem>>, vector<1x1x32x64xf32>
    %68 = vector.shape_cast %67 : vector<1x1x32x64xf32> to vector<32x64xf32>
    %cst_110 = arith.constant dense<0.000000e+00> : vector<128x64xf32>
    %69 = tpu.matmul %66, %68, %cst_110 {dimension_numbers = #tpu.dot_dimension_numbers<[1], [0], [0], [1], [0, 0, 1, 1], [], []>} : vector<128x32xf32>, vector<32x64xf32>, vector<128x64xf32> -> vector<128x64xf32>
    %70 = arith.addf %64, %69 : vector<128x64xf32>
    %c0_111 = arith.constant 0 : index
    %c2_112 = arith.constant 2 : index
    %c2_113 = arith.constant 2 : index
    %c0_114 = arith.constant 0 : index
    %71 = vector.load %arg10[%c0_111, %c2_112, %c2_113, %c0_114] : memref<2x10x10x64xf32, #tpu.memory_space<vmem>>, vector<2x8x8x32xf32>
    %72 = vector.shape_cast %71 : vector<2x8x8x32xf32> to vector<128x32xf32>
    %c2_115 = arith.constant 2 : index
    %c2_116 = arith.constant 2 : index
    %c0_117 = arith.constant 0 : index
    %c0_118 = arith.constant 0 : index
    %73 = vector.load %arg1[%c2_115, %c2_116, %c0_117, %c0_118] : memref<3x3x32x64xf32, #tpu.memory_space<vmem>>, vector<1x1x32x64xf32>
    %74 = vector.shape_cast %73 : vector<1x1x32x64xf32> to vector<32x64xf32>
    %cst_119 = arith.constant dense<0.000000e+00> : vector<128x64xf32>
    %75 = tpu.matmul %72, %74, %cst_119 {dimension_numbers = #tpu.dot_dimension_numbers<[1], [0], [0], [1], [0, 0, 1, 1], [], []>} : vector<128x32xf32>, vector<32x64xf32>, vector<128x64xf32> -> vector<128x64xf32>
    %76 = arith.addf %70, %75 : vector<128x64xf32>
    %cst_120 = arith.constant dense<0.000000e+00> : vector<64xf32>
    %77 = vector.multi_reduction <add>, %76, %cst_120 [0] : vector<128x64xf32> to vector<64xf32>
    %78 = vector.shape_cast %77 : vector<64xf32> to vector<1x64xf32>
    %cst_121 = arith.constant dense<0.000000e+00> : vector<1x8xf32>
    %79 = tpu.matmul %78, %18, %cst_121 {dimension_numbers = #tpu.dot_dimension_numbers<[1], [0], [0], [1], [0, 0, 1, 1], [], []>} : vector<1x64xf32>, vector<64x8xf32>, vector<1x8xf32> -> vector<1x8xf32>
    %cst_122 = arith.constant 1.024000e+03 : f32
    %80 = vector.broadcast %cst_122 : f32 to vector<1x8xf32>
    %81 = arith.divf %79, %80 : vector<1x8xf32>
    %cst_123 = arith.constant dense<0.000000e+00> : vector<1x64xf32>
    %82 = tpu.matmul %81, %19, %cst_123 {dimension_numbers = #tpu.dot_dimension_numbers<[1], [0], [0], [1], [0, 0, 1, 1], [], []>} : vector<1x8xf32>, vector<8x64xf32>, vector<1x64xf32> -> vector<1x64xf32>
    %83 = vector.broadcast %82 : vector<1x64xf32> to vector<128x64xf32>
    %84 = arith.subf %76, %83 : vector<128x64xf32>
    %85 = arith.mulf %84, %84 : vector<128x64xf32>
    %cst_124 = arith.constant dense<0.000000e+00> : vector<64xf32>
    %86 = vector.multi_reduction <add>, %85, %cst_124 [0] : vector<128x64xf32> to vector<64xf32>
    %87 = vector.shape_cast %86 : vector<64xf32> to vector<1x64xf32>
    %cst_125 = arith.constant dense<0.000000e+00> : vector<1x8xf32>
    %88 = tpu.matmul %87, %18, %cst_125 {dimension_numbers = #tpu.dot_dimension_numbers<[1], [0], [0], [1], [0, 0, 1, 1], [], []>} : vector<1x64xf32>, vector<64x8xf32>, vector<1x8xf32> -> vector<1x8xf32>
    %cst_126 = arith.constant 1.024000e+03 : f32
    %89 = vector.broadcast %cst_126 : f32 to vector<1x8xf32>
    %90 = arith.divf %88, %89 : vector<1x8xf32>
    %cst_127 = arith.constant 9.99999974E-6 : f32
    %91 = vector.broadcast %cst_127 : f32 to vector<1x8xf32>
    %92 = arith.addf %90, %91 : vector<1x8xf32>
    %93 = math.rsqrt %92 : vector<1x8xf32>
    %94 = arith.mulf %20, %93 : vector<1x8xf32>
    %cst_128 = arith.constant dense<0.000000e+00> : vector<1x64xf32>
    %95 = tpu.matmul %94, %19, %cst_128 {dimension_numbers = #tpu.dot_dimension_numbers<[1], [0], [0], [1], [0, 0, 1, 1], [], []>} : vector<1x8xf32>, vector<8x64xf32>, vector<1x64xf32> -> vector<1x64xf32>
    %cst_129 = arith.constant dense<0.000000e+00> : vector<1x64xf32>
    %96 = tpu.matmul %21, %19, %cst_129 {dimension_numbers = #tpu.dot_dimension_numbers<[1], [0], [0], [1], [0, 0, 1, 1], [], []>} : vector<1x8xf32>, vector<8x64xf32>, vector<1x64xf32> -> vector<1x64xf32>
    %97 = vector.broadcast %95 : vector<1x64xf32> to vector<128x64xf32>
    %98 = arith.mulf %84, %97 : vector<128x64xf32>
    %99 = vector.broadcast %96 : vector<1x64xf32> to vector<128x64xf32>
    %100 = arith.addf %98, %99 : vector<128x64xf32>
    %cst_130 = arith.constant 0.000000e+00 : f32
    %101 = vector.broadcast %cst_130 : f32 to vector<128x64xf32>
    %102 = arith.maximumf %100, %101 : vector<128x64xf32>
    %103 = vector.shape_cast %102 : vector<128x64xf32> to vector<2x8x8x64xf32>
    %c0_131 = arith.constant 0 : index
    %c1_132 = arith.constant 1 : index
    %c1_133 = arith.constant 1 : index
    %c0_134 = arith.constant 0 : index
    %104 = vector.load %arg10[%c0_131, %c1_132, %c1_133, %c0_134] : memref<2x10x10x64xf32, #tpu.memory_space<vmem>>, vector<2x8x8x64xf32>
    tpu.vector_store %arg10[%c0_131, %c1_132, %c1_133, %c0_134], %103 {strides = array<i32>} : memref<2x10x10x64xf32, #tpu.memory_space<vmem>>, vector<2x8x8x64xf32>,
    %c0_135 = arith.constant 0 : index
    %c0_136 = arith.constant 0 : index
    %105 = vector.load %arg5[%c0_135, %c0_136] : memref<1x8xf32, #tpu.memory_space<vmem>>, vector<1x8xf32>
    %c0_137 = arith.constant 0 : index
    %c0_138 = arith.constant 0 : index
    %106 = vector.load %arg6[%c0_137, %c0_138] : memref<1x8xf32, #tpu.memory_space<vmem>>, vector<1x8xf32>
    %cst_139 = arith.constant 0.000000e+00 : f32
    %107 = vector.broadcast %cst_139 : f32 to vector<128x64xf32>
    %c0_140 = arith.constant 0 : index
    %c0_141 = arith.constant 0 : index
    %c0_142 = arith.constant 0 : index
    %c0_143 = arith.constant 0 : index
    %108 = vector.load %arg10[%c0_140, %c0_141, %c0_142, %c0_143] : memref<2x10x10x64xf32, #tpu.memory_space<vmem>>, vector<2x8x8x64xf32>
    %109 = vector.shape_cast %108 : vector<2x8x8x64xf32> to vector<128x64xf32>
    %c0_144 = arith.constant 0 : index
    %c0_145 = arith.constant 0 : index
    %c0_146 = arith.constant 0 : index
    %c0_147 = arith.constant 0 : index
    %110 = vector.load %arg2[%c0_144, %c0_145, %c0_146, %c0_147] : memref<3x3x64x64xf32, #tpu.memory_space<vmem>>, vector<1x1x64x64xf32>
    %111 = vector.shape_cast %110 : vector<1x1x64x64xf32> to vector<64x64xf32>
    %cst_148 = arith.constant dense<0.000000e+00> : vector<128x64xf32>
    %112 = tpu.matmul %109, %111, %cst_148 {dimension_numbers = #tpu.dot_dimension_numbers<[1], [0], [0], [1], [0, 0, 1, 1], [], []>} : vector<128x64xf32>, vector<64x64xf32>, vector<128x64xf32> -> vector<128x64xf32>
    %113 = arith.addf %107, %112 : vector<128x64xf32>
    %c0_149 = arith.constant 0 : index
    %c0_150 = arith.constant 0 : index
    %c1_151 = arith.constant 1 : index
    %c0_152 = arith.constant 0 : index
    %114 = vector.load %arg10[%c0_149, %c0_150, %c1_151, %c0_152] : memref<2x10x10x64xf32, #tpu.memory_space<vmem>>, vector<2x8x8x64xf32>
    %115 = vector.shape_cast %114 : vector<2x8x8x64xf32> to vector<128x64xf32>
    %c0_153 = arith.constant 0 : index
    %c1_154 = arith.constant 1 : index
    %c0_155 = arith.constant 0 : index
    %c0_156 = arith.constant 0 : index
    %116 = vector.load %arg2[%c0_153, %c1_154, %c0_155, %c0_156] : memref<3x3x64x64xf32, #tpu.memory_space<vmem>>, vector<1x1x64x64xf32>
    %117 = vector.shape_cast %116 : vector<1x1x64x64xf32> to vector<64x64xf32>
    %cst_157 = arith.constant dense<0.000000e+00> : vector<128x64xf32>
    %118 = tpu.matmul %115, %117, %cst_157 {dimension_numbers = #tpu.dot_dimension_numbers<[1], [0], [0], [1], [0, 0, 1, 1], [], []>} : vector<128x64xf32>, vector<64x64xf32>, vector<128x64xf32> -> vector<128x64xf32>
    %119 = arith.addf %113, %118 : vector<128x64xf32>
    %c0_158 = arith.constant 0 : index
    %c0_159 = arith.constant 0 : index
    %c2_160 = arith.constant 2 : index
    %c0_161 = arith.constant 0 : index
    %120 = vector.load %arg10[%c0_158, %c0_159, %c2_160, %c0_161] : memref<2x10x10x64xf32, #tpu.memory_space<vmem>>, vector<2x8x8x64xf32>
    %121 = vector.shape_cast %120 : vector<2x8x8x64xf32> to vector<128x64xf32>
    %c0_162 = arith.constant 0 : index
    %c2_163 = arith.constant 2 : index
    %c0_164 = arith.constant 0 : index
    %c0_165 = arith.constant 0 : index
    %122 = vector.load %arg2[%c0_162, %c2_163, %c0_164, %c0_165] : memref<3x3x64x64xf32, #tpu.memory_space<vmem>>, vector<1x1x64x64xf32>
    %123 = vector.shape_cast %122 : vector<1x1x64x64xf32> to vector<64x64xf32>
    %cst_166 = arith.constant dense<0.000000e+00> : vector<128x64xf32>
    %124 = tpu.matmul %121, %123, %cst_166 {dimension_numbers = #tpu.dot_dimension_numbers<[1], [0], [0], [1], [0, 0, 1, 1], [], []>} : vector<128x64xf32>, vector<64x64xf32>, vector<128x64xf32> -> vector<128x64xf32>
    %125 = arith.addf %119, %124 : vector<128x64xf32>
    %c0_167 = arith.constant 0 : index
    %c1_168 = arith.constant 1 : index
    %c0_169 = arith.constant 0 : index
    %c0_170 = arith.constant 0 : index
    %126 = vector.load %arg10[%c0_167, %c1_168, %c0_169, %c0_170] : memref<2x10x10x64xf32, #tpu.memory_space<vmem>>, vector<2x8x8x64xf32>
    %127 = vector.shape_cast %126 : vector<2x8x8x64xf32> to vector<128x64xf32>
    %c1_171 = arith.constant 1 : index
    %c0_172 = arith.constant 0 : index
    %c0_173 = arith.constant 0 : index
    %c0_174 = arith.constant 0 : index
    %128 = vector.load %arg2[%c1_171, %c0_172, %c0_173, %c0_174] : memref<3x3x64x64xf32, #tpu.memory_space<vmem>>, vector<1x1x64x64xf32>
    %129 = vector.shape_cast %128 : vector<1x1x64x64xf32> to vector<64x64xf32>
    %cst_175 = arith.constant dense<0.000000e+00> : vector<128x64xf32>
    %130 = tpu.matmul %127, %129, %cst_175 {dimension_numbers = #tpu.dot_dimension_numbers<[1], [0], [0], [1], [0, 0, 1, 1], [], []>} : vector<128x64xf32>, vector<64x64xf32>, vector<128x64xf32> -> vector<128x64xf32>
    %131 = arith.addf %125, %130 : vector<128x64xf32>
    %c0_176 = arith.constant 0 : index
    %c1_177 = arith.constant 1 : index
    %c1_178 = arith.constant 1 : index
    %c0_179 = arith.constant 0 : index
    %132 = vector.load %arg10[%c0_176, %c1_177, %c1_178, %c0_179] : memref<2x10x10x64xf32, #tpu.memory_space<vmem>>, vector<2x8x8x64xf32>
    %133 = vector.shape_cast %132 : vector<2x8x8x64xf32> to vector<128x64xf32>
    %c1_180 = arith.constant 1 : index
    %c1_181 = arith.constant 1 : index
    %c0_182 = arith.constant 0 : index
    %c0_183 = arith.constant 0 : index
    %134 = vector.load %arg2[%c1_180, %c1_181, %c0_182, %c0_183] : memref<3x3x64x64xf32, #tpu.memory_space<vmem>>, vector<1x1x64x64xf32>
    %135 = vector.shape_cast %134 : vector<1x1x64x64xf32> to vector<64x64xf32>
    %cst_184 = arith.constant dense<0.000000e+00> : vector<128x64xf32>
    %136 = tpu.matmul %133, %135, %cst_184 {dimension_numbers = #tpu.dot_dimension_numbers<[1], [0], [0], [1], [0, 0, 1, 1], [], []>} : vector<128x64xf32>, vector<64x64xf32>, vector<128x64xf32> -> vector<128x64xf32>
    %137 = arith.addf %131, %136 : vector<128x64xf32>
    %c0_185 = arith.constant 0 : index
    %c1_186 = arith.constant 1 : index
    %c2_187 = arith.constant 2 : index
    %c0_188 = arith.constant 0 : index
    %138 = vector.load %arg10[%c0_185, %c1_186, %c2_187, %c0_188] : memref<2x10x10x64xf32, #tpu.memory_space<vmem>>, vector<2x8x8x64xf32>
    %139 = vector.shape_cast %138 : vector<2x8x8x64xf32> to vector<128x64xf32>
    %c1_189 = arith.constant 1 : index
    %c2_190 = arith.constant 2 : index
    %c0_191 = arith.constant 0 : index
    %c0_192 = arith.constant 0 : index
    %140 = vector.load %arg2[%c1_189, %c2_190, %c0_191, %c0_192] : memref<3x3x64x64xf32, #tpu.memory_space<vmem>>, vector<1x1x64x64xf32>
    %141 = vector.shape_cast %140 : vector<1x1x64x64xf32> to vector<64x64xf32>
    %cst_193 = arith.constant dense<0.000000e+00> : vector<128x64xf32>
    %142 = tpu.matmul %139, %141, %cst_193 {dimension_numbers = #tpu.dot_dimension_numbers<[1], [0], [0], [1], [0, 0, 1, 1], [], []>} : vector<128x64xf32>, vector<64x64xf32>, vector<128x64xf32> -> vector<128x64xf32>
    %143 = arith.addf %137, %142 : vector<128x64xf32>
    %c0_194 = arith.constant 0 : index
    %c2_195 = arith.constant 2 : index
    %c0_196 = arith.constant 0 : index
    %c0_197 = arith.constant 0 : index
    %144 = vector.load %arg10[%c0_194, %c2_195, %c0_196, %c0_197] : memref<2x10x10x64xf32, #tpu.memory_space<vmem>>, vector<2x8x8x64xf32>
    %145 = vector.shape_cast %144 : vector<2x8x8x64xf32> to vector<128x64xf32>
    %c2_198 = arith.constant 2 : index
    %c0_199 = arith.constant 0 : index
    %c0_200 = arith.constant 0 : index
    %c0_201 = arith.constant 0 : index
    %146 = vector.load %arg2[%c2_198, %c0_199, %c0_200, %c0_201] : memref<3x3x64x64xf32, #tpu.memory_space<vmem>>, vector<1x1x64x64xf32>
    %147 = vector.shape_cast %146 : vector<1x1x64x64xf32> to vector<64x64xf32>
    %cst_202 = arith.constant dense<0.000000e+00> : vector<128x64xf32>
    %148 = tpu.matmul %145, %147, %cst_202 {dimension_numbers = #tpu.dot_dimension_numbers<[1], [0], [0], [1], [0, 0, 1, 1], [], []>} : vector<128x64xf32>, vector<64x64xf32>, vector<128x64xf32> -> vector<128x64xf32>
    %149 = arith.addf %143, %148 : vector<128x64xf32>
    %c0_203 = arith.constant 0 : index
    %c2_204 = arith.constant 2 : index
    %c1_205 = arith.constant 1 : index
    %c0_206 = arith.constant 0 : index
    %150 = vector.load %arg10[%c0_203, %c2_204, %c1_205, %c0_206] : memref<2x10x10x64xf32, #tpu.memory_space<vmem>>, vector<2x8x8x64xf32>
    %151 = vector.shape_cast %150 : vector<2x8x8x64xf32> to vector<128x64xf32>
    %c2_207 = arith.constant 2 : index
    %c1_208 = arith.constant 1 : index
    %c0_209 = arith.constant 0 : index
    %c0_210 = arith.constant 0 : index
    %152 = vector.load %arg2[%c2_207, %c1_208, %c0_209, %c0_210] : memref<3x3x64x64xf32, #tpu.memory_space<vmem>>, vector<1x1x64x64xf32>
    %153 = vector.shape_cast %152 : vector<1x1x64x64xf32> to vector<64x64xf32>
    %cst_211 = arith.constant dense<0.000000e+00> : vector<128x64xf32>
    %154 = tpu.matmul %151, %153, %cst_211 {dimension_numbers = #tpu.dot_dimension_numbers<[1], [0], [0], [1], [0, 0, 1, 1], [], []>} : vector<128x64xf32>, vector<64x64xf32>, vector<128x64xf32> -> vector<128x64xf32>
    %155 = arith.addf %149, %154 : vector<128x64xf32>
    %c0_212 = arith.constant 0 : index
    %c2_213 = arith.constant 2 : index
    %c2_214 = arith.constant 2 : index
    %c0_215 = arith.constant 0 : index
    %156 = vector.load %arg10[%c0_212, %c2_213, %c2_214, %c0_215] : memref<2x10x10x64xf32, #tpu.memory_space<vmem>>, vector<2x8x8x64xf32>
    %157 = vector.shape_cast %156 : vector<2x8x8x64xf32> to vector<128x64xf32>
    %c2_216 = arith.constant 2 : index
    %c2_217 = arith.constant 2 : index
    %c0_218 = arith.constant 0 : index
    %c0_219 = arith.constant 0 : index
    %158 = vector.load %arg2[%c2_216, %c2_217, %c0_218, %c0_219] : memref<3x3x64x64xf32, #tpu.memory_space<vmem>>, vector<1x1x64x64xf32>
    %159 = vector.shape_cast %158 : vector<1x1x64x64xf32> to vector<64x64xf32>
    %cst_220 = arith.constant dense<0.000000e+00> : vector<128x64xf32>
    %160 = tpu.matmul %157, %159, %cst_220 {dimension_numbers = #tpu.dot_dimension_numbers<[1], [0], [0], [1], [0, 0, 1, 1], [], []>} : vector<128x64xf32>, vector<64x64xf32>, vector<128x64xf32> -> vector<128x64xf32>
    %161 = arith.addf %155, %160 : vector<128x64xf32>
    %cst_221 = arith.constant dense<0.000000e+00> : vector<64xf32>
    %162 = vector.multi_reduction <add>, %161, %cst_221 [0] : vector<128x64xf32> to vector<64xf32>
    %163 = vector.shape_cast %162 : vector<64xf32> to vector<1x64xf32>
    %cst_222 = arith.constant dense<0.000000e+00> : vector<1x8xf32>
    %164 = tpu.matmul %163, %18, %cst_222 {dimension_numbers = #tpu.dot_dimension_numbers<[1], [0], [0], [1], [0, 0, 1, 1], [], []>} : vector<1x64xf32>, vector<64x8xf32>, vector<1x8xf32> -> vector<1x8xf32>
    %cst_223 = arith.constant 1.024000e+03 : f32
    %165 = vector.broadcast %cst_223 : f32 to vector<1x8xf32>
    %166 = arith.divf %164, %165 : vector<1x8xf32>
    %cst_224 = arith.constant dense<0.000000e+00> : vector<1x64xf32>
    %167 = tpu.matmul %166, %19, %cst_224 {dimension_numbers = #tpu.dot_dimension_numbers<[1], [0], [0], [1], [0, 0, 1, 1], [], []>} : vector<1x8xf32>, vector<8x64xf32>, vector<1x64xf32> -> vector<1x64xf32>
    %168 = vector.broadcast %167 : vector<1x64xf32> to vector<128x64xf32>
    %169 = arith.subf %161, %168 : vector<128x64xf32>
    %170 = arith.mulf %169, %169 : vector<128x64xf32>
    %cst_225 = arith.constant dense<0.000000e+00> : vector<64xf32>
    %171 = vector.multi_reduction <add>, %170, %cst_225 [0] : vector<128x64xf32> to vector<64xf32>
    %172 = vector.shape_cast %171 : vector<64xf32> to vector<1x64xf32>
    %cst_226 = arith.constant dense<0.000000e+00> : vector<1x8xf32>
    %173 = tpu.matmul %172, %18, %cst_226 {dimension_numbers = #tpu.dot_dimension_numbers<[1], [0], [0], [1], [0, 0, 1, 1], [], []>} : vector<1x64xf32>, vector<64x8xf32>, vector<1x8xf32> -> vector<1x8xf32>
    %cst_227 = arith.constant 1.024000e+03 : f32
    %174 = vector.broadcast %cst_227 : f32 to vector<1x8xf32>
    %175 = arith.divf %173, %174 : vector<1x8xf32>
    %cst_228 = arith.constant 9.99999974E-6 : f32
    %176 = vector.broadcast %cst_228 : f32 to vector<1x8xf32>
    %177 = arith.addf %175, %176 : vector<1x8xf32>
    %178 = math.rsqrt %177 : vector<1x8xf32>
    %179 = arith.mulf %105, %178 : vector<1x8xf32>
    %cst_229 = arith.constant dense<0.000000e+00> : vector<1x64xf32>
    %180 = tpu.matmul %179, %19, %cst_229 {dimension_numbers = #tpu.dot_dimension_numbers<[1], [0], [0], [1], [0, 0, 1, 1], [], []>} : vector<1x8xf32>, vector<8x64xf32>, vector<1x64xf32> -> vector<1x64xf32>
    %cst_230 = arith.constant dense<0.000000e+00> : vector<1x64xf32>
    %181 = tpu.matmul %106, %19, %cst_230 {dimension_numbers = #tpu.dot_dimension_numbers<[1], [0], [0], [1], [0, 0, 1, 1], [], []>} : vector<1x8xf32>, vector<8x64xf32>, vector<1x64xf32> -> vector<1x64xf32>
    %182 = vector.broadcast %180 : vector<1x64xf32> to vector<128x64xf32>
    %183 = arith.mulf %169, %182 : vector<128x64xf32>
    %184 = vector.broadcast %181 : vector<1x64xf32> to vector<128x64xf32>
    %185 = arith.addf %183, %184 : vector<128x64xf32>
    %cst_231 = arith.constant 0.000000e+00 : f32
    %186 = vector.broadcast %cst_231 : f32 to vector<128x64xf32>
    %187 = arith.maximumf %185, %186 : vector<128x64xf32>
    %c0_232 = arith.constant 0 : index
    %c0_233 = arith.constant 0 : index
    %188 = vector.load %arg9[%c0_232, %c0_233] : memref<128x64xf32, #tpu.memory_space<vmem>>, vector<128x64xf32>
    tpu.vector_store %arg9[%c0_232, %c0_233], %187 {strides = array<i32>} : memref<128x64xf32, #tpu.memory_space<vmem>>, vector<128x64xf32>,
    return
  }
}

</mosaic_0001>

<llo_original>
// kernel: tpu_custom_call.1
$region0: #{tpu_custom_call.1}
  #allocation0 [shape = 'u32[]', space=smem, size = 0x4, offset = 0x4, fixed_abs, tag = 'smem constant byte address 0x4 - core index']
  #allocation1 [shape = 'u32[144,128]{1,0:T(1,128)}', space=vmem, size = 0x12000, scoped, tag = 'internal scratch']
  #allocation2 [shape = 'f32[2,10,10,64]{3,2,1,0:T(8,128)}', space=vmem, size = 0x28000, scoped, tag = 'scratch operand']
  %s0 = inlined_call_operand.hbm [shape: f32[2,8,8,256], index: 0, kind: input, shape index: {}]
  %s1 = inlined_call_operand.hbm [shape: f32[3,3,32,64], index: 1, kind: input, shape index: {}]
  %s2 = inlined_call_operand.hbm [shape: f32[3,3,64,64], index: 2, kind: input, shape index: {}]
  %s3 = inlined_call_operand.vmem [shape: f32[1,8], index: 3, kind: input, shape index: {}]
  %s4 = inlined_call_operand.vmem [shape: f32[1,8], index: 4, kind: input, shape index: {}]
  %s5 = inlined_call_operand.vmem [shape: f32[1,8], index: 5, kind: input, shape index: {}]
  %s6 = inlined_call_operand.vmem [shape: f32[1,8], index: 6, kind: input, shape index: {}]
  %s7 = inlined_call_operand.vmem [shape: f32[64,8], index: 7, kind: input, shape index: {}]
  %s8 = inlined_call_operand.vmem [shape: f32[8,64], index: 8, kind: input, shape index: {}]
  %s9 = inlined_call_operand.vmem [shape: f32[128,64], index: 9, kind: output, shape index: {}]
  %s10 = sld [smem:[#allocation0]]
  $region58: #{tpu_custom_call.1} parent=0
    _
  %s12 = ssub.s32 1, %s10
  %s13 = scalar_select 0, %s12, %s10
  $region1: #{tpu_custom_call.1} parent=0
    #allocation3 [shape = 'u8[131072]{0}', space=vmem, size = 0x20000, scoped, tag = 'input window, operand 0, single buffered']
    #allocation4 [shape = 's32[1]{0}', space=sflag, size = 0x4, scoped, tag = 'scoped memory for tpu_custom_call.1']
    #allocation5 [shape = 'u8[147456]{0}', space=vmem, size = 0x24000, scoped, tag = 'input window, operand 1, single buffered']
    #allocation6 [shape = 's32[1]{0}', space=sflag, size = 0x4, scoped, tag = 'scoped memory for tpu_custom_call.1']
    #allocation7 [shape = 'u8[294912]{0}', space=vmem, size = 0x48000, scoped, tag = 'input window, operand 2, single buffered']
    %14 = vsyncpa [#allocation4], 0
    %15 = vsyncpa [#allocation6], 0
    // Predicated region
    $region2: #{tpu_custom_call.1} parent=1 // pred_check
      _
    $region3: #{tpu_custom_call.1} parent=1 // pred_check_branch
      %17 = sbr.rel (0) target = $region5
    $region4: #{tpu_custom_call.1} parent=1 // pred_region
      %s19 = ssub.s32 4096, 4096
      %20 = vsyncadd [#allocation4], %s19
      %s21 = sshll.u32 [#allocation3], 4
      %s22 = int_to_ptr.vmem [resolvable:$true] %s21
      %27 = dma.hbm_to_vmem [thread:$0]  %s0, 4096, %s22, [#allocation4], 256, 256, 16
    $region5: #{tpu_custom_call.1} parent=1 // pred_fallthru
      _
    // Predicated region
    $region6: #{tpu_custom_call.1} parent=1 // pred_check
      _
    $region7: #{tpu_custom_call.1} parent=1 // pred_check_branch
      %29 = sbr.rel (0) target = $region9
    $region8: #{tpu_custom_call.1} parent=1 // pred_region
      %s31 = ssub.s32 4608, 4608
      %32 = vsyncadd [#allocation6], %s31
      %s33 = sshll.u32 [#allocation5], 4
      %s34 = int_to_ptr.vmem [resolvable:$true] %s33
      %39 = dma.hbm_to_vmem [thread:$0]  %s1, 4608, %s34, [#allocation6], 128, 128, 8
    $region9: #{tpu_custom_call.1} parent=1 // pred_fallthru
      _
    // Predicated region
    $region10: #{tpu_custom_call.1} parent=1 // pred_check
      _
    $region11: #{tpu_custom_call.1} parent=1 // pred_check_branch
      %41 = sbr.rel (0) target = $region13
    $region12: #{tpu_custom_call.1} parent=1 // pred_region
      %s43 = ssub.s32 9216, 9216
      %44 = vsyncadd [#allocation6], %s43
      %s45 = sshll.u32 [#allocation7], 4
      %s46 = int_to_ptr.vmem [resolvable:$true] %s45
      %51 = dma.hbm_to_vmem [thread:$0]  %s2, 9216, %s46, [#allocation6], 128, 128, 8
    $region13: #{tpu_custom_call.1} parent=1 // pred_fallthru
      _
    // Predicated region
    $region14: #{tpu_custom_call.1} parent=1 // pred_check
      _
    $region15: #{tpu_custom_call.1} parent=1 // pred_check_branch
      %53 = sbr.rel (0) target = $region17
    $region16: #{tpu_custom_call.1} parent=1 // pred_region
      _
    $region17: #{tpu_custom_call.1} parent=1 // pred_fallthru
      _
    // Predicated region
    $region18: #{tpu_custom_call.1} parent=1 // pred_check
      _
    $region19: #{tpu_custom_call.1} parent=1 // pred_check_branch
      %55 = sbr.rel (0) target = $region21
    $region20: #{tpu_custom_call.1} parent=1 // pred_region
      _
    $region21: #{tpu_custom_call.1} parent=1 // pred_fallthru
      _
    // Predicated region
    $region22: #{tpu_custom_call.1} parent=1 // pred_check
      _
    $region23: #{tpu_custom_call.1} parent=1 // pred_check_branch
      %57 = sbr.rel (0) target = $region25
    $region24: #{tpu_custom_call.1} parent=1 // pred_region
      _
    $region25: #{tpu_custom_call.1} parent=1 // pred_fallthru
      _
    // Predicated region
    $region26: #{tpu_custom_call.1} parent=1 // pred_check
      _
    $region27: #{tpu_custom_call.1} parent=1 // pred_check_branch
      %59 = sbr.rel (0) target = $region29
    $region28: #{tpu_custom_call.1} parent=1 // pred_region
      _
    $region29: #{tpu_custom_call.1} parent=1 // pred_fallthru
      _
    // Predicated region
    $region30: #{tpu_custom_call.1} parent=1 // pred_check
      _
    $region31: #{tpu_custom_call.1} parent=1 // pred_check_branch
      %61 = sbr.rel (0) target = $region33
    $region32: #{tpu_custom_call.1} parent=1 // pred_region
      _
    $region33: #{tpu_custom_call.1} parent=1 // pred_fallthru
      _
    // Predicated region
    $region34: #{tpu_custom_call.1} parent=1 // pred_check
      _
    $region35: #{tpu_custom_call.1} parent=1 // pred_check_branch
      %63 = sbr.rel (0) target = $region37
    $region36: #{tpu_custom_call.1} parent=1 // pred_region
      _
    $region37: #{tpu_custom_call.1} parent=1 // pred_fallthru
      _
    // Predicated region
    $region38: #{tpu_custom_call.1} parent=1 // pred_check
      _
    $region39: #{tpu_custom_call.1} parent=1 // pred_check_branch
      %65 = sbr.rel (0) target = $region41
    $region40: #{tpu_custom_call.1} parent=1 // pred_region
      %66 = dma.done [#allocation4], 4096
    $region41: #{tpu_custom_call.1} parent=1 // pred_fallthru
      _
    // Predicated region
    $region42: #{tpu_custom_call.1} parent=1 // pred_check
      _
    $region43: #{tpu_custom_call.1} parent=1 // pred_check_branch
      %68 = sbr.rel (0) target = $region45
    $region44: #{tpu_custom_call.1} parent=1 // pred_region
      %69 = dma.done [#allocation6], 4608
    $region45: #{tpu_custom_call.1} parent=1 // pred_fallthru
      _
    // Predicated region
    $region46: #{tpu_custom_call.1} parent=1 // pred_check
      _
    $region47: #{tpu_custom_call.1} parent=1 // pred_check_branch
      %71 = sbr.rel (0) target = $region49
    $region48: #{tpu_custom_call.1} parent=1 // pred_region
      %72 = dma.done [#allocation6], 9216
    $region49: #{tpu_custom_call.1} parent=1 // pred_fallthru
      _
    %v73 = vld [vmem:[#allocation3] sm:$0xff]
    %v74 = vld [vmem:[#allocation3 + $0x10] sm:$0xff]
    %v75 = vld [vmem:[#allocation3 + $0x20] sm:$0xff]
    %v76 = vld [vmem:[#allocation3 + $0x30] sm:$0xff]
    %v77 = vld [vmem:[#allocation3 + $0x40] sm:$0xff]
    %v78 = vld [vmem:[#allocation3 + $0x50] sm:$0xff]
    %v79 = vld [vmem:[#allocation3 + $0x60] sm:$0xff]
    %v80 = vld [vmem:[#allocation3 + $0x70] sm:$0xff]
    %v81 = vld [vmem:[#allocation3 + $0x80] sm:$0xff]
    %v82 = vld [vmem:[#allocation3 + $0x90] sm:$0xff]
    %v83 = vld [vmem:[#allocation3 + $0xa0] sm:$0xff]
    %v84 = vld [vmem:[#allocation3 + $0xb0] sm:$0xff]
    %v85 = vld [vmem:[#allocation3 + $0xc0] sm:$0xff]
    %v86 = vld [vmem:[#allocation3 + $0xd0] sm:$0xff]
    %v87 = vld [vmem:[#allocation3 + $0xe0] sm:$0xff]
    %v88 = vld [vmem:[#allocation3 + $0xf0] sm:$0xff]
    %105 = vrot.lane.b32.xlu0 %v73, 96
    %v106 = vpop.permute.xlu0 %105
    %107 = vrot.lane.b32.xlu0 %v74, 96
    %v108 = vpop.permute.xlu0 %107
    %109 = vrot.lane.b32.xlu0 %v75, 96
    %v110 = vpop.permute.xlu0 %109
    %111 = vrot.lane.b32.xlu0 %v76, 96
    %v112 = vpop.permute.xlu0 %111
    %113 = vrot.lane.b32.xlu0 %v77, 96
    %v114 = vpop.permute.xlu0 %113
    %115 = vrot.lane.b32.xlu0 %v78, 96
    %v116 = vpop.permute.xlu0 %115
    %117 = vrot.lane.b32.xlu0 %v79, 96
    %v118 = vpop.permute.xlu0 %117
    %119 = vrot.lane.b32.xlu0 %v80, 96
    %v120 = vpop.permute.xlu0 %119
    %121 = vrot.lane.b32.xlu0 %v81, 96
    %v122 = vpop.permute.xlu0 %121
    %123 = vrot.lane.b32.xlu0 %v82, 96
    %v124 = vpop.permute.xlu0 %123
    %125 = vrot.lane.b32.xlu0 %v83, 96
    %v126 = vpop.permute.xlu0 %125
    %127 = vrot.lane.b32.xlu0 %v84, 96
    %v128 = vpop.permute.xlu0 %127
    %129 = vrot.lane.b32.xlu0 %v85, 96
    %v130 = vpop.permute.xlu0 %129
    %131 = vrot.lane.b32.xlu0 %v86, 96
    %v132 = vpop.permute.xlu0 %131
    %133 = vrot.lane.b32.xlu0 %v87, 96
    %v134 = vpop.permute.xlu0 %133
    %135 = vrot.lane.b32.xlu0 %v88, 96
    %v136 = vpop.permute.xlu0 %135
    %v153 = vmax.f32 %v73, %v106
    %v154 = vmax.f32 %v74, %v108
    %v155 = vmax.f32 %v75, %v110
    %v156 = vmax.f32 %v76, %v112
    %v157 = vmax.f32 %v77, %v114
    %v158 = vmax.f32 %v78, %v116
    %v159 = vmax.f32 %v79, %v118
    %v160 = vmax.f32 %v80, %v120
    %v161 = vmax.f32 %v81, %v122
    %v162 = vmax.f32 %v82, %v124
    %v163 = vmax.f32 %v83, %v126
    %v164 = vmax.f32 %v84, %v128
    %v165 = vmax.f32 %v85, %v130
    %v166 = vmax.f32 %v86, %v132
    %v167 = vmax.f32 %v87, %v134
    %v168 = vmax.f32 %v88, %v136
    %169 = vrot.lane.b32.xlu0 %v73, 64
    %v170 = vpop.permute.xlu0 %169
    %171 = vrot.lane.b32.xlu0 %v74, 64
    %v172 = vpop.permute.xlu0 %171
    %173 = vrot.lane.b32.xlu0 %v75, 64
    %v174 = vpop.permute.xlu0 %173
    %175 = vrot.lane.b32.xlu0 %v76, 64
    %v176 = vpop.permute.xlu0 %175
    %177 = vrot.lane.b32.xlu0 %v77, 64
    %v178 = vpop.permute.xlu0 %177
    %179 = vrot.lane.b32.xlu0 %v78, 64
    %v180 = vpop.permute.xlu0 %179
    %181 = vrot.lane.b32.xlu0 %v79, 64
    %v182 = vpop.permute.xlu0 %181
    %183 = vrot.lane.b32.xlu0 %v80, 64
    %v184 = vpop.permute.xlu0 %183
    %185 = vrot.lane.b32.xlu0 %v81, 64
    %v186 = vpop.permute.xlu0 %185
    %187 = vrot.lane.b32.xlu0 %v82, 64
    %v188 = vpop.permute.xlu0 %187
    %189 = vrot.lane.b32.xlu0 %v83, 64
    %v190 = vpop.permute.xlu0 %189
    %191 = vrot.lane.b32.xlu0 %v84, 64
    %v192 = vpop.permute.xlu0 %191
    %193 = vrot.lane.b32.xlu0 %v85, 64
    %v194 = vpop.permute.xlu0 %193
    %195 = vrot.lane.b32.xlu0 %v86, 64
    %v196 = vpop.permute.xlu0 %195
    %197 = vrot.lane.b32.xlu0 %v87, 64
    %v198 = vpop.permute.xlu0 %197
    %199 = vrot.lane.b32.xlu0 %v88, 64
    %v200 = vpop.permute.xlu0 %199
    %v217 = vmax.f32 %v153, %v170
    %v218 = vmax.f32 %v154, %v172
    %v219 = vmax.f32 %v155, %v174
    %v220 = vmax.f32 %v156, %v176
    %v221 = vmax.f32 %v157, %v178
    %v222 = vmax.f32 %v158, %v180
    %v223 = vmax.f32 %v159, %v182
    %v224 = vmax.f32 %v160, %v184
    %v225 = vmax.f32 %v161, %v186
    %v226 = vmax.f32 %v162, %v188
    %v227 = vmax.f32 %v163, %v190
    %v228 = vmax.f32 %v164, %v192
    %v229 = vmax.f32 %v165, %v194
    %v230 = vmax.f32 %v166, %v196
    %v231 = vmax.f32 %v167, %v198
    %v232 = vmax.f32 %v168, %v200
    %233 = vrot.lane.b32.xlu0 %v73, 32
    %v234 = vpop.permute.xlu0 %233
    %235 = vrot.lane.b32.xlu0 %v74, 32
    %v236 = vpop.permute.xlu0 %235
    %237 = vrot.lane.b32.xlu0 %v75, 32
    %v238 = vpop.permute.xlu0 %237
    %239 = vrot.lane.b32.xlu0 %v76, 32
    %v240 = vpop.permute.xlu0 %239
    %241 = vrot.lane.b32.xlu0 %v77, 32
    %v242 = vpop.permute.xlu0 %241
    %243 = vrot.lane.b32.xlu0 %v78, 32
    %v244 = vpop.permute.xlu0 %243
    %245 = vrot.lane.b32.xlu0 %v79, 32
    %v246 = vpop.permute.xlu0 %245
    %247 = vrot.lane.b32.xlu0 %v80, 32
    %v248 = vpop.permute.xlu0 %247
    %249 = vrot.lane.b32.xlu0 %v81, 32
    %v250 = vpop.permute.xlu0 %249
    %251 = vrot.lane.b32.xlu0 %v82, 32
    %v252 = vpop.permute.xlu0 %251
    %253 = vrot.lane.b32.xlu0 %v83, 32
    %v254 = vpop.permute.xlu0 %253
    %255 = vrot.lane.b32.xlu0 %v84, 32
    %v256 = vpop.permute.xlu0 %255
    %257 = vrot.lane.b32.xlu0 %v85, 32
    %v258 = vpop.permute.xlu0 %257
    %259 = vrot.lane.b32.xlu0 %v86, 32
    %v260 = vpop.permute.xlu0 %259
    %261 = vrot.lane.b32.xlu0 %v87, 32
    %v262 = vpop.permute.xlu0 %261
    %263 = vrot.lane.b32.xlu0 %v88, 32
    %v264 = vpop.permute.xlu0 %263
    %v281 = vmax.f32 %v217, %v234
    %v282 = vmax.f32 %v218, %v236
    %v283 = vmax.f32 %v219, %v238
    %v284 = vmax.f32 %v220, %v240
    %v285 = vmax.f32 %v221, %v242
    %v286 = vmax.f32 %v222, %v244
    %v287 = vmax.f32 %v223, %v246
    %v288 = vmax.f32 %v224, %v248
    %v289 = vmax.f32 %v225, %v250
    %v290 = vmax.f32 %v226, %v252
    %v291 = vmax.f32 %v227, %v254
    %v292 = vmax.f32 %v228, %v256
    %v293 = vmax.f32 %v229, %v258
    %v294 = vmax.f32 %v230, %v260
    %v295 = vmax.f32 %v231, %v262
    %v296 = vmax.f32 %v232, %v264
    %v297 = vld [vmem:[#allocation3 + $0x8] sm:$0xff]
    %v298 = vld [vmem:[#allocation3 + $0x18] sm:$0xff]
    %v299 = vld [vmem:[#allocation3 + $0x28] sm:$0xff]
    %v300 = vld [vmem:[#allocation3 + $0x38] sm:$0xff]
    %v301 = vld [vmem:[#allocation3 + $0x48] sm:$0xff]
    %v302 = vld [vmem:[#allocation3 + $0x58] sm:$0xff]
    %v303 = vld [vmem:[#allocation3 + $0x68] sm:$0xff]
    %v304 = vld [vmem:[#allocation3 + $0x78] sm:$0xff]
    %v305 = vld [vmem:[#allocation3 + $0x88] sm:$0xff]
    %v306 = vld [vmem:[#allocation3 + $0x98] sm:$0xff]
    %v307 = vld [vmem:[#allocation3 + $0xa8] sm:$0xff]
    %v308 = vld [vmem:[#allocation3 + $0xb8] sm:$0xff]
    %v309 = vld [vmem:[#allocation3 + $0xc8] sm:$0xff]
    %v310 = vld [vmem:[#allocation3 + $0xd8] sm:$0xff]
    %v311 = vld [vmem:[#allocation3 + $0xe8] sm:$0xff]
    %v312 = vld [vmem:[#allocation3 + $0xf8] sm:$0xff]
    %v313 = vmax.f32 %v281, %v297
    %v314 = vmax.f32 %v282, %v298
    %v315 = vmax.f32 %v283, %v299
    %v316 = vmax.f32 %v284, %v300
    %v317 = vmax.f32 %v285, %v301
    %v318 = vmax.f32 %v286, %v302
    %v319 = vmax.f32 %v287, %v303
    %v320 = vmax.f32 %v288, %v304
    %v321 = vmax.f32 %v289, %v305
    %v322 = vmax.f32 %v290, %v306
    %v323 = vmax.f32 %v291, %v307
    %v324 = vmax.f32 %v292, %v308
    %v325 = vmax.f32 %v293, %v309
    %v326 = vmax.f32 %v294, %v310
    %v327 = vmax.f32 %v295, %v311
    %v328 = vmax.f32 %v296, %v312
    %345 = vrot.lane.b32.xlu0 %v297, 96
    %v346 = vpop.permute.xlu0 %345
    %347 = vrot.lane.b32.xlu0 %v298, 96
    %v348 = vpop.permute.xlu0 %347
    %349 = vrot.lane.b32.xlu0 %v299, 96
    %v350 = vpop.permute.xlu0 %349
    %351 = vrot.lane.b32.xlu0 %v300, 96
    %v352 = vpop.permute.xlu0 %351
    %353 = vrot.lane.b32.xlu0 %v301, 96
    %v354 = vpop.permute.xlu0 %353
    %355 = vrot.lane.b32.xlu0 %v302, 96
    %v356 = vpop.permute.xlu0 %355
    %357 = vrot.lane.b32.xlu0 %v303, 96
    %v358 = vpop.permute.xlu0 %357
    %359 = vrot.lane.b32.xlu0 %v304, 96
    %v360 = vpop.permute.xlu0 %359
    %361 = vrot.lane.b32.xlu0 %v305, 96
    %v362 = vpop.permute.xlu0 %361
    %363 = vrot.lane.b32.xlu0 %v306, 96
    %v364 = vpop.permute.xlu0 %363
    %365 = vrot.lane.b32.xlu0 %v307, 96
    %v366 = vpop.permute.xlu0 %365
    %367 = vrot.lane.b32.xlu0 %v308, 96
    %v368 = vpop.permute.xlu0 %367
    %369 = vrot.lane.b32.xlu0 %v309, 96
    %v370 = vpop.permute.xlu0 %369
    %371 = vrot.lane.b32.xlu0 %v310, 96
    %v372 = vpop.permute.xlu0 %371
    %373 = vrot.lane.b32.xlu0 %v311, 96
    %v374 = vpop.permute.xlu0 %373
    %375 = vrot.lane.b32.xlu0 %v312, 96
    %v376 = vpop.permute.xlu0 %375
    %v393 = vmax.f32 %v313, %v346
    %v394 = vmax.f32 %v314, %v348
    %v395 = vmax.f32 %v315, %v350
    %v396 = vmax.f32 %v316, %v352
    %v397 = vmax.f32 %v317, %v354
    %v398 = vmax.f32 %v318, %v356
    %v399 = vmax.f32 %v319, %v358
    %v400 = vmax.f32 %v320, %v360
    %v401 = vmax.f32 %v321, %v362
    %v402 = vmax.f32 %v322, %v364
    %v403 = vmax.f32 %v323, %v366
    %v404 = vmax.f32 %v324, %v368
    %v405 = vmax.f32 %v325, %v370
    %v406 = vmax.f32 %v326, %v372
    %v407 = vmax.f32 %v327, %v374
    %v408 = vmax.f32 %v328, %v376
    %409 = vrot.lane.b32.xlu0 %v297, 64
    %v410 = vpop.permute.xlu0 %409
    %411 = vrot.lane.b32.xlu0 %v298, 64
    %v412 = vpop.permute.xlu0 %411
    %413 = vrot.lane.b32.xlu0 %v299, 64
    %v414 = vpop.permute.xlu0 %413
    %415 = vrot.lane.b32.xlu0 %v300, 64
    %v416 = vpop.permute.xlu0 %415
    %417 = vrot.lane.b32.xlu0 %v301, 64
    %v418 = vpop.permute.xlu0 %417
    %419 = vrot.lane.b32.xlu0 %v302, 64
    %v420 = vpop.permute.xlu0 %419
    %421 = vrot.lane.b32.xlu0 %v303, 64
    %v422 = vpop.permute.xlu0 %421
    %423 = vrot.lane.b32.xlu0 %v304, 64
    %v424 = vpop.permute.xlu0 %423
    %425 = vrot.lane.b32.xlu0 %v305, 64
    %v426 = vpop.permute.xlu0 %425
    %427 = vrot.lane.b32.xlu0 %v306, 64
    %v428 = vpop.permute.xlu0 %427
    %429 = vrot.lane.b32.xlu0 %v307, 64
    %v430 = vpop.permute.xlu0 %429
    %431 = vrot.lane.b32.xlu0 %v308, 64
    %v432 = vpop.permute.xlu0 %431
    %433 = vrot.lane.b32.xlu0 %v309, 64
    %v434 = vpop.permute.xlu0 %433
    %435 = vrot.lane.b32.xlu0 %v310, 64
    %v436 = vpop.permute.xlu0 %435
    %437 = vrot.lane.b32.xlu0 %v311, 64
    %v438 = vpop.permute.xlu0 %437
    %439 = vrot.lane.b32.xlu0 %v312, 64
    %v440 = vpop.permute.xlu0 %439
    %v457 = vmax.f32 %v393, %v410
    %v458 = vmax.f32 %v394, %v412
    %v459 = vmax.f32 %v395, %v414
    %v460 = vmax.f32 %v396, %v416
    %v461 = vmax.f32 %v397, %v418
    %v462 = vmax.f32 %v398, %v420
    %v463 = vmax.f32 %v399, %v422
    %v464 = vmax.f32 %v400, %v424
    %v465 = vmax.f32 %v401, %v426
    %v466 = vmax.f32 %v402, %v428
    %v467 = vmax.f32 %v403, %v430
    %v468 = vmax.f32 %v404, %v432
    %v469 = vmax.f32 %v405, %v434
    %v470 = vmax.f32 %v406, %v436
    %v471 = vmax.f32 %v407, %v438
    %v472 = vmax.f32 %v408, %v440
    %473 = vrot.lane.b32.xlu0 %v297, 32
    %v474 = vpop.permute.xlu0 %473
    %475 = vrot.lane.b32.xlu0 %v298, 32
    %v476 = vpop.permute.xlu0 %475
    %477 = vrot.lane.b32.xlu0 %v299, 32
    %v478 = vpop.permute.xlu0 %477
    %479 = vrot.lane.b32.xlu0 %v300, 32
    %v480 = vpop.permute.xlu0 %479
    %481 = vrot.lane.b32.xlu0 %v301, 32
    %v482 = vpop.permute.xlu0 %481
    %483 = vrot.lane.b32.xlu0 %v302, 32
    %v484 = vpop.permute.xlu0 %483
    %485 = vrot.lane.b32.xlu0 %v303, 32
    %v486 = vpop.permute.xlu0 %485
    %487 = vrot.lane.b32.xlu0 %v304, 32
    %v488 = vpop.permute.xlu0 %487
    %489 = vrot.lane.b32.xlu0 %v305, 32
    %v490 = vpop.permute.xlu0 %489
    %491 = vrot.lane.b32.xlu0 %v306, 32
    %v492 = vpop.permute.xlu0 %491
    %493 = vrot.lane.b32.xlu0 %v307, 32
    %v494 = vpop.permute.xlu0 %493
    %495 = vrot.lane.b32.xlu0 %v308, 32
    %v496 = vpop.permute.xlu0 %495
    %497 = vrot.lane.b32.xlu0 %v309, 32
    %v498 = vpop.permute.xlu0 %497
    %499 = vrot.lane.b32.xlu0 %v310, 32
    %v500 = vpop.permute.xlu0 %499
    %501 = vrot.lane.b32.xlu0 %v311, 32
    %v502 = vpop.permute.xlu0 %501
    %503 = vrot.lane.b32.xlu0 %v312, 32
    %v504 = vpop.permute.xlu0 %503
    %v521 = vmax.f32 %v457, %v474
    %v522 = vmax.f32 %v458, %v476
    %v523 = vmax.f32 %v459, %v478
    %v524 = vmax.f32 %v460, %v480
    %v525 = vmax.f32 %v461, %v482
    %v526 = vmax.f32 %v462, %v484
    %v527 = vmax.f32 %v463, %v486
    %v528 = vmax.f32 %v464, %v488
    %v529 = vmax.f32 %v465, %v490
    %v530 = vmax.f32 %v466, %v492
    %v531 = vmax.f32 %v467, %v494
    %v532 = vmax.f32 %v468, %v496
    %v533 = vmax.f32 %v469, %v498
    %v534 = vmax.f32 %v470, %v500
    %v535 = vmax.f32 %v471, %v502
    %v536 = vmax.f32 %v472, %v504
    %vm537 = vcmask 523264
    %538 = vst.msk [vmem:[#allocation2] sm:$0xff] %vm537, 0.0
    %vm539 = vcmask 517120
    %540 = vst.msk [vmem:[#allocation2 + $0x8] sm:$0x3] %vm539, 0.0
    %541 = vst.msk [vmem:[#allocation2 + $0x10] sm:$0xff] %vm537, 0.0
    %542 = vst.msk [vmem:[#allocation2 + $0x18] sm:$0x3] %vm539, 0.0
    %543 = vst.msk [vmem:[#allocation2 + $0x20] sm:$0xff] %vm537, 0.0
    %544 = vst.msk [vmem:[#allocation2 + $0x28] sm:$0x3] %vm539, 0.0
    %545 = vst.msk [vmem:[#allocation2 + $0x30] sm:$0xff] %vm537, 0.0
    %546 = vst.msk [vmem:[#allocation2 + $0x38] sm:$0x3] %vm539, 0.0
    %547 = vst.msk [vmem:[#allocation2 + $0x40] sm:$0xff] %vm537, 0.0
    %548 = vst.msk [vmem:[#allocation2 + $0x48] sm:$0x3] %vm539, 0.0
    %549 = vst.msk [vmem:[#allocation2 + $0x50] sm:$0xff] %vm537, 0.0
    %550 = vst.msk [vmem:[#allocation2 + $0x58] sm:$0x3] %vm539, 0.0
    %551 = vst.msk [vmem:[#allocation2 + $0x60] sm:$0xff] %vm537, 0.0
    %552 = vst.msk [vmem:[#allocation2 + $0x68] sm:$0x3] %vm539, 0.0
    %553 = vst.msk [vmem:[#allocation2 + $0x70] sm:$0xff] %vm537, 0.0
    %554 = vst.msk [vmem:[#allocation2 + $0x78] sm:$0x3] %vm539, 0.0
    %555 = vst.msk [vmem:[#allocation2 + $0x80] sm:$0xff] %vm537, 0.0
    %556 = vst.msk [vmem:[#allocation2 + $0x88] sm:$0x3] %vm539, 0.0
    %557 = vst.msk [vmem:[#allocation2 + $0x90] sm:$0xff] %vm537, 0.0
    %558 = vst.msk [vmem:[#allocation2 + $0x98] sm:$0x3] %vm539, 0.0
    %559 = vst.msk [vmem:[#allocation2 + $0xa0] sm:$0xff] %vm537, 0.0
    %560 = vst.msk [vmem:[#allocation2 + $0xa8] sm:$0x3] %vm539, 0.0
    %561 = vst.msk [vmem:[#allocation2 + $0xb0] sm:$0xff] %vm537, 0.0
    %562 = vst.msk [vmem:[#allocation2 + $0xb8] sm:$0x3] %vm539, 0.0
    %563 = vst.msk [vmem:[#allocation2 + $0xc0] sm:$0xff] %vm537, 0.0
    %564 = vst.msk [vmem:[#allocation2 + $0xc8] sm:$0x3] %vm539, 0.0
    %565 = vst.msk [vmem:[#allocation2 + $0xd0] sm:$0xff] %vm537, 0.0
    %566 = vst.msk [vmem:[#allocation2 + $0xd8] sm:$0x3] %vm539, 0.0
    %567 = vst.msk [vmem:[#allocation2 + $0xe0] sm:$0xff] %vm537, 0.0
    %568 = vst.msk [vmem:[#allocation2 + $0xe8] sm:$0x3] %vm539, 0.0
    %569 = vst.msk [vmem:[#allocation2 + $0xf0] sm:$0xff] %vm537, 0.0
    %570 = vst.msk [vmem:[#allocation2 + $0xf8] sm:$0x3] %vm539, 0.0
    %571 = vst.msk [vmem:[#allocation2 + $0x100] sm:$0xff] %vm537, 0.0
    %572 = vst.msk [vmem:[#allocation2 + $0x108] sm:$0x3] %vm539, 0.0
    %573 = vst.msk [vmem:[#allocation2 + $0x110] sm:$0xff] %vm537, 0.0
    %574 = vst.msk [vmem:[#allocation2 + $0x118] sm:$0x3] %vm539, 0.0
    %575 = vst.msk [vmem:[#allocation2 + $0x120] sm:$0xff] %vm537, 0.0
    %576 = vst.msk [vmem:[#allocation2 + $0x128] sm:$0x3] %vm539, 0.0
    %577 = vst.msk [vmem:[#allocation2 + $0x130] sm:$0xff] %vm537, 0.0
    %578 = vst.msk [vmem:[#allocation2 + $0x138] sm:$0x3] %vm539, 0.0
    %s579 = scalar_lea.vmem [#allocation2], 16
    %vm580 = vcmask 261120
    %581 = vst.msk [vmem:[%s579 + $0x1] sm:$0xff] %vm580, %v521
    %582 = vst.msk [vmem:[%s579 + $0x11] sm:$0xff] %vm580, %v522
    %583 = vst.msk [vmem:[%s579 + $0x21] sm:$0xff] %vm580, %v523
    %584 = vst.msk [vmem:[%s579 + $0x31] sm:$0xff] %vm580, %v524
    %585 = vst.msk [vmem:[%s579 + $0x41] sm:$0xff] %vm580, %v525
    %586 = vst.msk [vmem:[%s579 + $0x51] sm:$0xff] %vm580, %v526
    %587 = vst.msk [vmem:[%s579 + $0x61] sm:$0xff] %vm580, %v527
    %588 = vst.msk [vmem:[%s579 + $0x71] sm:$0xff] %vm580, %v528
    %589 = vst.msk [vmem:[%s579 + $0xa1] sm:$0xff] %vm580, %v529
    %590 = vst.msk [vmem:[%s579 + $0xb1] sm:$0xff] %vm580, %v530
    %591 = vst.msk [vmem:[%s579 + $0xc1] sm:$0xff] %vm580, %v531
    %592 = vst.msk [vmem:[%s579 + $0xd1] sm:$0xff] %vm580, %v532
    %593 = vst.msk [vmem:[%s579 + $0xe1] sm:$0xff] %vm580, %v533
    %594 = vst.msk [vmem:[%s579 + $0xf1] sm:$0xff] %vm580, %v534
    %595 = vst.msk [vmem:[%s579 + $0x101] sm:$0xff] %vm580, %v535
    %596 = vst.msk [vmem:[%s579 + $0x111] sm:$0xff] %vm580, %v536
    %v597 = vld [vmem:[%s7] sm:$0xff]
    %v598 = vld [vmem:[%s7 + $0x8] sm:$0xff]
    %v599 = vld [vmem:[%s7 + $0x10] sm:$0xff]
    %v600 = vld [vmem:[%s7 + $0x18] sm:$0xff]
    %v601 = vld [vmem:[%s7 + $0x20] sm:$0xff]
    %v602 = vld [vmem:[%s7 + $0x28] sm:$0xff]
    %v603 = vld [vmem:[%s7 + $0x30] sm:$0xff]
    %v604 = vld [vmem:[%s7 + $0x38] sm:$0xff]
    %v605 = vld [vmem:[%s8] sm:$0xff]
    %v606 = vld [vmem:[%s3] sm:$0x1]
    %v607 = vld [vmem:[%s4] sm:$0x1]
    %v608 = vld [vmem:[#allocation2] sm:$0xff]
    %v609 = vld [vmem:[#allocation2 + $0x10] sm:$0xff]
    %v610 = vld [vmem:[#allocation2 + $0x20] sm:$0xff]
    %v611 = vld [vmem:[#allocation2 + $0x30] sm:$0xff]
    %v612 = vld [vmem:[#allocation2 + $0x40] sm:$0xff]
    %v613 = vld [vmem:[#allocation2 + $0x50] sm:$0xff]
    %v614 = vld [vmem:[#allocation2 + $0x60] sm:$0xff]
    %v615 = vld [vmem:[#allocation2 + $0x70] sm:$0xff]
    %v616 = vld [vmem:[#allocation2 + $0xa0] sm:$0xff]
    %v617 = vld [vmem:[#allocation2 + $0xb0] sm:$0xff]
    %v618 = vld [vmem:[#allocation2 + $0xc0] sm:$0xff]
    %v619 = vld [vmem:[#allocation2 + $0xd0] sm:$0xff]
    %v620 = vld [vmem:[#allocation2 + $0xe0] sm:$0xff]
    %v621 = vld [vmem:[#allocation2 + $0xf0] sm:$0xff]
    %v622 = vld [vmem:[#allocation2 + $0x100] sm:$0xff]
    %v623 = vld [vmem:[#allocation2 + $0x110] sm:$0xff]
    %v624 = vld [vmem:[#allocation5] sm:$0xff]
    %v625 = vld [vmem:[#allocation5 + $0x8] sm:$0xff]
    %v626 = vld [vmem:[#allocation5 + $0x10] sm:$0xff]
    %v627 = vld [vmem:[#allocation5 + $0x18] sm:$0xff]
    %v628 = vld [vmem:[#allocation2 + $0x1] sm:$0xff]
    %v629 = vld [vmem:[#allocation2 + $0x11] sm:$0xff]
    %v630 = vld [vmem:[#allocation2 + $0x21] sm:$0xff]
    %v631 = vld [vmem:[#allocation2 + $0x31] sm:$0xff]
    %v632 = vld [vmem:[#allocation2 + $0x41] sm:$0xff]
    %v633 = vld [vmem:[#allocation2 + $0x51] sm:$0xff]
    %v634 = vld [vmem:[#allocation2 + $0x61] sm:$0xff]
    %v635 = vld [vmem:[#allocation2 + $0x71] sm:$0xff]
    %v636 = vld [vmem:[#allocation2 + $0xa1] sm:$0xff]
    %v637 = vld [vmem:[#allocation2 + $0xb1] sm:$0xff]
    %v638 = vld [vmem:[#allocation2 + $0xc1] sm:$0xff]
    %v639 = vld [vmem:[#allocation2 + $0xd1] sm:$0xff]
    %v640 = vld [vmem:[#allocation2 + $0xe1] sm:$0xff]
    %v641 = vld [vmem:[#allocation2 + $0xf1] sm:$0xff]
    %v642 = vld [vmem:[#allocation2 + $0x101] sm:$0xff]
    %v643 = vld [vmem:[#allocation2 + $0x111] sm:$0xff]
    %s644 = scalar_lea.vmem [#allocation5], 32
    %v645 = vld [vmem:[%s644] sm:$0xff]
    %v646 = vld [vmem:[%s644 + $0x8] sm:$0xff]
    %v647 = vld [vmem:[%s644 + $0x10] sm:$0xff]
    %v648 = vld [vmem:[%s644 + $0x18] sm:$0xff]
    %v650 = vsel %vm580, %v628, 0
    %v653 = vsel %vm580, %v629, 0
    %v656 = vsel %vm580, %v630, 0
    %v659 = vsel %vm580, %v631, 0
    %v662 = vsel %vm580, %v632, 0
    %v665 = vsel %vm580, %v633, 0
    %v668 = vsel %vm580, %v634, 0
    %v671 = vsel %vm580, %v635, 0
    %v674 = vsel %vm580, %v636, 0
    %v677 = vsel %vm580, %v637, 0
    %v680 = vsel %vm580, %v638, 0
    %v683 = vsel %vm580, %v639, 0
    %v686 = vsel %vm580, %v640, 0
    %v689 = vsel %vm580, %v641, 0
    %v692 = vsel %vm580, %v642, 0
    %v695 = vsel %vm580, %v643, 0
    %697 = vmatprep.subr.mxu0 0.0
    %698 = vmatpush1.msra.mxu0 %v645
    %699 = vmatprep.subr.mxu0 0.0
    %700 = vmatpush1.msra.mxu0 %v646
    %701 = vmatprep.subr.mxu0 0.0
    %702 = vmatpush1.msra.mxu0 %v647
    %703 = vmatprep.subr.mxu0 0.0
    %704 = vmatpush1.msra.mxu0 %v648
    %705 = vmatprep.subr.mxu0 0.0
    %706 = vmatpush1.msra.mxu0 0.0
    %707 = vmatprep.subr.mxu0 0.0
    %708 = vmatpush1.msra.mxu0 0.0
    %709 = vmatprep.subr.mxu0 0.0
    %710 = vmatpush1.msra.mxu0 0.0
    %711 = vmatprep.subr.mxu0 0.0
    %712 = vmatpush1.msra.mxu0 0.0
    %713 = vmatprep.subr.mxu0 0.0
    %714 = vmatpush1.msra.mxu0 0.0
    %715 = vmatprep.subr.mxu0 0.0
    %716 = vmatpush1.msra.mxu0 0.0
    %717 = vmatprep.subr.mxu0 0.0
    %718 = vmatpush1.msra.mxu0 0.0
    %719 = vmatprep.subr.mxu0 0.0
    %720 = vmatpush1.msra.mxu0 0.0
    %721 = vmatprep.subr.mxu0 0.0
    %722 = vmatpush1.msra.mxu0 0.0
    %723 = vmatprep.subr.mxu0 0.0
    %724 = vmatpush1.msra.mxu0 0.0
    %725 = vmatprep.subr.mxu0 0.0
    %726 = vmatpush1.msra.mxu0 0.0
    %727 = vmatprep.subr.mxu0 0.0
    %728 = vmatpush1.msra.mxu0 0.0
    %729 = vmatprep.subr.mxu0 0.0
    %730 = vmatpush1.msra.mxu0 0.0
    %731 = vmatprep.subr.mxu0 0.0
    %732 = vmatpush1.msra.mxu0 0.0
    %733 = vmatprep.subr.mxu0 0.0
    %734 = vmatpush1.msra.mxu0 0.0
    %735 = vmatprep.subr.mxu0 0.0
    %736 = vmatpush1.msra.mxu0 0.0
    %737 = vmatprep.subr.mxu0 0.0
    %738 = vmatpush1.msra.mxu0 0.0
    %739 = vmatprep.subr.mxu0 0.0
    %740 = vmatpush1.msra.mxu0 0.0
    %741 = vmatprep.subr.mxu0 0.0
    %742 = vmatpush1.msra.mxu0 0.0
    %743 = vmatprep.subr.mxu0 0.0
    %744 = vmatpush1.msra.mxu0 0.0
    %745 = vmatprep.subr.mxu0 0.0
    %746 = vmatpush1.msra.mxu0 0.0
    %747 = vmatprep.subr.mxu0 0.0
    %748 = vmatpush1.msra.mxu0 0.0
    %749 = vmatprep.subr.mxu0 0.0
    %750 = vmatpush1.msra.mxu0 0.0
    %751 = vmatprep.subr.mxu0 0.0
    %752 = vmatpush1.msra.mxu0 0.0
    %753 = vmatprep.subr.mxu0 0.0
    %754 = vmatpush1.msra.mxu0 0.0
    %755 = vmatprep.subr.mxu0 0.0
    %756 = vmatpush1.msra.mxu0 0.0
    %757 = vmatprep.subr.mxu0 0.0
    %758 = vmatpush1.msra.mxu0 0.0
    %759 = vmatprep.subr.mxu0 0.0
    %760 = vmatpush1.msra.mxu0 0.0
    %761 = vmatprep.mubr.f32.mxu0 0.0
    %762 = vmatmul.mubr.f32.gmra.mrb[0].mxu0 %v650
    %v763 = vpop.f32.mrb[0].mxu0
    %v764 = vadd.f32 0.0, %v763
    %v765 = vpop.f32.mrb[0].mxu0
    %766 = vmatprep.mubr.f32.mxu0 0.0
    %767 = vmatmul.mubr.f32.gmra.mrb[0].mxu0 %v653
    %v768 = vpop.f32.mrb[0].mxu0
    %v769 = vadd.f32 0.0, %v768
    %v770 = vpop.f32.mrb[0].mxu0
    %771 = vmatprep.mubr.f32.mxu0 0.0
    %772 = vmatmul.mubr.f32.gmra.mrb[0].mxu0 %v656
    %v773 = vpop.f32.mrb[0].mxu0
    %v774 = vadd.f32 0.0, %v773
    %v775 = vpop.f32.mrb[0].mxu0
    %776 = vmatprep.mubr.f32.mxu0 0.0
    %777 = vmatmul.mubr.f32.gmra.mrb[0].mxu0 %v659
    %v778 = vpop.f32.mrb[0].mxu0
    %v779 = vadd.f32 0.0, %v778
    %v780 = vpop.f32.mrb[0].mxu0
    %781 = vmatprep.mubr.f32.mxu0 0.0
    %782 = vmatmul.mubr.f32.gmra.mrb[0].mxu0 %v662
    %v783 = vpop.f32.mrb[0].mxu0
    %v784 = vadd.f32 0.0, %v783
    %v785 = vpop.f32.mrb[0].mxu0
    %786 = vmatprep.mubr.f32.mxu0 0.0
    %787 = vmatmul.mubr.f32.gmra.mrb[0].mxu0 %v665
    %v788 = vpop.f32.mrb[0].mxu0
    %v789 = vadd.f32 0.0, %v788
    %v790 = vpop.f32.mrb[0].mxu0
    %791 = vmatprep.mubr.f32.mxu0 0.0
    %792 = vmatmul.mubr.f32.gmra.mrb[0].mxu0 %v668
    %v793 = vpop.f32.mrb[0].mxu0
    %v794 = vadd.f32 0.0, %v793
    %v795 = vpop.f32.mrb[0].mxu0
    %796 = vmatprep.mubr.f32.mxu0 0.0
    %797 = vmatmul.mubr.f32.gmra.mrb[0].mxu0 %v671
    %v798 = vpop.f32.mrb[0].mxu0
    %v799 = vadd.f32 0.0, %v798
    %v800 = vpop.f32.mrb[0].mxu0
    %801 = vmatprep.mubr.f32.mxu0 0.0
    %802 = vmatmul.mubr.f32.gmra.mrb[0].mxu0 %v674
    %v803 = vpop.f32.mrb[0].mxu0
    %v804 = vadd.f32 0.0, %v803
    %v805 = vpop.f32.mrb[0].mxu0
    %806 = vmatprep.mubr.f32.mxu0 0.0
    %807 = vmatmul.mubr.f32.gmra.mrb[0].mxu0 %v677
    %v808 = vpop.f32.mrb[0].mxu0
    %v809 = vadd.f32 0.0, %v808
    %v810 = vpop.f32.mrb[0].mxu0
    %811 = vmatprep.mubr.f32.mxu0 0.0
    %812 = vmatmul.mubr.f32.gmra.mrb[0].mxu0 %v680
    %v813 = vpop.f32.mrb[0].mxu0
    %v814 = vadd.f32 0.0, %v813
    %v815 = vpop.f32.mrb[0].mxu0
    %816 = vmatprep.mubr.f32.mxu0 0.0
    %817 = vmatmul.mubr.f32.gmra.mrb[0].mxu0 %v683
    %v818 = vpop.f32.mrb[0].mxu0
    %v819 = vadd.f32 0.0, %v818
    %v820 = vpop.f32.mrb[0].mxu0
    %821 = vmatprep.mubr.f32.mxu0 0.0
    %822 = vmatmul.mubr.f32.gmra.mrb[0].mxu0 %v686
    %v823 = vpop.f32.mrb[0].mxu0
    %v824 = vadd.f32 0.0, %v823
    %v825 = vpop.f32.mrb[0].mxu0
    %826 = vmatprep.mubr.f32.mxu0 0.0
    %827 = vmatmul.mubr.f32.gmra.mrb[0].mxu0 %v689
    %v828 = vpop.f32.mrb[0].mxu0
    %v829 = vadd.f32 0.0, %v828
    %v830 = vpop.f32.mrb[0].mxu0
    %831 = vmatprep.mubr.f32.mxu0 0.0
    %832 = vmatmul.mubr.f32.gmra.mrb[0].mxu0 %v692
    %v833 = vpop.f32.mrb[0].mxu0
    %v834 = vadd.f32 0.0, %v833
    %v835 = vpop.f32.mrb[0].mxu0
    %836 = vmatprep.mubr.f32.mxu0 0.0
    %837 = vmatmul.mubr.f32.gmra.mrb[0].mxu0 %v695
    %v838 = vpop.f32.mrb[0].mxu0
    %v839 = vadd.f32 0.0, %v838
    %v840 = vpop.f32.mrb[0].mxu0
    %841 = vdwg.mxu0
    %v843 = vsel %vm580, %v608, 0
    %v846 = vsel %vm580, %v609, 0
    %v849 = vsel %vm580, %v610, 0
    %v852 = vsel %vm580, %v611, 0
    %v855 = vsel %vm580, %v612, 0
    %v858 = vsel %vm580, %v613, 0
    %v861 = vsel %vm580, %v614, 0
    %v864 = vsel %vm580, %v615, 0
    %v867 = vsel %vm580, %v616, 0
    %v870 = vsel %vm580, %v617, 0
    %v873 = vsel %vm580, %v618, 0
    %v876 = vsel %vm580, %v619, 0
    %v879 = vsel %vm580, %v620, 0
    %v882 = vsel %vm580, %v621, 0
    %v885 = vsel %vm580, %v622, 0
    %v888 = vsel %vm580, %v623, 0
    %890 = vmatprep.subr.mxu0 0.0
    %891 = vmatpush1.msra.mxu0 %v624
    %892 = vmatprep.subr.mxu0 0.0
    %893 = vmatpush1.msra.mxu0 %v625
    %894 = vmatprep.subr.mxu0 0.0
    %895 = vmatpush1.msra.mxu0 %v626
    %896 = vmatprep.subr.mxu0 0.0
    %897 = vmatpush1.msra.mxu0 %v627
    %898 = vmatprep.subr.mxu0 0.0
    %899 = vmatpush1.msra.mxu0 0.0
    %900 = vmatprep.subr.mxu0 0.0
    %901 = vmatpush1.msra.mxu0 0.0
    %902 = vmatprep.subr.mxu0 0.0
    %903 = vmatpush1.msra.mxu0 0.0
    %904 = vmatprep.subr.mxu0 0.0
    %905 = vmatpush1.msra.mxu0 0.0
    %906 = vmatprep.subr.mxu0 0.0
    %907 = vmatpush1.msra.mxu0 0.0
    %908 = vmatprep.subr.mxu0 0.0
    %909 = vmatpush1.msra.mxu0 0.0
    %910 = vmatprep.subr.mxu0 0.0
    %911 = vmatpush1.msra.mxu0 0.0
    %912 = vmatprep.subr.mxu0 0.0
    %913 = vmatpush1.msra.mxu0 0.0
    %914 = vmatprep.subr.mxu0 0.0
    %915 = vmatpush1.msra.mxu0 0.0
    %916 = vmatprep.subr.mxu0 0.0
    %917 = vmatpush1.msra.mxu0 0.0
    %918 = vmatprep.subr.mxu0 0.0
    %919 = vmatpush1.msra.mxu0 0.0
    %920 = vmatprep.subr.mxu0 0.0
    %921 = vmatpush1.msra.mxu0 0.0
    %922 = vmatprep.subr.mxu0 0.0
    %923 = vmatpush1.msra.mxu0 0.0
    %924 = vmatprep.subr.mxu0 0.0
    %925 = vmatpush1.msra.mxu0 0.0
    %926 = vmatprep.subr.mxu0 0.0
    %927 = vmatpush1.msra.mxu0 0.0
    %928 = vmatprep.subr.mxu0 0.0
    %929 = vmatpush1.msra.mxu0 0.0
    %930 = vmatprep.subr.mxu0 0.0
    %931 = vmatpush1.msra.mxu0 0.0
    %932 = vmatprep.subr.mxu0 0.0
    %933 = vmatpush1.msra.mxu0 0.0
    %934 = vmatprep.subr.mxu0 0.0
    %935 = vmatpush1.msra.mxu0 0.0
    %936 = vmatprep.subr.mxu0 0.0
    %937 = vmatpush1.msra.mxu0 0.0
    %938 = vmatprep.subr.mxu0 0.0
    %939 = vmatpush1.msra.mxu0 0.0
    %940 = vmatprep.subr.mxu0 0.0
    %941 = vmatpush1.msra.mxu0 0.0
    %942 = vmatprep.subr.mxu0 0.0
    %943 = vmatpush1.msra.mxu0 0.0
    %944 = vmatprep.subr.mxu0 0.0
    %945 = vmatpush1.msra.mxu0 0.0
    %946 = vmatprep.subr.mxu0 0.0
    %947 = vmatpush1.msra.mxu0 0.0
    %948 = vmatprep.subr.mxu0 0.0
    %949 = vmatpush1.msra.mxu0 0.0
    %950 = vmatprep.subr.mxu0 0.0
    %951 = vmatpush1.msra.mxu0 0.0
    %952 = vmatprep.subr.mxu0 0.0
    %953 = vmatpush1.msra.mxu0 0.0
    %954 = vmatprep.mubr.f32.mxu0 0.0
    %955 = vmatmul.mubr.f32.gmra.mrb[0].mxu0 %v843
    %v956 = vpop.f32.mrb[0].mxu0
    %v957 = vadd.f32 %v764, %v956
    %v958 = vpop.f32.mrb[0].mxu0
    %959 = vmatprep.mubr.f32.mxu0 0.0
    %960 = vmatmul.mubr.f32.gmra.mrb[0].mxu0 %v846
    %v961 = vpop.f32.mrb[0].mxu0
    %v962 = vadd.f32 %v769, %v961
    %v963 = vpop.f32.mrb[0].mxu0
    %964 = vmatprep.mubr.f32.mxu0 0.0
    %965 = vmatmul.mubr.f32.gmra.mrb[0].mxu0 %v849
    %v966 = vpop.f32.mrb[0].mxu0
    %v967 = vadd.f32 %v774, %v966
    %v968 = vpop.f32.mrb[0].mxu0
    %969 = vmatprep.mubr.f32.mxu0 0.0
    %970 = vmatmul.mubr.f32.gmra.mrb[0].mxu0 %v852
    %v971 = vpop.f32.mrb[0].mxu0
    %v972 = vadd.f32 %v779, %v971
    %v973 = vpop.f32.mrb[0].mxu0
    %974 = vmatprep.mubr.f32.mxu0 0.0
    %975 = vmatmul.mubr.f32.gmra.mrb[0].mxu0 %v855
    %v976 = vpop.f32.mrb[0].mxu0
    %v977 = vadd.f32 %v784, %v976
    %v978 = vpop.f32.mrb[0].mxu0
    %979 = vmatprep.mubr.f32.mxu0 0.0
    %980 = vmatmul.mubr.f32.gmra.mrb[0].mxu0 %v858
    %v981 = vpop.f32.mrb[0].mxu0
    %v982 = vadd.f32 %v789, %v981
    %v983 = vpop.f32.mrb[0].mxu0
    %984 = vmatprep.mubr.f32.mxu0 0.0
    %985 = vmatmul.mubr.f32.gmra.mrb[0].mxu0 %v861
    %v986 = vpop.f32.mrb[0].mxu0
    %v987 = vadd.f32 %v794, %v986
    %v988 = vpop.f32.mrb[0].mxu0
    %989 = vmatprep.mubr.f32.mxu0 0.0
    %990 = vmatmul.mubr.f32.gmra.mrb[0].mxu0 %v864
    %v991 = vpop.f32.mrb[0].mxu0
    %v992 = vadd.f32 %v799, %v991
    %v993 = vpop.f32.mrb[0].mxu0
    %994 = vmatprep.mubr.f32.mxu0 0.0
    %995 = vmatmul.mubr.f32.gmra.mrb[0].mxu0 %v867
    %v996 = vpop.f32.mrb[0].mxu0
    %v997 = vadd.f32 %v804, %v996
    %v998 = vpop.f32.mrb[0].mxu0
    %999 = vmatprep.mubr.f32.mxu0 0.0
    %1000 = vmatmul.mubr.f32.gmra.mrb[0].mxu0 %v870
    %v1001 = vpop.f32.mrb[0].mxu0
    %v1002 = vadd.f32 %v809, %v1001
    %v1003 = vpop.f32.mrb[0].mxu0
    %1004 = vmatprep.mubr.f32.mxu0 0.0
    %1005 = vmatmul.mubr.f32.gmra.mrb[0].mxu0 %v873
    %v1006 = vpop.f32.mrb[0].mxu0
    %v1007 = vadd.f32 %v814, %v1006
    %v1008 = vpop.f32.mrb[0].mxu0
    %1009 = vmatprep.mubr.f32.mxu0 0.0
    %1010 = vmatmul.mubr.f32.gmra.mrb[0].mxu0 %v876
    %v1011 = vpop.f32.mrb[0].mxu0
    %v1012 = vadd.f32 %v819, %v1011
    %v1013 = vpop.f32.mrb[0].mxu0
    %1014 = vmatprep.mubr.f32.mxu0 0.0
    %1015 = vmatmul.mubr.f32.gmra.mrb[0].mxu0 %v879
    %v1016 = vpop.f32.mrb[0].mxu0
    %v1017 = vadd.f32 %v824, %v1016
    %v1018 = vpop.f32.mrb[0].mxu0
    %1019 = vmatprep.mubr.f32.mxu0 0.0
    %1020 = vmatmul.mubr.f32.gmra.mrb[0].mxu0 %v882
    %v1021 = vpop.f32.mrb[0].mxu0
    %v1022 = vadd.f32 %v829, %v1021
    %v1023 = vpop.f32.mrb[0].mxu0
    %1024 = vmatprep.mubr.f32.mxu0 0.0
    %1025 = vmatmul.mubr.f32.gmra.mrb[0].mxu0 %v885
    %v1026 = vpop.f32.mrb[0].mxu0
    %v1027 = vadd.f32 %v834, %v1026
    %v1028 = vpop.f32.mrb[0].mxu0
    %1029 = vmatprep.mubr.f32.mxu0 0.0
    %1030 = vmatmul.mubr.f32.gmra.mrb[0].mxu0 %v888
    %v1031 = vpop.f32.mrb[0].mxu0
    %v1032 = vadd.f32 %v839, %v1031
    %v1033 = vpop.f32.mrb[0].mxu0
    %1034 = vdwg.mxu0
    %v1035 = vld [vmem:[#allocation2 + $0x2] sm:$0xff]
    %v1036 = vld [vmem:[#allocation2 + $0x12] sm:$0xff]
    %v1037 = vld [vmem:[#allocation2 + $0x22] sm:$0xff]
    %v1038 = vld [vmem:[#allocation2 + $0x32] sm:$0xff]
    %v1039 = vld [vmem:[#allocation2 + $0x42] sm:$0xff]
    %v1040 = vld [vmem:[#allocation2 + $0x52] sm:$0xff]
    %v1041 = vld [vmem:[#allocation2 + $0x62] sm:$0xff]
    %v1042 = vld [vmem:[#allocation2 + $0x72] sm:$0xff]
    %v1043 = vld [vmem:[#allocation2 + $0xa2] sm:$0xff]
    %v1044 = vld [vmem:[#allocation2 + $0xb2] sm:$0xff]
    %v1045 = vld [vmem:[#allocation2 + $0xc2] sm:$0xff]
    %v1046 = vld [vmem:[#allocation2 + $0xd2] sm:$0xff]
    %v1047 = vld [vmem:[#allocation2 + $0xe2] sm:$0xff]
    %v1048 = vld [vmem:[#allocation2 + $0xf2] sm:$0xff]
    %v1049 = vld [vmem:[#allocation2 + $0x102] sm:$0xff]
    %v1050 = vld [vmem:[#allocation2 + $0x112] sm:$0xff]
    %s1051 = scalar_lea.vmem [#allocation5], 64
    %v1052 = vld [vmem:[%s1051] sm:$0xff]
    %v1053 = vld [vmem:[%s1051 + $0x8] sm:$0xff]
    %v1054 = vld [vmem:[%s1051 + $0x10] sm:$0xff]
    %v1055 = vld [vmem:[%s1051 + $0x18] sm:$0xff]
    %v1057 = vsel %vm580, %v1035, 0
    %v1060 = vsel %vm580, %v1036, 0
    %v1063 = vsel %vm580, %v1037, 0
    %v1066 = vsel %vm580, %v1038, 0
    %v1069 = vsel %vm580, %v1039, 0
    %v1072 = vsel %vm580, %v1040, 0
    %v1075 = vsel %vm580, %v1041, 0
    %v1078 = vsel %vm580, %v1042, 0
    %v1081 = vsel %vm580, %v1043, 0
    %v1084 = vsel %vm580, %v1044, 0
    %v1087 = vsel %vm580, %v1045, 0
    %v1090 = vsel %vm580, %v1046, 0
    %v1093 = vsel %vm580, %v1047, 0
    %v1096 = vsel %vm580, %v1048, 0
    %v1099 = vsel %vm580, %v1049, 0
    %v1102 = vsel %vm580, %v1050, 0
    %1104 = vmatprep.subr.mxu0 0.0
    %1105 = vmatpush1.msra.mxu0 %v1052
    %1106 = vmatprep.subr.mxu0 0.0
    %1107 = vmatpush1.msra.mxu0 %v1053
    %1108 = vmatprep.subr.mxu0 0.0
    %1109 = vmatpush1.msra.mxu0 %v1054
    %1110 = vmatprep.subr.mxu0 0.0
    %1111 = vmatpush1.msra.mxu0 %v1055
    %1112 = vmatprep.subr.mxu0 0.0
    %1113 = vmatpush1.msra.mxu0 0.0
    %1114 = vmatprep.subr.mxu0 0.0
    %1115 = vmatpush1.msra.mxu0 0.0
    %1116 = vmatprep.subr.mxu0 0.0
    %1117 = vmatpush1.msra.mxu0 0.0
    %1118 = vmatprep.subr.mxu0 0.0
    %1119 = vmatpush1.msra.mxu0 0.0
    %1120 = vmatprep.subr.mxu0 0.0
    %1121 = vmatpush1.msra.mxu0 0.0
    %1122 = vmatprep.subr.mxu0 0.0
    %1123 = vmatpush1.msra.mxu0 0.0
    %1124 = vmatprep.subr.mxu0 0.0
    %1125 = vmatpush1.msra.mxu0 0.0
    %1126 = vmatprep.subr.mxu0 0.0
    %1127 = vmatpush1.msra.mxu0 0.0
    %1128 = vmatprep.subr.mxu0 0.0
    %1129 = vmatpush1.msra.mxu0 0.0
    %1130 = vmatprep.subr.mxu0 0.0
    %1131 = vmatpush1.msra.mxu0 0.0
    %1132 = vmatprep.subr.mxu0 0.0
    %1133 = vmatpush1.msra.mxu0 0.0
    %1134 = vmatprep.subr.mxu0 0.0
    %1135 = vmatpush1.msra.mxu0 0.0
    %1136 = vmatprep.subr.mxu0 0.0
    %1137 = vmatpush1.msra.mxu0 0.0
    %1138 = vmatprep.subr.mxu0 0.0
    %1139 = vmatpush1.msra.mxu0 0.0
    %1140 = vmatprep.subr.mxu0 0.0
    %1141 = vmatpush1.msra.mxu0 0.0
    %1142 = vmatprep.subr.mxu0 0.0
    %1143 = vmatpush1.msra.mxu0 0.0
    %1144 = vmatprep.subr.mxu0 0.0
    %1145 = vmatpush1.msra.mxu0 0.0
    %1146 = vmatprep.subr.mxu0 0.0
    %1147 = vmatpush1.msra.mxu0 0.0
    %1148 = vmatprep.subr.mxu0 0.0
    %1149 = vmatpush1.msra.mxu0 0.0
    %1150 = vmatprep.subr.mxu0 0.0
    %1151 = vmatpush1.msra.mxu0 0.0
    %1152 = vmatprep.subr.mxu0 0.0
    %1153 = vmatpush1.msra.mxu0 0.0
    %1154 = vmatprep.subr.mxu0 0.0
    %1155 = vmatpush1.msra.mxu0 0.0
    %1156 = vmatprep.subr.mxu0 0.0
    %1157 = vmatpush1.msra.mxu0 0.0
    %1158 = vmatprep.subr.mxu0 0.0
    %1159 = vmatpush1.msra.mxu0 0.0
    %1160 = vmatprep.subr.mxu0 0.0
    %1161 = vmatpush1.msra.mxu0 0.0
    %1162 = vmatprep.subr.mxu0 0.0
    %1163 = vmatpush1.msra.mxu0 0.0
    %1164 = vmatprep.subr.mxu0 0.0
    %1165 = vmatpush1.msra.mxu0 0.0
    %1166 = vmatprep.subr.mxu0 0.0
    %1167 = vmatpush1.msra.mxu0 0.0
    %1168 = vmatprep.mubr.f32.mxu0 0.0
    %1169 = vmatmul.mubr.f32.gmra.mrb[0].mxu0 %v1057
    %v1170 = vpop.f32.mrb[0].mxu0
    %v1171 = vadd.f32 0.0, %v1170
    %v1172 = vpop.f32.mrb[0].mxu0
    %1173 = vmatprep.mubr.f32.mxu0 0.0
    %1174 = vmatmul.mubr.f32.gmra.mrb[0].mxu0 %v1060
    %v1175 = vpop.f32.mrb[0].mxu0
    %v1176 = vadd.f32 0.0, %v1175
    %v1177 = vpop.f32.mrb[0].mxu0
    %1178 = vmatprep.mubr.f32.mxu0 0.0
    %1179 = vmatmul.mubr.f32.gmra.mrb[0].mxu0 %v1063
    %v1180 = vpop.f32.mrb[0].mxu0
    %v1181 = vadd.f32 0.0, %v1180
    %v1182 = vpop.f32.mrb[0].mxu0
    %1183 = vmatprep.mubr.f32.mxu0 0.0
    %1184 = vmatmul.mubr.f32.gmra.mrb[0].mxu0 %v1066
    %v1185 = vpop.f32.mrb[0].mxu0
    %v1186 = vadd.f32 0.0, %v1185
    %v1187 = vpop.f32.mrb[0].mxu0
    %1188 = vmatprep.mubr.f32.mxu0 0.0
    %1189 = vmatmul.mubr.f32.gmra.mrb[0].mxu0 %v1069
    %v1190 = vpop.f32.mrb[0].mxu0
    %v1191 = vadd.f32 0.0, %v1190
    %v1192 = vpop.f32.mrb[0].mxu0
    %1193 = vmatprep.mubr.f32.mxu0 0.0
    %1194 = vmatmul.mubr.f32.gmra.mrb[0].mxu0 %v1072
    %v1195 = vpop.f32.mrb[0].mxu0
    %v1196 = vadd.f32 0.0, %v1195
    %v1197 = vpop.f32.mrb[0].mxu0
    %1198 = vmatprep.mubr.f32.mxu0 0.0
    %1199 = vmatmul.mubr.f32.gmra.mrb[0].mxu0 %v1075
    %v1200 = vpop.f32.mrb[0].mxu0
    %v1201 = vadd.f32 0.0, %v1200
    %v1202 = vpop.f32.mrb[0].mxu0
    %1203 = vmatprep.mubr.f32.mxu0 0.0
    %1204 = vmatmul.mubr.f32.gmra.mrb[0].mxu0 %v1078
    %v1205 = vpop.f32.mrb[0].mxu0
    %v1206 = vadd.f32 0.0, %v1205
    %v1207 = vpop.f32.mrb[0].mxu0
    %1208 = vmatprep.mubr.f32.mxu0 0.0
    %1209 = vmatmul.mubr.f32.gmra.mrb[0].mxu0 %v1081
    %v1210 = vpop.f32.mrb[0].mxu0
    %v1211 = vadd.f32 0.0, %v1210
    %v1212 = vpop.f32.mrb[0].mxu0
    %1213 = vmatprep.mubr.f32.mxu0 0.0
    %1214 = vmatmul.mubr.f32.gmra.mrb[0].mxu0 %v1084
    %v1215 = vpop.f32.mrb[0].mxu0
    %v1216 = vadd.f32 0.0, %v1215
    %v1217 = vpop.f32.mrb[0].mxu0
    %1218 = vmatprep.mubr.f32.mxu0 0.0
    %1219 = vmatmul.mubr.f32.gmra.mrb[0].mxu0 %v1087
    %v1220 = vpop.f32.mrb[0].mxu0
    %v1221 = vadd.f32 0.0, %v1220
    %v1222 = vpop.f32.mrb[0].mxu0
    %1223 = vmatprep.mubr.f32.mxu0 0.0
    %1224 = vmatmul.mubr.f32.gmra.mrb[0].mxu0 %v1090
    %v1225 = vpop.f32.mrb[0].mxu0
    %v1226 = vadd.f32 0.0, %v1225
    %v1227 = vpop.f32.mrb[0].mxu0
    %1228 = vmatprep.mubr.f32.mxu0 0.0
    %1229 = vmatmul.mubr.f32.gmra.mrb[0].mxu0 %v1093
    %v1230 = vpop.f32.mrb[0].mxu0
    %v1231 = vadd.f32 0.0, %v1230
    %v1232 = vpop.f32.mrb[0].mxu0
    %1233 = vmatprep.mubr.f32.mxu0 0.0
    %1234 = vmatmul.mubr.f32.gmra.mrb[0].mxu0 %v1096
    %v1235 = vpop.f32.mrb[0].mxu0
    %v1236 = vadd.f32 0.0, %v1235
    %v1237 = vpop.f32.mrb[0].mxu0
    %1238 = vmatprep.mubr.f32.mxu0 0.0
    %1239 = vmatmul.mubr.f32.gmra.mrb[0].mxu0 %v1099
    %v1240 = vpop.f32.mrb[0].mxu0
    %v1241 = vadd.f32 0.0, %v1240
    %v1242 = vpop.f32.mrb[0].mxu0
    %1243 = vmatprep.mubr.f32.mxu0 0.0
    %1244 = vmatmul.mubr.f32.gmra.mrb[0].mxu0 %v1102
    %v1245 = vpop.f32.mrb[0].mxu0
    %v1246 = vadd.f32 0.0, %v1245
    %v1247 = vpop.f32.mrb[0].mxu0
    %1248 = vdwg.mxu0
    %v1249 = vadd.f32 %v957, %v1171
    %v1250 = vadd.f32 %v962, %v1176
    %v1251 = vadd.f32 %v967, %v1181
    %v1252 = vadd.f32 %v972, %v1186
    %v1253 = vadd.f32 %v977, %v1191
    %v1254 = vadd.f32 %v982, %v1196
    %v1255 = vadd.f32 %v987, %v1201
    %v1256 = vadd.f32 %v992, %v1206
    %v1257 = vadd.f32 %v997, %v1211
    %v1258 = vadd.f32 %v1002, %v1216
    %v1259 = vadd.f32 %v1007, %v1221
    %v1260 = vadd.f32 %v1012, %v1226
    %v1261 = vadd.f32 %v1017, %v1231
    %v1262 = vadd.f32 %v1022, %v1236
    %v1263 = vadd.f32 %v1027, %v1241
    %v1264 = vadd.f32 %v1032, %v1246
    %v1265 = vld [vmem:[%s579] sm:$0xff]
    %v1266 = vld [vmem:[%s579 + $0x10] sm:$0xff]
    %v1267 = vld [vmem:[%s579 + $0x20] sm:$0xff]
    %v1268 = vld [vmem:[%s579 + $0x30] sm:$0xff]
    %v1269 = vld [vmem:[%s579 + $0x40] sm:$0xff]
    %v1270 = vld [vmem:[%s579 + $0x50] sm:$0xff]
    %v1271 = vld [vmem:[%s579 + $0x60] sm:$0xff]
    %v1272 = vld [vmem:[%s579 + $0x70] sm:$0xff]
    %v1273 = vld [vmem:[%s579 + $0xa0] sm:$0xff]
    %v1274 = vld [vmem:[%s579 + $0xb0] sm:$0xff]
    %v1275 = vld [vmem:[%s579 + $0xc0] sm:$0xff]
    %v1276 = vld [vmem:[%s579 + $0xd0] sm:$0xff]
    %v1277 = vld [vmem:[%s579 + $0xe0] sm:$0xff]
    %v1278 = vld [vmem:[%s579 + $0xf0] sm:$0xff]
    %v1279 = vld [vmem:[%s579 + $0x100] sm:$0xff]
    %v1280 = vld [vmem:[%s579 + $0x110] sm:$0xff]
    %s1281 = scalar_lea.vmem [#allocation5], 96
    %v1282 = vld [vmem:[%s1281] sm:$0xff]
    %v1283 = vld [vmem:[%s1281 + $0x8] sm:$0xff]
    %v1284 = vld [vmem:[%s1281 + $0x10] sm:$0xff]
    %v1285 = vld [vmem:[%s1281 + $0x18] sm:$0xff]
    %v1287 = vsel %vm580, %v1265, 0
    %v1290 = vsel %vm580, %v1266, 0
    %v1293 = vsel %vm580, %v1267, 0
    %v1296 = vsel %vm580, %v1268, 0
    %v1299 = vsel %vm580, %v1269, 0
    %v1302 = vsel %vm580, %v1270, 0
    %v1305 = vsel %vm580, %v1271, 0
    %v1308 = vsel %vm580, %v1272, 0
    %v1311 = vsel %vm580, %v1273, 0
    %v1314 = vsel %vm580, %v1274, 0
    %v1317 = vsel %vm580, %v1275, 0
    %v1320 = vsel %vm580, %v1276, 0
    %v1323 = vsel %vm580, %v1277, 0
    %v1326 = vsel %vm580, %v1278, 0
    %v1329 = vsel %vm580, %v1279, 0
    %v1332 = vsel %vm580, %v1280, 0
    %1334 = vmatprep.subr.mxu0 0.0
    %1335 = vmatpush1.msra.mxu0 %v1282
    %1336 = vmatprep.subr.mxu0 0.0
    %1337 = vmatpush1.msra.mxu0 %v1283
    %1338 = vmatprep.subr.mxu0 0.0
    %1339 = vmatpush1.msra.mxu0 %v1284
    %1340 = vmatprep.subr.mxu0 0.0
    %1341 = vmatpush1.msra.mxu0 %v1285
    %1342 = vmatprep.subr.mxu0 0.0
    %1343 = vmatpush1.msra.mxu0 0.0
    %1344 = vmatprep.subr.mxu0 0.0
    %1345 = vmatpush1.msra.mxu0 0.0
    %1346 = vmatprep.subr.mxu0 0.0
    %1347 = vmatpush1.msra.mxu0 0.0
    %1348 = vmatprep.subr.mxu0 0.0
    %1349 = vmatpush1.msra.mxu0 0.0
    %1350 = vmatprep.subr.mxu0 0.0
    %1351 = vmatpush1.msra.mxu0 0.0
    %1352 = vmatprep.subr.mxu0 0.0
    %1353 = vmatpush1.msra.mxu0 0.0
    %1354 = vmatprep.subr.mxu0 0.0
    %1355 = vmatpush1.msra.mxu0 0.0
    %1356 = vmatprep.subr.mxu0 0.0
    %1357 = vmatpush1.msra.mxu0 0.0
    %1358 = vmatprep.subr.mxu0 0.0
    %1359 = vmatpush1.msra.mxu0 0.0
    %1360 = vmatprep.subr.mxu0 0.0
    %1361 = vmatpush1.msra.mxu0 0.0
    %1362 = vmatprep.subr.mxu0 0.0
    %1363 = vmatpush1.msra.mxu0 0.0
    %1364 = vmatprep.subr.mxu0 0.0
    %1365 = vmatpush1.msra.mxu0 0.0
    %1366 = vmatprep.subr.mxu0 0.0
    %1367 = vmatpush1.msra.mxu0 0.0
    %1368 = vmatprep.subr.mxu0 0.0
    %1369 = vmatpush1.msra.mxu0 0.0
    %1370 = vmatprep.subr.mxu0 0.0
    %1371 = vmatpush1.msra.mxu0 0.0
    %1372 = vmatprep.subr.mxu0 0.0
    %1373 = vmatpush1.msra.mxu0 0.0
    %1374 = vmatprep.subr.mxu0 0.0
    %1375 = vmatpush1.msra.mxu0 0.0
    %1376 = vmatprep.subr.mxu0 0.0
    %1377 = vmatpush1.msra.mxu0 0.0
    %1378 = vmatprep.subr.mxu0 0.0
    %1379 = vmatpush1.msra.mxu0 0.0
    %1380 = vmatprep.subr.mxu0 0.0
    %1381 = vmatpush1.msra.mxu0 0.0
    %1382 = vmatprep.subr.mxu0 0.0
    %1383 = vmatpush1.msra.mxu0 0.0
    %1384 = vmatprep.subr.mxu0 0.0
    %1385 = vmatpush1.msra.mxu0 0.0
    %1386 = vmatprep.subr.mxu0 0.0
    %1387 = vmatpush1.msra.mxu0 0.0
    %1388 = vmatprep.subr.mxu0 0.0
    %1389 = vmatpush1.msra.mxu0 0.0
    %1390 = vmatprep.subr.mxu0 0.0
    %1391 = vmatpush1.msra.mxu0 0.0
    %1392 = vmatprep.subr.mxu0 0.0
    %1393 = vmatpush1.msra.mxu0 0.0
    %1394 = vmatprep.subr.mxu0 0.0
    %1395 = vmatpush1.msra.mxu0 0.0
    %1396 = vmatprep.subr.mxu0 0.0
    %1397 = vmatpush1.msra.mxu0 0.0
    %1398 = vmatprep.mubr.f32.mxu0 0.0
    %1399 = vmatmul.mubr.f32.gmra.mrb[0].mxu0 %v1287
    %v1400 = vpop.f32.mrb[0].mxu0
    %v1401 = vadd.f32 0.0, %v1400
    %v1402 = vpop.f32.mrb[0].mxu0
    %1403 = vmatprep.mubr.f32.mxu0 0.0
    %1404 = vmatmul.mubr.f32.gmra.mrb[0].mxu0 %v1290
    %v1405 = vpop.f32.mrb[0].mxu0
    %v1406 = vadd.f32 0.0, %v1405
    %v1407 = vpop.f32.mrb[0].mxu0
    %1408 = vmatprep.mubr.f32.mxu0 0.0
    %1409 = vmatmul.mubr.f32.gmra.mrb[0].mxu0 %v1293
    %v1410 = vpop.f32.mrb[0].mxu0
    %v1411 = vadd.f32 0.0, %v1410
    %v1412 = vpop.f32.mrb[0].mxu0
    %1413 = vmatprep.mubr.f32.mxu0 0.0
    %1414 = vmatmul.mubr.f32.gmra.mrb[0].mxu0 %v1296
    %v1415 = vpop.f32.mrb[0].mxu0
    %v1416 = vadd.f32 0.0, %v1415
    %v1417 = vpop.f32.mrb[0].mxu0
    %1418 = vmatprep.mubr.f32.mxu0 0.0
    %1419 = vmatmul.mubr.f32.gmra.mrb[0].mxu0 %v1299
    %v1420 = vpop.f32.mrb[0].mxu0
    %v1421 = vadd.f32 0.0, %v1420
    %v1422 = vpop.f32.mrb[0].mxu0
    %1423 = vmatprep.mubr.f32.mxu0 0.0
    %1424 = vmatmul.mubr.f32.gmra.mrb[0].mxu0 %v1302
    %v1425 = vpop.f32.mrb[0].mxu0
    %v1426 = vadd.f32 0.0, %v1425
    %v1427 = vpop.f32.mrb[0].mxu0
    %1428 = vmatprep.mubr.f32.mxu0 0.0
    %1429 = vmatmul.mubr.f32.gmra.mrb[0].mxu0 %v1305
    %v1430 = vpop.f32.mrb[0].mxu0
    %v1431 = vadd.f32 0.0, %v1430
    %v1432 = vpop.f32.mrb[0].mxu0
    %1433 = vmatprep.mubr.f32.mxu0 0.0
    %1434 = vmatmul.mubr.f32.gmra.mrb[0].mxu0 %v1308
    %v1435 = vpop.f32.mrb[0].mxu0
    %v1436 = vadd.f32 0.0, %v1435
    %v1437 = vpop.f32.mrb[0].mxu0
    %1438 = vmatprep.mubr.f32.mxu0 0.0
    %1439 = vmatmul.mubr.f32.gmra.mrb[0].mxu0 %v1311
    %v1440 = vpop.f32.mrb[0].mxu0
    %v1441 = vadd.f32 0.0, %v1440
    %v1442 = vpop.f32.mrb[0].mxu0
    %1443 = vmatprep.mubr.f32.mxu0 0.0
    %1444 = vmatmul.mubr.f32.gmra.mrb[0].mxu0 %v1314
    %v1445 = vpop.f32.mrb[0].mxu0
    %v1446 = vadd.f32 0.0, %v1445
    %v1447 = vpop.f32.mrb[0].mxu0
    %1448 = vmatprep.mubr.f32.mxu0 0.0
    %1449 = vmatmul.mubr.f32.gmra.mrb[0].mxu0 %v1317
    %v1450 = vpop.f32.mrb[0].mxu0
    %v1451 = vadd.f32 0.0, %v1450
    %v1452 = vpop.f32.mrb[0].mxu0
    %1453 = vmatprep.mubr.f32.mxu0 0.0
    %1454 = vmatmul.mubr.f32.gmra.mrb[0].mxu0 %v1320
    %v1455 = vpop.f32.mrb[0].mxu0
    %v1456 = vadd.f32 0.0, %v1455
    %v1457 = vpop.f32.mrb[0].mxu0
    %1458 = vmatprep.mubr.f32.mxu0 0.0
    %1459 = vmatmul.mubr.f32.gmra.mrb[0].mxu0 %v1323
    %v1460 = vpop.f32.mrb[0].mxu0
    %v1461 = vadd.f32 0.0, %v1460
    %v1462 = vpop.f32.mrb[0].mxu0
    %1463 = vmatprep.mubr.f32.mxu0 0.0
    %1464 = vmatmul.mubr.f32.gmra.mrb[0].mxu0 %v1326
    %v1465 = vpop.f32.mrb[0].mxu0
    %v1466 = vadd.f32 0.0, %v1465
    %v1467 = vpop.f32.mrb[0].mxu0
    %1468 = vmatprep.mubr.f32.mxu0 0.0
    %1469 = vmatmul.mubr.f32.gmra.mrb[0].mxu0 %v1329
    %v1470 = vpop.f32.mrb[0].mxu0
    %v1471 = vadd.f32 0.0, %v1470
    %v1472 = vpop.f32.mrb[0].mxu0
    %1473 = vmatprep.mubr.f32.mxu0 0.0
    %1474 = vmatmul.mubr.f32.gmra.mrb[0].mxu0 %v1332
    %v1475 = vpop.f32.mrb[0].mxu0
    %v1476 = vadd.f32 0.0, %v1475
    %v1477 = vpop.f32.mrb[0].mxu0
    %1478 = vdwg.mxu0
    %v1479 = vadd.f32 %v1249, %v1401
    %v1480 = vadd.f32 %v1250, %v1406
    %v1481 = vadd.f32 %v1251, %v1411
    %v1482 = vadd.f32 %v1252, %v1416
    %v1483 = vadd.f32 %v1253, %v1421
    %v1484 = vadd.f32 %v1254, %v1426
    %v1485 = vadd.f32 %v1255, %v1431
    %v1486 = vadd.f32 %v1256, %v1436
    %v1487 = vadd.f32 %v1257, %v1441
    %v1488 = vadd.f32 %v1258, %v1446
    %v1489 = vadd.f32 %v1259, %v1451
    %v1490 = vadd.f32 %v1260, %v1456
    %v1491 = vadd.f32 %v1261, %v1461
    %v1492 = vadd.f32 %v1262, %v1466
    %v1493 = vadd.f32 %v1263, %v1471
    %v1494 = vadd.f32 %v1264, %v1476
    %v1495 = vld [vmem:[%s579 + $0x1] sm:$0xff]
    %v1496 = vld [vmem:[%s579 + $0x11] sm:$0xff]
    %v1497 = vld [vmem:[%s579 + $0x21] sm:$0xff]
    %v1498 = vld [vmem:[%s579 + $0x31] sm:$0xff]
    %v1499 = vld [vmem:[%s579 + $0x41] sm:$0xff]
    %v1500 = vld [vmem:[%s579 + $0x51] sm:$0xff]
    %v1501 = vld [vmem:[%s579 + $0x61] sm:$0xff]
    %v1502 = vld [vmem:[%s579 + $0x71] sm:$0xff]
    %v1503 = vld [vmem:[%s579 + $0xa1] sm:$0xff]
    %v1504 = vld [vmem:[%s579 + $0xb1] sm:$0xff]
    %v1505 = vld [vmem:[%s579 + $0xc1] sm:$0xff]
    %v1506 = vld [vmem:[%s579 + $0xd1] sm:$0xff]
    %v1507 = vld [vmem:[%s579 + $0xe1] sm:$0xff]
    %v1508 = vld [vmem:[%s579 + $0xf1] sm:$0xff]
    %v1509 = vld [vmem:[%s579 + $0x101] sm:$0xff]
    %v1510 = vld [vmem:[%s579 + $0x111] sm:$0xff]
    %s1511 = scalar_lea.vmem [#allocation5], 128
    %v1512 = vld [vmem:[%s1511] sm:$0xff]
    %v1513 = vld [vmem:[%s1511 + $0x8] sm:$0xff]
    %v1514 = vld [vmem:[%s1511 + $0x10] sm:$0xff]
    %v1515 = vld [vmem:[%s1511 + $0x18] sm:$0xff]
    %v1517 = vsel %vm580, %v1495, 0
    %v1520 = vsel %vm580, %v1496, 0
    %v1523 = vsel %vm580, %v1497, 0
    %v1526 = vsel %vm580, %v1498, 0
    %v1529 = vsel %vm580, %v1499, 0
    %v1532 = vsel %vm580, %v1500, 0
    %v1535 = vsel %vm580, %v1501, 0
    %v1538 = vsel %vm580, %v1502, 0
    %v1541 = vsel %vm580, %v1503, 0
    %v1544 = vsel %vm580, %v1504, 0
    %v1547 = vsel %vm580, %v1505, 0
    %v1550 = vsel %vm580, %v1506, 0
    %v1553 = vsel %vm580, %v1507, 0
    %v1556 = vsel %vm580, %v1508, 0
    %v1559 = vsel %vm580, %v1509, 0
    %v1562 = vsel %vm580, %v1510, 0
    %1564 = vmatprep.subr.mxu0 0.0
    %1565 = vmatpush1.msra.mxu0 %v1512
    %1566 = vmatprep.subr.mxu0 0.0
    %1567 = vmatpush1.msra.mxu0 %v1513
    %1568 = vmatprep.subr.mxu0 0.0
    %1569 = vmatpush1.msra.mxu0 %v1514
    %1570 = vmatprep.subr.mxu0 0.0
    %1571 = vmatpush1.msra.mxu0 %v1515
    %1572 = vmatprep.subr.mxu0 0.0
    %1573 = vmatpush1.msra.mxu0 0.0
    %1574 = vmatprep.subr.mxu0 0.0
    %1575 = vmatpush1.msra.mxu0 0.0
    %1576 = vmatprep.subr.mxu0 0.0
    %1577 = vmatpush1.msra.mxu0 0.0
    %1578 = vmatprep.subr.mxu0 0.0
    %1579 = vmatpush1.msra.mxu0 0.0
    %1580 = vmatprep.subr.mxu0 0.0
    %1581 = vmatpush1.msra.mxu0 0.0
    %1582 = vmatprep.subr.mxu0 0.0
    %1583 = vmatpush1.msra.mxu0 0.0
    %1584 = vmatprep.subr.mxu0 0.0
    %1585 = vmatpush1.msra.mxu0 0.0
    %1586 = vmatprep.subr.mxu0 0.0
    %1587 = vmatpush1.msra.mxu0 0.0
    %1588 = vmatprep.subr.mxu0 0.0
    %1589 = vmatpush1.msra.mxu0 0.0
    %1590 = vmatprep.subr.mxu0 0.0
    %1591 = vmatpush1.msra.mxu0 0.0
    %1592 = vmatprep.subr.mxu0 0.0
    %1593 = vmatpush1.msra.mxu0 0.0
    %1594 = vmatprep.subr.mxu0 0.0
    %1595 = vmatpush1.msra.mxu0 0.0
    %1596 = vmatprep.subr.mxu0 0.0
    %1597 = vmatpush1.msra.mxu0 0.0
    %1598 = vmatprep.subr.mxu0 0.0
    %1599 = vmatpush1.msra.mxu0 0.0
    %1600 = vmatprep.subr.mxu0 0.0
    %1601 = vmatpush1.msra.mxu0 0.0
    %1602 = vmatprep.subr.mxu0 0.0
    %1603 = vmatpush1.msra.mxu0 0.0
    %1604 = vmatprep.subr.mxu0 0.0
    %1605 = vmatpush1.msra.mxu0 0.0
    %1606 = vmatprep.subr.mxu0 0.0
    %1607 = vmatpush1.msra.mxu0 0.0
    %1608 = vmatprep.subr.mxu0 0.0
    %1609 = vmatpush1.msra.mxu0 0.0
    %1610 = vmatprep.subr.mxu0 0.0
    %1611 = vmatpush1.msra.mxu0 0.0
    %1612 = vmatprep.subr.mxu0 0.0
    %1613 = vmatpush1.msra.mxu0 0.0
    %1614 = vmatprep.subr.mxu0 0.0
    %1615 = vmatpush1.msra.mxu0 0.0
    %1616 = vmatprep.subr.mxu0 0.0
    %1617 = vmatpush1.msra.mxu0 0.0
    %1618 = vmatprep.subr.mxu0 0.0
    %1619 = vmatpush1.msra.mxu0 0.0
    %1620 = vmatprep.subr.mxu0 0.0
    %1621 = vmatpush1.msra.mxu0 0.0
    %1622 = vmatprep.subr.mxu0 0.0
    %1623 = vmatpush1.msra.mxu0 0.0
    %1624 = vmatprep.subr.mxu0 0.0
    %1625 = vmatpush1.msra.mxu0 0.0
    %1626 = vmatprep.subr.mxu0 0.0
    %1627 = vmatpush1.msra.mxu0 0.0
    %1628 = vmatprep.mubr.f32.mxu0 0.0
    %1629 = vmatmul.mubr.f32.gmra.mrb[0].mxu0 %v1517
    %v1630 = vpop.f32.mrb[0].mxu0
    %v1631 = vadd.f32 0.0, %v1630
    %v1632 = vpop.f32.mrb[0].mxu0
    %1633 = vmatprep.mubr.f32.mxu0 0.0
    %1634 = vmatmul.mubr.f32.gmra.mrb[0].mxu0 %v1520
    %v1635 = vpop.f32.mrb[0].mxu0
    %v1636 = vadd.f32 0.0, %v1635
    %v1637 = vpop.f32.mrb[0].mxu0
    %1638 = vmatprep.mubr.f32.mxu0 0.0
    %1639 = vmatmul.mubr.f32.gmra.mrb[0].mxu0 %v1523
    %v1640 = vpop.f32.mrb[0].mxu0
    %v1641 = vadd.f32 0.0, %v1640
    %v1642 = vpop.f32.mrb[0].mxu0
    %1643 = vmatprep.mubr.f32.mxu0 0.0
    %1644 = vmatmul.mubr.f32.gmra.mrb[0].mxu0 %v1526
    %v1645 = vpop.f32.mrb[0].mxu0
    %v1646 = vadd.f32 0.0, %v1645
    %v1647 = vpop.f32.mrb[0].mxu0
    %1648 = vmatprep.mubr.f32.mxu0 0.0
    %1649 = vmatmul.mubr.f32.gmra.mrb[0].mxu0 %v1529
    %v1650 = vpop.f32.mrb[0].mxu0
    %v1651 = vadd.f32 0.0, %v1650
    %v1652 = vpop.f32.mrb[0].mxu0
    %1653 = vmatprep.mubr.f32.mxu0 0.0
    %1654 = vmatmul.mubr.f32.gmra.mrb[0].mxu0 %v1532
    %v1655 = vpop.f32.mrb[0].mxu0
    %v1656 = vadd.f32 0.0, %v1655
    %v1657 = vpop.f32.mrb[0].mxu0
    %1658 = vmatprep.mubr.f32.mxu0 0.0
    %1659 = vmatmul.mubr.f32.gmra.mrb[0].mxu0 %v1535
    %v1660 = vpop.f32.mrb[0].mxu0
    %v1661 = vadd.f32 0.0, %v1660
    %v1662 = vpop.f32.mrb[0].mxu0
    %1663 = vmatprep.mubr.f32.mxu0 0.0
    %1664 = vmatmul.mubr.f32.gmra.mrb[0].mxu0 %v1538
    %v1665 = vpop.f32.mrb[0].mxu0
    %v1666 = vadd.f32 0.0, %v1665
    %v1667 = vpop.f32.mrb[0].mxu0
    %1668 = vmatprep.mubr.f32.mxu0 0.0
    %1669 = vmatmul.mubr.f32.gmra.mrb[0].mxu0 %v1541
    %v1670 = vpop.f32.mrb[0].mxu0
    %v1671 = vadd.f32 0.0, %v1670
    %v1672 = vpop.f32.mrb[0].mxu0
    %1673 = vmatprep.mubr.f32.mxu0 0.0
    %1674 = vmatmul.mubr.f32.gmra.mrb[0].mxu0 %v1544
    %v1675 = vpop.f32.mrb[0].mxu0
    %v1676 = vadd.f32 0.0, %v1675
    %v1677 = vpop.f32.mrb[0].mxu0
    %1678 = vmatprep.mubr.f32.mxu0 0.0
    %1679 = vmatmul.mubr.f32.gmra.mrb[0].mxu0 %v1547
    %v1680 = vpop.f32.mrb[0].mxu0
    %v1681 = vadd.f32 0.0, %v1680
    %v1682 = vpop.f32.mrb[0].mxu0
    %1683 = vmatprep.mubr.f32.mxu0 0.0
    %1684 = vmatmul.mubr.f32.gmra.mrb[0].mxu0 %v1550
    %v1685 = vpop.f32.mrb[0].mxu0
    %v1686 = vadd.f32 0.0, %v1685
    %v1687 = vpop.f32.mrb[0].mxu0
    %1688 = vmatprep.mubr.f32.mxu0 0.0
    %1689 = vmatmul.mubr.f32.gmra.mrb[0].mxu0 %v1553
    %v1690 = vpop.f32.mrb[0].mxu0
    %v1691 = vadd.f32 0.0, %v1690
    %v1692 = vpop.f32.mrb[0].mxu0
    %1693 = vmatprep.mubr.f32.mxu0 0.0
    %1694 = vmatmul.mubr.f32.gmra.mrb[0].mxu0 %v1556
    %v1695 = vpop.f32.mrb[0].mxu0
    %v1696 = vadd.f32 0.0, %v1695
    %v1697 = vpop.f32.mrb[0].mxu0
    %1698 = vmatprep.mubr.f32.mxu0 0.0
    %1699 = vmatmul.mubr.f32.gmra.mrb[0].mxu0 %v1559
    %v1700 = vpop.f32.mrb[0].mxu0
    %v1701 = vadd.f32 0.0, %v1700
    %v1702 = vpop.f32.mrb[0].mxu0
    %1703 = vmatprep.mubr.f32.mxu0 0.0
    %1704 = vmatmul.mubr.f32.gmra.mrb[0].mxu0 %v1562
    %v1705 = vpop.f32.mrb[0].mxu0
    %v1706 = vadd.f32 0.0, %v1705
    %v1707 = vpop.f32.mrb[0].mxu0
    %1708 = vdwg.mxu0
    %v1709 = vadd.f32 %v1479, %v1631
    %v1710 = vadd.f32 %v1480, %v1636
    %v1711 = vadd.f32 %v1481, %v1641
    %v1712 = vadd.f32 %v1482, %v1646
    %v1713 = vadd.f32 %v1483, %v1651
    %v1714 = vadd.f32 %v1484, %v1656
    %v1715 = vadd.f32 %v1485, %v1661
    %v1716 = vadd.f32 %v1486, %v1666
    %v1717 = vadd.f32 %v1487, %v1671
    %v1718 = vadd.f32 %v1488, %v1676
    %v1719 = vadd.f32 %v1489, %v1681
    %v1720 = vadd.f32 %v1490, %v1686
    %v1721 = vadd.f32 %v1491, %v1691
    %v1722 = vadd.f32 %v1492, %v1696
    %v1723 = vadd.f32 %v1493, %v1701
    %v1724 = vadd.f32 %v1494, %v1706
    %v1725 = vld [vmem:[%s579 + $0x2] sm:$0xff]
    %v1726 = vld [vmem:[%s579 + $0x12] sm:$0xff]
    %v1727 = vld [vmem:[%s579 + $0x22] sm:$0xff]
    %v1728 = vld [vmem:[%s579 + $0x32] sm:$0xff]
    %v1729 = vld [vmem:[%s579 + $0x42] sm:$0xff]
    %v1730 = vld [vmem:[%s579 + $0x52] sm:$0xff]
    %v1731 = vld [vmem:[%s579 + $0x62] sm:$0xff]
    %v1732 = vld [vmem:[%s579 + $0x72] sm:$0xff]
    %v1733 = vld [vmem:[%s579 + $0xa2] sm:$0xff]
    %v1734 = vld [vmem:[%s579 + $0xb2] sm:$0xff]
    %v1735 = vld [vmem:[%s579 + $0xc2] sm:$0xff]
    %v1736 = vld [vmem:[%s579 + $0xd2] sm:$0xff]
    %v1737 = vld [vmem:[%s579 + $0xe2] sm:$0xff]
    %v1738 = vld [vmem:[%s579 + $0xf2] sm:$0xff]
    %v1739 = vld [vmem:[%s579 + $0x102] sm:$0xff]
    %v1740 = vld [vmem:[%s579 + $0x112] sm:$0xff]
    %s1741 = scalar_lea.vmem [#allocation5], 160
    %v1742 = vld [vmem:[%s1741] sm:$0xff]
    %v1743 = vld [vmem:[%s1741 + $0x8] sm:$0xff]
    %v1744 = vld [vmem:[%s1741 + $0x10] sm:$0xff]
    %v1745 = vld [vmem:[%s1741 + $0x18] sm:$0xff]
    %v1747 = vsel %vm580, %v1725, 0
    %v1750 = vsel %vm580, %v1726, 0
    %v1753 = vsel %vm580, %v1727, 0
    %v1756 = vsel %vm580, %v1728, 0
    %v1759 = vsel %vm580, %v1729, 0
    %v1762 = vsel %vm580, %v1730, 0
    %v1765 = vsel %vm580, %v1731, 0
    %v1768 = vsel %vm580, %v1732, 0
    %v1771 = vsel %vm580, %v1733, 0
    %v1774 = vsel %vm580, %v1734, 0
    %v1777 = vsel %vm580, %v1735, 0
    %v1780 = vsel %vm580, %v1736, 0
    %v1783 = vsel %vm580, %v1737, 0
    %v1786 = vsel %vm580, %v1738, 0
    %v1789 = vsel %vm580, %v1739, 0
    %v1792 = vsel %vm580, %v1740, 0
    %1794 = vmatprep.subr.mxu0 0.0
    %1795 = vmatpush1.msra.mxu0 %v1742
    %1796 = vmatprep.subr.mxu0 0.0
    %1797 = vmatpush1.msra.mxu0 %v1743
    %1798 = vmatprep.subr.mxu0 0.0
    %1799 = vmatpush1.msra.mxu0 %v1744
    %1800 = vmatprep.subr.mxu0 0.0
    %1801 = vmatpush1.msra.mxu0 %v1745
    %1802 = vmatprep.subr.mxu0 0.0
    %1803 = vmatpush1.msra.mxu0 0.0
    %1804 = vmatprep.subr.mxu0 0.0
    %1805 = vmatpush1.msra.mxu0 0.0
    %1806 = vmatprep.subr.mxu0 0.0
    %1807 = vmatpush1.msra.mxu0 0.0
    %1808 = vmatprep.subr.mxu0 0.0
    %1809 = vmatpush1.msra.mxu0 0.0
    %1810 = vmatprep.subr.mxu0 0.0
    %1811 = vmatpush1.msra.mxu0 0.0
    %1812 = vmatprep.subr.mxu0 0.0
    %1813 = vmatpush1.msra.mxu0 0.0
    %1814 = vmatprep.subr.mxu0 0.0
    %1815 = vmatpush1.msra.mxu0 0.0
    %1816 = vmatprep.subr.mxu0 0.0
    %1817 = vmatpush1.msra.mxu0 0.0
    %1818 = vmatprep.subr.mxu0 0.0
    %1819 = vmatpush1.msra.mxu0 0.0
    %1820 = vmatprep.subr.mxu0 0.0
    %1821 = vmatpush1.msra.mxu0 0.0
    %1822 = vmatprep.subr.mxu0 0.0
    %1823 = vmatpush1.msra.mxu0 0.0
    %1824 = vmatprep.subr.mxu0 0.0
    %1825 = vmatpush1.msra.mxu0 0.0
    %1826 = vmatprep.subr.mxu0 0.0
    %1827 = vmatpush1.msra.mxu0 0.0
    %1828 = vmatprep.subr.mxu0 0.0
    %1829 = vmatpush1.msra.mxu0 0.0
    %1830 = vmatprep.subr.mxu0 0.0
    %1831 = vmatpush1.msra.mxu0 0.0
    %1832 = vmatprep.subr.mxu0 0.0
    %1833 = vmatpush1.msra.mxu0 0.0
    %1834 = vmatprep.subr.mxu0 0.0
    %1835 = vmatpush1.msra.mxu0 0.0
    %1836 = vmatprep.subr.mxu0 0.0
    %1837 = vmatpush1.msra.mxu0 0.0
    %1838 = vmatprep.subr.mxu0 0.0
    %1839 = vmatpush1.msra.mxu0 0.0
    %1840 = vmatprep.subr.mxu0 0.0
    %1841 = vmatpush1.msra.mxu0 0.0
    %1842 = vmatprep.subr.mxu0 0.0
    %1843 = vmatpush1.msra.mxu0 0.0
    %1844 = vmatprep.subr.mxu0 0.0
    %1845 = vmatpush1.msra.mxu0 0.0
    %1846 = vmatprep.subr.mxu0 0.0
    %1847 = vmatpush1.msra.mxu0 0.0
    %1848 = vmatprep.subr.mxu0 0.0
    %1849 = vmatpush1.msra.mxu0 0.0
    %1850 = vmatprep.subr.mxu0 0.0
    %1851 = vmatpush1.msra.mxu0 0.0
    %1852 = vmatprep.subr.mxu0 0.0
    %1853 = vmatpush1.msra.mxu0 0.0
    %1854 = vmatprep.subr.mxu0 0.0
    %1855 = vmatpush1.msra.mxu0 0.0
    %1856 = vmatprep.subr.mxu0 0.0
    %1857 = vmatpush1.msra.mxu0 0.0
    %1858 = vmatprep.mubr.f32.mxu0 0.0
    %1859 = vmatmul.mubr.f32.gmra.mrb[0].mxu0 %v1747
    %v1860 = vpop.f32.mrb[0].mxu0
    %v1861 = vadd.f32 0.0, %v1860
    %v1862 = vpop.f32.mrb[0].mxu0
    %1863 = vmatprep.mubr.f32.mxu0 0.0
    %1864 = vmatmul.mubr.f32.gmra.mrb[0].mxu0 %v1750
    %v1865 = vpop.f32.mrb[0].mxu0
    %v1866 = vadd.f32 0.0, %v1865
    %v1867 = vpop.f32.mrb[0].mxu0
    %1868 = vmatprep.mubr.f32.mxu0 0.0
    %1869 = vmatmul.mubr.f32.gmra.mrb[0].mxu0 %v1753
    %v1870 = vpop.f32.mrb[0].mxu0
    %v1871 = vadd.f32 0.0, %v1870
    %v1872 = vpop.f32.mrb[0].mxu0
    %1873 = vmatprep.mubr.f32.mxu0 0.0
    %1874 = vmatmul.mubr.f32.gmra.mrb[0].mxu0 %v1756
    %v1875 = vpop.f32.mrb[0].mxu0
    %v1876 = vadd.f32 0.0, %v1875
    %v1877 = vpop.f32.mrb[0].mxu0
    %1878 = vmatprep.mubr.f32.mxu0 0.0
    %1879 = vmatmul.mubr.f32.gmra.mrb[0].mxu0 %v1759
    %v1880 = vpop.f32.mrb[0].mxu0
    %v1881 = vadd.f32 0.0, %v1880
    %v1882 = vpop.f32.mrb[0].mxu0
    %1883 = vmatprep.mubr.f32.mxu0 0.0
    %1884 = vmatmul.mubr.f32.gmra.mrb[0].mxu0 %v1762
    %v1885 = vpop.f32.mrb[0].mxu0
    %v1886 = vadd.f32 0.0, %v1885
    %v1887 = vpop.f32.mrb[0].mxu0
    %1888 = vmatprep.mubr.f32.mxu0 0.0
    %1889 = vmatmul.mubr.f32.gmra.mrb[0].mxu0 %v1765
    %v1890 = vpop.f32.mrb[0].mxu0
    %v1891 = vadd.f32 0.0, %v1890
    %v1892 = vpop.f32.mrb[0].mxu0
    %1893 = vmatprep.mubr.f32.mxu0 0.0
    %1894 = vmatmul.mubr.f32.gmra.mrb[0].mxu0 %v1768
    %v1895 = vpop.f32.mrb[0].mxu0
    %v1896 = vadd.f32 0.0, %v1895
    %v1897 = vpop.f32.mrb[0].mxu0
    %1898 = vmatprep.mubr.f32.mxu0 0.0
    %1899 = vmatmul.mubr.f32.gmra.mrb[0].mxu0 %v1771
    %v1900 = vpop.f32.mrb[0].mxu0
    %v1901 = vadd.f32 0.0, %v1900
    %v1902 = vpop.f32.mrb[0].mxu0
    %1903 = vmatprep.mubr.f32.mxu0 0.0
    %1904 = vmatmul.mubr.f32.gmra.mrb[0].mxu0 %v1774
    %v1905 = vpop.f32.mrb[0].mxu0
    %v1906 = vadd.f32 0.0, %v1905
    %v1907 = vpop.f32.mrb[0].mxu0
    %1908 = vmatprep.mubr.f32.mxu0 0.0
    %1909 = vmatmul.mubr.f32.gmra.mrb[0].mxu0 %v1777
    %v1910 = vpop.f32.mrb[0].mxu0
    %v1911 = vadd.f32 0.0, %v1910
    %v1912 = vpop.f32.mrb[0].mxu0
    %1913 = vmatprep.mubr.f32.mxu0 0.0
    %1914 = vmatmul.mubr.f32.gmra.mrb[0].mxu0 %v1780
    %v1915 = vpop.f32.mrb[0].mxu0
    %v1916 = vadd.f32 0.0, %v1915
    %v1917 = vpop.f32.mrb[0].mxu0
    %1918 = vmatprep.mubr.f32.mxu0 0.0
    %1919 = vmatmul.mubr.f32.gmra.mrb[0].mxu0 %v1783
    %v1920 = vpop.f32.mrb[0].mxu0
    %v1921 = vadd.f32 0.0, %v1920
    %v1922 = vpop.f32.mrb[0].mxu0
    %1923 = vmatprep.mubr.f32.mxu0 0.0
    %1924 = vmatmul.mubr.f32.gmra.mrb[0].mxu0 %v1786
    %v1925 = vpop.f32.mrb[0].mxu0
    %v1926 = vadd.f32 0.0, %v1925
    %v1927 = vpop.f32.mrb[0].mxu0
    %1928 = vmatprep.mubr.f32.mxu0 0.0
    %1929 = vmatmul.mubr.f32.gmra.mrb[0].mxu0 %v1789
    %v1930 = vpop.f32.mrb[0].mxu0
    %v1931 = vadd.f32 0.0, %v1930
    %v1932 = vpop.f32.mrb[0].mxu0
    %1933 = vmatprep.mubr.f32.mxu0 0.0
    %1934 = vmatmul.mubr.f32.gmra.mrb[0].mxu0 %v1792
    %v1935 = vpop.f32.mrb[0].mxu0
    %v1936 = vadd.f32 0.0, %v1935
    %v1937 = vpop.f32.mrb[0].mxu0
    %1938 = vdwg.mxu0
    %v1939 = vadd.f32 %v1709, %v1861
    %v1940 = vadd.f32 %v1710, %v1866
    %v1941 = vadd.f32 %v1711, %v1871
    %v1942 = vadd.f32 %v1712, %v1876
    %v1943 = vadd.f32 %v1713, %v1881
    %v1944 = vadd.f32 %v1714, %v1886
    %v1945 = vadd.f32 %v1715, %v1891
    %v1946 = vadd.f32 %v1716, %v1896
    %v1947 = vadd.f32 %v1717, %v1901
    %v1948 = vadd.f32 %v1718, %v1906
    %v1949 = vadd.f32 %v1719, %v1911
    %v1950 = vadd.f32 %v1720, %v1916
    %v1951 = vadd.f32 %v1721, %v1921
    %v1952 = vadd.f32 %v1722, %v1926
    %v1953 = vadd.f32 %v1723, %v1931
    %v1954 = vadd.f32 %v1724, %v1936
    %s1955 = scalar_lea.vmem [#allocation2], 32
    %v1956 = vld [vmem:[%s1955] sm:$0xff]
    %v1957 = vld [vmem:[%s1955 + $0x10] sm:$0xff]
    %v1958 = vld [vmem:[%s1955 + $0x20] sm:$0xff]
    %v1959 = vld [vmem:[%s1955 + $0x30] sm:$0xff]
    %v1960 = vld [vmem:[%s1955 + $0x40] sm:$0xff]
    %v1961 = vld [vmem:[%s1955 + $0x50] sm:$0xff]
    %v1962 = vld [vmem:[%s1955 + $0x60] sm:$0xff]
    %v1963 = vld [vmem:[%s1955 + $0x70] sm:$0xff]
    %v1964 = vld [vmem:[%s1955 + $0xa0] sm:$0xff]
    %v1965 = vld [vmem:[%s1955 + $0xb0] sm:$0xff]
    %v1966 = vld [vmem:[%s1955 + $0xc0] sm:$0xff]
    %v1967 = vld [vmem:[%s1955 + $0xd0] sm:$0xff]
    %v1968 = vld [vmem:[%s1955 + $0xe0] sm:$0xff]
    %v1969 = vld [vmem:[%s1955 + $0xf0] sm:$0xff]
    %v1970 = vld [vmem:[%s1955 + $0x100] sm:$0xff]
    %v1971 = vld [vmem:[%s1955 + $0x110] sm:$0xff]
    %s1972 = scalar_lea.vmem [#allocation5], 192
    %v1973 = vld [vmem:[%s1972] sm:$0xff]
    %v1974 = vld [vmem:[%s1972 + $0x8] sm:$0xff]
    %v1975 = vld [vmem:[%s1972 + $0x10] sm:$0xff]
    %v1976 = vld [vmem:[%s1972 + $0x18] sm:$0xff]
    %v1978 = vsel %vm580, %v1956, 0
    %v1981 = vsel %vm580, %v1957, 0
    %v1984 = vsel %vm580, %v1958, 0
    %v1987 = vsel %vm580, %v1959, 0
    %v1990 = vsel %vm580, %v1960, 0
    %v1993 = vsel %vm580, %v1961, 0
    %v1996 = vsel %vm580, %v1962, 0
    %v1999 = vsel %vm580, %v1963, 0
    %v2002 = vsel %vm580, %v1964, 0
    %v2005 = vsel %vm580, %v1965, 0
    %v2008 = vsel %vm580, %v1966, 0
    %v2011 = vsel %vm580, %v1967, 0
    %v2014 = vsel %vm580, %v1968, 0
    %v2017 = vsel %vm580, %v1969, 0
    %v2020 = vsel %vm580, %v1970, 0
    %v2023 = vsel %vm580, %v1971, 0
    %2025 = vmatprep.subr.mxu0 0.0
    %2026 = vmatpush1.msra.mxu0 %v1973
    %2027 = vmatprep.subr.mxu0 0.0
    %2028 = vmatpush1.msra.mxu0 %v1974
    %2029 = vmatprep.subr.mxu0 0.0
    %2030 = vmatpush1.msra.mxu0 %v1975
    %2031 = vmatprep.subr.mxu0 0.0
    %2032 = vmatpush1.msra.mxu0 %v1976
    %2033 = vmatprep.subr.mxu0 0.0
    %2034 = vmatpush1.msra.mxu0 0.0
    %2035 = vmatprep.subr.mxu0 0.0
    %2036 = vmatpush1.msra.mxu0 0.0
    %2037 = vmatprep.subr.mxu0 0.0
    %2038 = vmatpush1.msra.mxu0 0.0
    %2039 = vmatprep.subr.mxu0 0.0
    %2040 = vmatpush1.msra.mxu0 0.0
    %2041 = vmatprep.subr.mxu0 0.0
    %2042 = vmatpush1.msra.mxu0 0.0
    %2043 = vmatprep.subr.mxu0 0.0
    %2044 = vmatpush1.msra.mxu0 0.0
    %2045 = vmatprep.subr.mxu0 0.0
    %2046 = vmatpush1.msra.mxu0 0.0
    %2047 = vmatprep.subr.mxu0 0.0
    %2048 = vmatpush1.msra.mxu0 0.0
    %2049 = vmatprep.subr.mxu0 0.0
    %2050 = vmatpush1.msra.mxu0 0.0
    %2051 = vmatprep.subr.mxu0 0.0
    %2052 = vmatpush1.msra.mxu0 0.0
    %2053 = vmatprep.subr.mxu0 0.0
    %2054 = vmatpush1.msra.mxu0 0.0
    %2055 = vmatprep.subr.mxu0 0.0
    %2056 = vmatpush1.msra.mxu0 0.0
    %2057 = vmatprep.subr.mxu0 0.0
    %2058 = vmatpush1.msra.mxu0 0.0
    %2059 = vmatprep.subr.mxu0 0.0
    %2060 = vmatpush1.msra.mxu0 0.0
    %2061 = vmatprep.subr.mxu0 0.0
    %2062 = vmatpush1.msra.mxu0 0.0
    %2063 = vmatprep.subr.mxu0 0.0
    %2064 = vmatpush1.msra.mxu0 0.0
    %2065 = vmatprep.subr.mxu0 0.0
    %2066 = vmatpush1.msra.mxu0 0.0
    %2067 = vmatprep.subr.mxu0 0.0
    %2068 = vmatpush1.msra.mxu0 0.0
    %2069 = vmatprep.subr.mxu0 0.0
    %2070 = vmatpush1.msra.mxu0 0.0
    %2071 = vmatprep.subr.mxu0 0.0
    %2072 = vmatpush1.msra.mxu0 0.0
    %2073 = vmatprep.subr.mxu0 0.0
    %2074 = vmatpush1.msra.mxu0 0.0
    %2075 = vmatprep.subr.mxu0 0.0
    %2076 = vmatpush1.msra.mxu0 0.0
    %2077 = vmatprep.subr.mxu0 0.0
    %2078 = vmatpush1.msra.mxu0 0.0
    %2079 = vmatprep.subr.mxu0 0.0
    %2080 = vmatpush1.msra.mxu0 0.0
    %2081 = vmatprep.subr.mxu0 0.0
    %2082 = vmatpush1.msra.mxu0 0.0
    %2083 = vmatprep.subr.mxu0 0.0
    %2084 = vmatpush1.msra.mxu0 0.0
    %2085 = vmatprep.subr.mxu0 0.0
    %2086 = vmatpush1.msra.mxu0 0.0
    %2087 = vmatprep.subr.mxu0 0.0
    %2088 = vmatpush1.msra.mxu0 0.0
    %2089 = vmatprep.mubr.f32.mxu0 0.0
    %2090 = vmatmul.mubr.f32.gmra.mrb[0].mxu0 %v1978
    %v2091 = vpop.f32.mrb[0].mxu0
    %v2092 = vadd.f32 0.0, %v2091
    %v2093 = vpop.f32.mrb[0].mxu0
    %2094 = vmatprep.mubr.f32.mxu0 0.0
    %2095 = vmatmul.mubr.f32.gmra.mrb[0].mxu0 %v1981
    %v2096 = vpop.f32.mrb[0].mxu0
    %v2097 = vadd.f32 0.0, %v2096
    %v2098 = vpop.f32.mrb[0].mxu0
    %2099 = vmatprep.mubr.f32.mxu0 0.0
    %2100 = vmatmul.mubr.f32.gmra.mrb[0].mxu0 %v1984
    %v2101 = vpop.f32.mrb[0].mxu0
    %v2102 = vadd.f32 0.0, %v2101
    %v2103 = vpop.f32.mrb[0].mxu0
    %2104 = vmatprep.mubr.f32.mxu0 0.0
    %2105 = vmatmul.mubr.f32.gmra.mrb[0].mxu0 %v1987
    %v2106 = vpop.f32.mrb[0].mxu0
    %v2107 = vadd.f32 0.0, %v2106
    %v2108 = vpop.f32.mrb[0].mxu0
    %2109 = vmatprep.mubr.f32.mxu0 0.0
    %2110 = vmatmul.mubr.f32.gmra.mrb[0].mxu0 %v1990
    %v2111 = vpop.f32.mrb[0].mxu0
    %v2112 = vadd.f32 0.0, %v2111
    %v2113 = vpop.f32.mrb[0].mxu0
    %2114 = vmatprep.mubr.f32.mxu0 0.0
    %2115 = vmatmul.mubr.f32.gmra.mrb[0].mxu0 %v1993
    %v2116 = vpop.f32.mrb[0].mxu0
    %v2117 = vadd.f32 0.0, %v2116
    %v2118 = vpop.f32.mrb[0].mxu0
    %2119 = vmatprep.mubr.f32.mxu0 0.0
    %2120 = vmatmul.mubr.f32.gmra.mrb[0].mxu0 %v1996
    %v2121 = vpop.f32.mrb[0].mxu0
    %v2122 = vadd.f32 0.0, %v2121
    %v2123 = vpop.f32.mrb[0].mxu0
    %2124 = vmatprep.mubr.f32.mxu0 0.0
    %2125 = vmatmul.mubr.f32.gmra.mrb[0].mxu0 %v1999
    %v2126 = vpop.f32.mrb[0].mxu0
    %v2127 = vadd.f32 0.0, %v2126
    %v2128 = vpop.f32.mrb[0].mxu0
    %2129 = vmatprep.mubr.f32.mxu0 0.0
    %2130 = vmatmul.mubr.f32.gmra.mrb[0].mxu0 %v2002
    %v2131 = vpop.f32.mrb[0].mxu0
    %v2132 = vadd.f32 0.0, %v2131
    %v2133 = vpop.f32.mrb[0].mxu0
    %2134 = vmatprep.mubr.f32.mxu0 0.0
    %2135 = vmatmul.mubr.f32.gmra.mrb[0].mxu0 %v2005
    %v2136 = vpop.f32.mrb[0].mxu0
    %v2137 = vadd.f32 0.0, %v2136
    %v2138 = vpop.f32.mrb[0].mxu0
    %2139 = vmatprep.mubr.f32.mxu0 0.0
    %2140 = vmatmul.mubr.f32.gmra.mrb[0].mxu0 %v2008
    %v2141 = vpop.f32.mrb[0].mxu0
    %v2142 = vadd.f32 0.0, %v2141
    %v2143 = vpop.f32.mrb[0].mxu0
    %2144 = vmatprep.mubr.f32.mxu0 0.0
    %2145 = vmatmul.mubr.f32.gmra.mrb[0].mxu0 %v2011
    %v2146 = vpop.f32.mrb[0].mxu0
    %v2147 = vadd.f32 0.0, %v2146
    %v2148 = vpop.f32.mrb[0].mxu0
    %2149 = vmatprep.mubr.f32.mxu0 0.0
    %2150 = vmatmul.mubr.f32.gmra.mrb[0].mxu0 %v2014
    %v2151 = vpop.f32.mrb[0].mxu0
    %v2152 = vadd.f32 0.0, %v2151
    %v2153 = vpop.f32.mrb[0].mxu0
    %2154 = vmatprep.mubr.f32.mxu0 0.0
    %2155 = vmatmul.mubr.f32.gmra.mrb[0].mxu0 %v2017
    %v2156 = vpop.f32.mrb[0].mxu0
    %v2157 = vadd.f32 0.0, %v2156
    %v2158 = vpop.f32.mrb[0].mxu0
    %2159 = vmatprep.mubr.f32.mxu0 0.0
    %2160 = vmatmul.mubr.f32.gmra.mrb[0].mxu0 %v2020
    %v2161 = vpop.f32.mrb[0].mxu0
    %v2162 = vadd.f32 0.0, %v2161
    %v2163 = vpop.f32.mrb[0].mxu0
    %2164 = vmatprep.mubr.f32.mxu0 0.0
    %2165 = vmatmul.mubr.f32.gmra.mrb[0].mxu0 %v2023
    %v2166 = vpop.f32.mrb[0].mxu0
    %v2167 = vadd.f32 0.0, %v2166
    %v2168 = vpop.f32.mrb[0].mxu0
    %2169 = vdwg.mxu0
    %v2170 = vadd.f32 %v1939, %v2092
    %v2171 = vadd.f32 %v1940, %v2097
    %v2172 = vadd.f32 %v1941, %v2102
    %v2173 = vadd.f32 %v1942, %v2107
    %v2174 = vadd.f32 %v1943, %v2112
    %v2175 = vadd.f32 %v1944, %v2117
    %v2176 = vadd.f32 %v1945, %v2122
    %v2177 = vadd.f32 %v1946, %v2127
    %v2178 = vadd.f32 %v1947, %v2132
    %v2179 = vadd.f32 %v1948, %v2137
    %v2180 = vadd.f32 %v1949, %v2142
    %v2181 = vadd.f32 %v1950, %v2147
    %v2182 = vadd.f32 %v1951, %v2152
    %v2183 = vadd.f32 %v1952, %v2157
    %v2184 = vadd.f32 %v1953, %v2162
    %v2185 = vadd.f32 %v1954, %v2167
    %v2186 = vld [vmem:[%s1955 + $0x1] sm:$0xff]
    %v2187 = vld [vmem:[%s1955 + $0x11] sm:$0xff]
    %v2188 = vld [vmem:[%s1955 + $0x21] sm:$0xff]
    %v2189 = vld [vmem:[%s1955 + $0x31] sm:$0xff]
    %v2190 = vld [vmem:[%s1955 + $0x41] sm:$0xff]
    %v2191 = vld [vmem:[%s1955 + $0x51] sm:$0xff]
    %v2192 = vld [vmem:[%s1955 + $0x61] sm:$0xff]
    %v2193 = vld [vmem:[%s1955 + $0x71] sm:$0xff]
    %v2194 = vld [vmem:[%s1955 + $0xa1] sm:$0xff]
    %v2195 = vld [vmem:[%s1955 + $0xb1] sm:$0xff]
    %v2196 = vld [vmem:[%s1955 + $0xc1] sm:$0xff]
    %v2197 = vld [vmem:[%s1955 + $0xd1] sm:$0xff]
    %v2198 = vld [vmem:[%s1955 + $0xe1] sm:$0xff]
    %v2199 = vld [vmem:[%s1955 + $0xf1] sm:$0xff]
    %v2200 = vld [vmem:[%s1955 + $0x101] sm:$0xff]
    %v2201 = vld [vmem:[%s1955 + $0x111] sm:$0xff]
    %s2202 = scalar_lea.vmem [#allocation5], 224
    %v2203 = vld [vmem:[%s2202] sm:$0xff]
    %v2204 = vld [vmem:[%s2202 + $0x8] sm:$0xff]
    %v2205 = vld [vmem:[%s2202 + $0x10] sm:$0xff]
    %v2206 = vld [vmem:[%s2202 + $0x18] sm:$0xff]
    %v2208 = vsel %vm580, %v2186, 0
    %v2211 = vsel %vm580, %v2187, 0
    %v2214 = vsel %vm580, %v2188, 0
    %v2217 = vsel %vm580, %v2189, 0
    %v2220 = vsel %vm580, %v2190, 0
    %v2223 = vsel %vm580, %v2191, 0
    %v2226 = vsel %vm580, %v2192, 0
    %v2229 = vsel %vm580, %v2193, 0
    %v2232 = vsel %vm580, %v2194, 0
    %v2235 = vsel %vm580, %v2195, 0
    %v2238 = vsel %vm580, %v2196, 0
    %v2241 = vsel %vm580, %v2197, 0
    %v2244 = vsel %vm580, %v2198, 0
    %v2247 = vsel %vm580, %v2199, 0
    %v2250 = vsel %vm580, %v2200, 0
    %v2253 = vsel %vm580, %v2201, 0
    %2255 = vmatprep.subr.mxu0 0.0
    %2256 = vmatpush1.msra.mxu0 %v2203
    %2257 = vmatprep.subr.mxu0 0.0
    %2258 = vmatpush1.msra.mxu0 %v2204
    %2259 = vmatprep.subr.mxu0 0.0
    %2260 = vmatpush1.msra.mxu0 %v2205
    %2261 = vmatprep.subr.mxu0 0.0
    %2262 = vmatpush1.msra.mxu0 %v2206
    %2263 = vmatprep.subr.mxu0 0.0
    %2264 = vmatpush1.msra.mxu0 0.0
    %2265 = vmatprep.subr.mxu0 0.0
    %2266 = vmatpush1.msra.mxu0 0.0
    %2267 = vmatprep.subr.mxu0 0.0
    %2268 = vmatpush1.msra.mxu0 0.0
    %2269 = vmatprep.subr.mxu0 0.0
    %2270 = vmatpush1.msra.mxu0 0.0
    %2271 = vmatprep.subr.mxu0 0.0
    %2272 = vmatpush1.msra.mxu0 0.0
    %2273 = vmatprep.subr.mxu0 0.0
    %2274 = vmatpush1.msra.mxu0 0.0
    %2275 = vmatprep.subr.mxu0 0.0
    %2276 = vmatpush1.msra.mxu0 0.0
    %2277 = vmatprep.subr.mxu0 0.0
    %2278 = vmatpush1.msra.mxu0 0.0
    %2279 = vmatprep.subr.mxu0 0.0
    %2280 = vmatpush1.msra.mxu0 0.0
    %2281 = vmatprep.subr.mxu0 0.0
    %2282 = vmatpush1.msra.mxu0 0.0
    %2283 = vmatprep.subr.mxu0 0.0
    %2284 = vmatpush1.msra.mxu0 0.0
    %2285 = vmatprep.subr.mxu0 0.0
    %2286 = vmatpush1.msra.mxu0 0.0
    %2287 = vmatprep.subr.mxu0 0.0
    %2288 = vmatpush1.msra.mxu0 0.0
    %2289 = vmatprep.subr.mxu0 0.0
    %2290 = vmatpush1.msra.mxu0 0.0
    %2291 = vmatprep.subr.mxu0 0.0
    %2292 = vmatpush1.msra.mxu0 0.0
    %2293 = vmatprep.subr.mxu0 0.0
    %2294 = vmatpush1.msra.mxu0 0.0
    %2295 = vmatprep.subr.mxu0 0.0
    %2296 = vmatpush1.msra.mxu0 0.0
    %2297 = vmatprep.subr.mxu0 0.0
    %2298 = vmatpush1.msra.mxu0 0.0
    %2299 = vmatprep.subr.mxu0 0.0
    %2300 = vmatpush1.msra.mxu0 0.0
    %2301 = vmatprep.subr.mxu0 0.0
    %2302 = vmatpush1.msra.mxu0 0.0
    %2303 = vmatprep.subr.mxu0 0.0
    %2304 = vmatpush1.msra.mxu0 0.0
    %2305 = vmatprep.subr.mxu0 0.0
    %2306 = vmatpush1.msra.mxu0 0.0
    %2307 = vmatprep.subr.mxu0 0.0
    %2308 = vmatpush1.msra.mxu0 0.0
    %2309 = vmatprep.subr.mxu0 0.0
    %2310 = vmatpush1.msra.mxu0 0.0
    %2311 = vmatprep.subr.mxu0 0.0
    %2312 = vmatpush1.msra.mxu0 0.0
    %2313 = vmatprep.subr.mxu0 0.0
    %2314 = vmatpush1.msra.mxu0 0.0
    %2315 = vmatprep.subr.mxu0 0.0
    %2316 = vmatpush1.msra.mxu0 0.0
    %2317 = vmatprep.subr.mxu0 0.0
    %2318 = vmatpush1.msra.mxu0 0.0
    %2319 = vmatprep.mubr.f32.mxu0 0.0
    %2320 = vmatmul.mubr.f32.gmra.mrb[0].mxu0 %v2208
    %v2321 = vpop.f32.mrb[0].mxu0
    %v2322 = vadd.f32 0.0, %v2321
    %v2323 = vpop.f32.mrb[0].mxu0
    %2324 = vmatprep.mubr.f32.mxu0 0.0
    %2325 = vmatmul.mubr.f32.gmra.mrb[0].mxu0 %v2211
    %v2326 = vpop.f32.mrb[0].mxu0
    %v2327 = vadd.f32 0.0, %v2326
    %v2328 = vpop.f32.mrb[0].mxu0
    %2329 = vmatprep.mubr.f32.mxu0 0.0
    %2330 = vmatmul.mubr.f32.gmra.mrb[0].mxu0 %v2214
    %v2331 = vpop.f32.mrb[0].mxu0
    %v2332 = vadd.f32 0.0, %v2331
    %v2333 = vpop.f32.mrb[0].mxu0
    %2334 = vmatprep.mubr.f32.mxu0 0.0
    %2335 = vmatmul.mubr.f32.gmra.mrb[0].mxu0 %v2217
    %v2336 = vpop.f32.mrb[0].mxu0
    %v2337 = vadd.f32 0.0, %v2336
    %v2338 = vpop.f32.mrb[0].mxu0
    %2339 = vmatprep.mubr.f32.mxu0 0.0
    %2340 = vmatmul.mubr.f32.gmra.mrb[0].mxu0 %v2220
    %v2341 = vpop.f32.mrb[0].mxu0
    %v2342 = vadd.f32 0.0, %v2341
    %v2343 = vpop.f32.mrb[0].mxu0
    %2344 = vmatprep.mubr.f32.mxu0 0.0
    %2345 = vmatmul.mubr.f32.gmra.mrb[0].mxu0 %v2223
    %v2346 = vpop.f32.mrb[0].mxu0
    %v2347 = vadd.f32 0.0, %v2346
    %v2348 = vpop.f32.mrb[0].mxu0
    %2349 = vmatprep.mubr.f32.mxu0 0.0
    %2350 = vmatmul.mubr.f32.gmra.mrb[0].mxu0 %v2226
    %v2351 = vpop.f32.mrb[0].mxu0
    %v2352 = vadd.f32 0.0, %v2351
    %v2353 = vpop.f32.mrb[0].mxu0
    %2354 = vmatprep.mubr.f32.mxu0 0.0
    %2355 = vmatmul.mubr.f32.gmra.mrb[0].mxu0 %v2229
    %v2356 = vpop.f32.mrb[0].mxu0
    %v2357 = vadd.f32 0.0, %v2356
    %v2358 = vpop.f32.mrb[0].mxu0
    %2359 = vmatprep.mubr.f32.mxu0 0.0
    %2360 = vmatmul.mubr.f32.gmra.mrb[0].mxu0 %v2232
    %v2361 = vpop.f32.mrb[0].mxu0
    %v2362 = vadd.f32 0.0, %v2361
    %v2363 = vpop.f32.mrb[0].mxu0
    %2364 = vmatprep.mubr.f32.mxu0 0.0
    %2365 = vmatmul.mubr.f32.gmra.mrb[0].mxu0 %v2235
    %v2366 = vpop.f32.mrb[0].mxu0
    %v2367 = vadd.f32 0.0, %v2366
    %v2368 = vpop.f32.mrb[0].mxu0
    %2369 = vmatprep.mubr.f32.mxu0 0.0
    %2370 = vmatmul.mubr.f32.gmra.mrb[0].mxu0 %v2238
    %v2371 = vpop.f32.mrb[0].mxu0
    %v2372 = vadd.f32 0.0, %v2371
    %v2373 = vpop.f32.mrb[0].mxu0
    %2374 = vmatprep.mubr.f32.mxu0 0.0
    %2375 = vmatmul.mubr.f32.gmra.mrb[0].mxu0 %v2241
    %v2376 = vpop.f32.mrb[0].mxu0
    %v2377 = vadd.f32 0.0, %v2376
    %v2378 = vpop.f32.mrb[0].mxu0
    %2379 = vmatprep.mubr.f32.mxu0 0.0
    %2380 = vmatmul.mubr.f32.gmra.mrb[0].mxu0 %v2244
    %v2381 = vpop.f32.mrb[0].mxu0
    %v2382 = vadd.f32 0.0, %v2381
    %v2383 = vpop.f32.mrb[0].mxu0
    %2384 = vmatprep.mubr.f32.mxu0 0.0
    %2385 = vmatmul.mubr.f32.gmra.mrb[0].mxu0 %v2247
    %v2386 = vpop.f32.mrb[0].mxu0
    %v2387 = vadd.f32 0.0, %v2386
    %v2388 = vpop.f32.mrb[0].mxu0
    %2389 = vmatprep.mubr.f32.mxu0 0.0
    %2390 = vmatmul.mubr.f32.gmra.mrb[0].mxu0 %v2250
    %v2391 = vpop.f32.mrb[0].mxu0
    %v2392 = vadd.f32 0.0, %v2391
    %v2393 = vpop.f32.mrb[0].mxu0
    %2394 = vmatprep.mubr.f32.mxu0 0.0
    %2395 = vmatmul.mubr.f32.gmra.mrb[0].mxu0 %v2253
    %v2396 = vpop.f32.mrb[0].mxu0
    %v2397 = vadd.f32 0.0, %v2396
    %v2398 = vpop.f32.mrb[0].mxu0
    %2399 = vdwg.mxu0
    %v2400 = vadd.f32 %v2170, %v2322
    %v2401 = vadd.f32 %v2171, %v2327
    %v2402 = vadd.f32 %v2172, %v2332
    %v2403 = vadd.f32 %v2173, %v2337
    %v2404 = vadd.f32 %v2174, %v2342
    %v2405 = vadd.f32 %v2175, %v2347
    %v2406 = vadd.f32 %v2176, %v2352
    %v2407 = vadd.f32 %v2177, %v2357
    %v2408 = vadd.f32 %v2178, %v2362
    %v2409 = vadd.f32 %v2179, %v2367
    %v2410 = vadd.f32 %v2180, %v2372
    %v2411 = vadd.f32 %v2181, %v2377
    %v2412 = vadd.f32 %v2182, %v2382
    %v2413 = vadd.f32 %v2183, %v2387
    %v2414 = vadd.f32 %v2184, %v2392
    %v2415 = vadd.f32 %v2185, %v2397
    %v2416 = vld [vmem:[%s1955 + $0x2] sm:$0xff]
    %v2417 = vld [vmem:[%s1955 + $0x12] sm:$0xff]
    %v2418 = vld [vmem:[%s1955 + $0x22] sm:$0xff]
    %v2419 = vld [vmem:[%s1955 + $0x32] sm:$0xff]
    %v2420 = vld [vmem:[%s1955 + $0x42] sm:$0xff]
    %v2421 = vld [vmem:[%s1955 + $0x52] sm:$0xff]
    %v2422 = vld [vmem:[%s1955 + $0x62] sm:$0xff]
    %v2423 = vld [vmem:[%s1955 + $0x72] sm:$0xff]
    %v2424 = vld [vmem:[%s1955 + $0xa2] sm:$0xff]
    %v2425 = vld [vmem:[%s1955 + $0xb2] sm:$0xff]
    %v2426 = vld [vmem:[%s1955 + $0xc2] sm:$0xff]
    %v2427 = vld [vmem:[%s1955 + $0xd2] sm:$0xff]
    %v2428 = vld [vmem:[%s1955 + $0xe2] sm:$0xff]
    %v2429 = vld [vmem:[%s1955 + $0xf2] sm:$0xff]
    %v2430 = vld [vmem:[%s1955 + $0x102] sm:$0xff]
    %v2431 = vld [vmem:[%s1955 + $0x112] sm:$0xff]
    %s2432 = scalar_lea.vmem [#allocation5], 256
    %v2433 = vld [vmem:[%s2432] sm:$0xff]
    %v2434 = vld [vmem:[%s2432 + $0x8] sm:$0xff]
    %v2435 = vld [vmem:[%s2432 + $0x10] sm:$0xff]
    %v2436 = vld [vmem:[%s2432 + $0x18] sm:$0xff]
    %v2438 = vsel %vm580, %v2416, 0
    %v2441 = vsel %vm580, %v2417, 0
    %v2444 = vsel %vm580, %v2418, 0
    %v2447 = vsel %vm580, %v2419, 0
    %v2450 = vsel %vm580, %v2420, 0
    %v2453 = vsel %vm580, %v2421, 0
    %v2456 = vsel %vm580, %v2422, 0
    %v2459 = vsel %vm580, %v2423, 0
    %v2462 = vsel %vm580, %v2424, 0
    %v2465 = vsel %vm580, %v2425, 0
    %v2468 = vsel %vm580, %v2426, 0
    %v2471 = vsel %vm580, %v2427, 0
    %v2474 = vsel %vm580, %v2428, 0
    %v2477 = vsel %vm580, %v2429, 0
    %v2480 = vsel %vm580, %v2430, 0
    %v2483 = vsel %vm580, %v2431, 0
    %2485 = vmatprep.subr.mxu0 0.0
    %2486 = vmatpush1.msra.mxu0 %v2433
    %2487 = vmatprep.subr.mxu0 0.0
    %2488 = vmatpush1.msra.mxu0 %v2434
    %2489 = vmatprep.subr.mxu0 0.0
    %2490 = vmatpush1.msra.mxu0 %v2435
    %2491 = vmatprep.subr.mxu0 0.0
    %2492 = vmatpush1.msra.mxu0 %v2436
    %2493 = vmatprep.subr.mxu0 0.0
    %2494 = vmatpush1.msra.mxu0 0.0
    %2495 = vmatprep.subr.mxu0 0.0
    %2496 = vmatpush1.msra.mxu0 0.0
    %2497 = vmatprep.subr.mxu0 0.0
    %2498 = vmatpush1.msra.mxu0 0.0
    %2499 = vmatprep.subr.mxu0 0.0
    %2500 = vmatpush1.msra.mxu0 0.0
    %2501 = vmatprep.subr.mxu0 0.0
    %2502 = vmatpush1.msra.mxu0 0.0
    %2503 = vmatprep.subr.mxu0 0.0
    %2504 = vmatpush1.msra.mxu0 0.0
    %2505 = vmatprep.subr.mxu0 0.0
    %2506 = vmatpush1.msra.mxu0 0.0
    %2507 = vmatprep.subr.mxu0 0.0
    %2508 = vmatpush1.msra.mxu0 0.0
    %2509 = vmatprep.subr.mxu0 0.0
    %2510 = vmatpush1.msra.mxu0 0.0
    %2511 = vmatprep.subr.mxu0 0.0
    %2512 = vmatpush1.msra.mxu0 0.0
    %2513 = vmatprep.subr.mxu0 0.0
    %2514 = vmatpush1.msra.mxu0 0.0
    %2515 = vmatprep.subr.mxu0 0.0
    %2516 = vmatpush1.msra.mxu0 0.0
    %2517 = vmatprep.subr.mxu0 0.0
    %2518 = vmatpush1.msra.mxu0 0.0
    %2519 = vmatprep.subr.mxu0 0.0
    %2520 = vmatpush1.msra.mxu0 0.0
    %2521 = vmatprep.subr.mxu0 0.0
    %2522 = vmatpush1.msra.mxu0 0.0
    %2523 = vmatprep.subr.mxu0 0.0
    %2524 = vmatpush1.msra.mxu0 0.0
    %2525 = vmatprep.subr.mxu0 0.0
    %2526 = vmatpush1.msra.mxu0 0.0
    %2527 = vmatprep.subr.mxu0 0.0
    %2528 = vmatpush1.msra.mxu0 0.0
    %2529 = vmatprep.subr.mxu0 0.0
    %2530 = vmatpush1.msra.mxu0 0.0
    %2531 = vmatprep.subr.mxu0 0.0
    %2532 = vmatpush1.msra.mxu0 0.0
    %2533 = vmatprep.subr.mxu0 0.0
    %2534 = vmatpush1.msra.mxu0 0.0
    %2535 = vmatprep.subr.mxu0 0.0
    %2536 = vmatpush1.msra.mxu0 0.0
    %2537 = vmatprep.subr.mxu0 0.0
    %2538 = vmatpush1.msra.mxu0 0.0
    %2539 = vmatprep.subr.mxu0 0.0
    %2540 = vmatpush1.msra.mxu0 0.0
    %2541 = vmatprep.subr.mxu0 0.0
    %2542 = vmatpush1.msra.mxu0 0.0
    %2543 = vmatprep.subr.mxu0 0.0
    %2544 = vmatpush1.msra.mxu0 0.0
    %2545 = vmatprep.subr.mxu0 0.0
    %2546 = vmatpush1.msra.mxu0 0.0
    %2547 = vmatprep.subr.mxu0 0.0
    %2548 = vmatpush1.msra.mxu0 0.0
    %2549 = vmatprep.mubr.f32.mxu0 0.0
    %2550 = vmatmul.mubr.f32.gmra.mrb[0].mxu0 %v2438
    %v2551 = vpop.f32.mrb[0].mxu0
    %v2552 = vadd.f32 0.0, %v2551
    %v2553 = vpop.f32.mrb[0].mxu0
    %2554 = vmatprep.mubr.f32.mxu0 0.0
    %2555 = vmatmul.mubr.f32.gmra.mrb[0].mxu0 %v2441
    %v2556 = vpop.f32.mrb[0].mxu0
    %v2557 = vadd.f32 0.0, %v2556
    %v2558 = vpop.f32.mrb[0].mxu0
    %2559 = vmatprep.mubr.f32.mxu0 0.0
    %2560 = vmatmul.mubr.f32.gmra.mrb[0].mxu0 %v2444
    %v2561 = vpop.f32.mrb[0].mxu0
    %v2562 = vadd.f32 0.0, %v2561
    %v2563 = vpop.f32.mrb[0].mxu0
    %2564 = vmatprep.mubr.f32.mxu0 0.0
    %2565 = vmatmul.mubr.f32.gmra.mrb[0].mxu0 %v2447
    %v2566 = vpop.f32.mrb[0].mxu0
    %v2567 = vadd.f32 0.0, %v2566
    %v2568 = vpop.f32.mrb[0].mxu0
    %2569 = vmatprep.mubr.f32.mxu0 0.0
    %2570 = vmatmul.mubr.f32.gmra.mrb[0].mxu0 %v2450
    %v2571 = vpop.f32.mrb[0].mxu0
    %v2572 = vadd.f32 0.0, %v2571
    %v2573 = vpop.f32.mrb[0].mxu0
    %2574 = vmatprep.mubr.f32.mxu0 0.0
    %2575 = vmatmul.mubr.f32.gmra.mrb[0].mxu0 %v2453
    %v2576 = vpop.f32.mrb[0].mxu0
    %v2577 = vadd.f32 0.0, %v2576
    %v2578 = vpop.f32.mrb[0].mxu0
    %2579 = vmatprep.mubr.f32.mxu0 0.0
    %2580 = vmatmul.mubr.f32.gmra.mrb[0].mxu0 %v2456
    %v2581 = vpop.f32.mrb[0].mxu0
    %v2582 = vadd.f32 0.0, %v2581
    %v2583 = vpop.f32.mrb[0].mxu0
    %2584 = vmatprep.mubr.f32.mxu0 0.0
    %2585 = vmatmul.mubr.f32.gmra.mrb[0].mxu0 %v2459
    %v2586 = vpop.f32.mrb[0].mxu0
    %v2587 = vadd.f32 0.0, %v2586
    %v2588 = vpop.f32.mrb[0].mxu0
    %2589 = vmatprep.mubr.f32.mxu0 0.0
    %2590 = vmatmul.mubr.f32.gmra.mrb[0].mxu0 %v2462
    %v2591 = vpop.f32.mrb[0].mxu0
    %v2592 = vadd.f32 0.0, %v2591
    %v2593 = vpop.f32.mrb[0].mxu0
    %2594 = vmatprep.mubr.f32.mxu0 0.0
    %2595 = vmatmul.mubr.f32.gmra.mrb[0].mxu0 %v2465
    %v2596 = vpop.f32.mrb[0].mxu0
    %v2597 = vadd.f32 0.0, %v2596
    %v2598 = vpop.f32.mrb[0].mxu0
    %2599 = vmatprep.mubr.f32.mxu0 0.0
    %2600 = vmatmul.mubr.f32.gmra.mrb[0].mxu0 %v2468
    %v2601 = vpop.f32.mrb[0].mxu0
    %v2602 = vadd.f32 0.0, %v2601
    %v2603 = vpop.f32.mrb[0].mxu0
    %2604 = vmatprep.mubr.f32.mxu0 0.0
    %2605 = vmatmul.mubr.f32.gmra.mrb[0].mxu0 %v2471
    %v2606 = vpop.f32.mrb[0].mxu0
    %v2607 = vadd.f32 0.0, %v2606
    %v2608 = vpop.f32.mrb[0].mxu0
    %2609 = vmatprep.mubr.f32.mxu0 0.0
    %2610 = vmatmul.mubr.f32.gmra.mrb[0].mxu0 %v2474
    %v2611 = vpop.f32.mrb[0].mxu0
    %v2612 = vadd.f32 0.0, %v2611
    %v2613 = vpop.f32.mrb[0].mxu0
    %2614 = vmatprep.mubr.f32.mxu0 0.0
    %2615 = vmatmul.mubr.f32.gmra.mrb[0].mxu0 %v2477
    %v2616 = vpop.f32.mrb[0].mxu0
    %v2617 = vadd.f32 0.0, %v2616
    %v2618 = vpop.f32.mrb[0].mxu0
    %2619 = vmatprep.mubr.f32.mxu0 0.0
    %2620 = vmatmul.mubr.f32.gmra.mrb[0].mxu0 %v2480
    %v2621 = vpop.f32.mrb[0].mxu0
    %v2622 = vadd.f32 0.0, %v2621
    %v2623 = vpop.f32.mrb[0].mxu0
    %2624 = vmatprep.mubr.f32.mxu0 0.0
    %2625 = vmatmul.mubr.f32.gmra.mrb[0].mxu0 %v2483
    %v2626 = vpop.f32.mrb[0].mxu0
    %v2627 = vadd.f32 0.0, %v2626
    %v2628 = vpop.f32.mrb[0].mxu0
    %2629 = vdwg.mxu0
    %v2630 = vadd.f32 %v2400, %v2552
    %v2631 = vadd.f32 %v2401, %v2557
    %v2632 = vadd.f32 %v2402, %v2562
    %v2633 = vadd.f32 %v2403, %v2567
    %v2634 = vadd.f32 %v2404, %v2572
    %v2635 = vadd.f32 %v2405, %v2577
    %v2636 = vadd.f32 %v2406, %v2582
    %v2637 = vadd.f32 %v2407, %v2587
    %v2638 = vadd.f32 %v2408, %v2592
    %v2639 = vadd.f32 %v2409, %v2597
    %v2640 = vadd.f32 %v2410, %v2602
    %v2641 = vadd.f32 %v2411, %v2607
    %v2642 = vadd.f32 %v2412, %v2612
    %v2643 = vadd.f32 %v2413, %v2617
    %v2644 = vadd.f32 %v2414, %v2622
    %v2645 = vadd.f32 %v2415, %v2627
    %v2646 = vsel %vm537, %v2630, 0.0
    %v2647 = vsel %vm537, %v2631, 0.0
    %v2648 = vadd.f32 %v2646, %v2647
    %v2649 = vsel %vm537, %v2632, 0.0
    %v2650 = vadd.f32 %v2648, %v2649
    %v2651 = vsel %vm537, %v2633, 0.0
    %v2652 = vadd.f32 %v2650, %v2651
    %v2653 = vsel %vm537, %v2634, 0.0
    %v2654 = vadd.f32 %v2652, %v2653
    %v2655 = vsel %vm537, %v2635, 0.0
    %v2656 = vadd.f32 %v2654, %v2655
    %v2657 = vsel %vm537, %v2636, 0.0
    %v2658 = vadd.f32 %v2656, %v2657
    %v2659 = vsel %vm537, %v2637, 0.0
    %v2660 = vadd.f32 %v2658, %v2659
    %v2661 = vsel %vm537, %v2638, 0.0
    %v2662 = vadd.f32 %v2660, %v2661
    %v2663 = vsel %vm537, %v2639, 0.0
    %v2664 = vadd.f32 %v2662, %v2663
    %v2665 = vsel %vm537, %v2640, 0.0
    %v2666 = vadd.f32 %v2664, %v2665
    %v2667 = vsel %vm537, %v2641, 0.0
    %v2668 = vadd.f32 %v2666, %v2667
    %v2669 = vsel %vm537, %v2642, 0.0
    %v2670 = vadd.f32 %v2668, %v2669
    %v2671 = vsel %vm537, %v2643, 0.0
    %v2672 = vadd.f32 %v2670, %v2671
    %v2673 = vsel %vm537, %v2644, 0.0
    %v2674 = vadd.f32 %v2672, %v2673
    %v2675 = vsel %vm537, %v2645, 0.0
    %v2676 = vadd.f32 %v2674, %v2675
    %v2677 = vrot.slane %v2676, 4
    %v2678 = vadd.f32 %v2676, %v2677
    %v2679 = vrot.slane %v2678, 2
    %v2680 = vadd.f32 %v2678, %v2679
    %v2681 = vrot.slane %v2680, 1
    %v2682 = vadd.f32 %v2680, %v2681
    %v2684 = vsel %vm537, %v2682, 0
    %2686 = vmatprep.subr.mxu0 0.0
    %2687 = vmatpush1.msra.mxu0 %v597
    %2688 = vmatprep.subr.mxu0 0.0
    %2689 = vmatpush1.msra.mxu0 %v598
    %2690 = vmatprep.subr.mxu0 0.0
    %2691 = vmatpush1.msra.mxu0 %v599
    %2692 = vmatprep.subr.mxu0 0.0
    %2693 = vmatpush1.msra.mxu0 %v600
    %2694 = vmatprep.subr.mxu0 0.0
    %2695 = vmatpush1.msra.mxu0 %v601
    %2696 = vmatprep.subr.mxu0 0.0
    %2697 = vmatpush1.msra.mxu0 %v602
    %2698 = vmatprep.subr.mxu0 0.0
    %2699 = vmatpush1.msra.mxu0 %v603
    %2700 = vmatprep.subr.mxu0 0.0
    %2701 = vmatpush1.msra.mxu0 %v604
    %2702 = vmatprep.subr.mxu0 0.0
    %2703 = vmatpush1.msra.mxu0 0.0
    %2704 = vmatprep.subr.mxu0 0.0
    %2705 = vmatpush1.msra.mxu0 0.0
    %2706 = vmatprep.subr.mxu0 0.0
    %2707 = vmatpush1.msra.mxu0 0.0
    %2708 = vmatprep.subr.mxu0 0.0
    %2709 = vmatpush1.msra.mxu0 0.0
    %2710 = vmatprep.subr.mxu0 0.0
    %2711 = vmatpush1.msra.mxu0 0.0
    %2712 = vmatprep.subr.mxu0 0.0
    %2713 = vmatpush1.msra.mxu0 0.0
    %2714 = vmatprep.subr.mxu0 0.0
    %2715 = vmatpush1.msra.mxu0 0.0
    %2716 = vmatprep.subr.mxu0 0.0
    %2717 = vmatpush1.msra.mxu0 0.0
    %2718 = vmatprep.subr.mxu0 0.0
    %2719 = vmatpush1.msra.mxu0 0.0
    %2720 = vmatprep.subr.mxu0 0.0
    %2721 = vmatpush1.msra.mxu0 0.0
    %2722 = vmatprep.subr.mxu0 0.0
    %2723 = vmatpush1.msra.mxu0 0.0
    %2724 = vmatprep.subr.mxu0 0.0
    %2725 = vmatpush1.msra.mxu0 0.0
    %2726 = vmatprep.subr.mxu0 0.0
    %2727 = vmatpush1.msra.mxu0 0.0
    %2728 = vmatprep.subr.mxu0 0.0
    %2729 = vmatpush1.msra.mxu0 0.0
    %2730 = vmatprep.subr.mxu0 0.0
    %2731 = vmatpush1.msra.mxu0 0.0
    %2732 = vmatprep.subr.mxu0 0.0
    %2733 = vmatpush1.msra.mxu0 0.0
    %2734 = vmatprep.subr.mxu0 0.0
    %2735 = vmatpush1.msra.mxu0 0.0
    %2736 = vmatprep.subr.mxu0 0.0
    %2737 = vmatpush1.msra.mxu0 0.0
    %2738 = vmatprep.subr.mxu0 0.0
    %2739 = vmatpush1.msra.mxu0 0.0
    %2740 = vmatprep.subr.mxu0 0.0
    %2741 = vmatpush1.msra.mxu0 0.0
    %2742 = vmatprep.subr.mxu0 0.0
    %2743 = vmatpush1.msra.mxu0 0.0
    %2744 = vmatprep.subr.mxu0 0.0
    %2745 = vmatpush1.msra.mxu0 0.0
    %2746 = vmatprep.subr.mxu0 0.0
    %2747 = vmatpush1.msra.mxu0 0.0
    %2748 = vmatprep.subr.mxu0 0.0
    %2749 = vmatpush1.msra.mxu0 0.0
    %2750 = vmatprep.mubr.f32.mxu0 0.0
    %2751 = vmatmul.mubr.f32.gmra.mrb[0].mxu0 %v2684
    %v2752 = vpop.f32.mrb[0].mxu0
    %v2753 = vadd.f32 0.0, %v2752
    %v2754 = vpop.f32.mrb[0].mxu0
    %2755 = vdwg.mxu0
    %v2756 = vrcp.pop 1024.0
    %v2757 = vmul.f32 %v2753, %v2756
    %vm2758 = vcmask 64512
    %v2760 = vsel %vm2758, %v2757, 0
    %2762 = vmatprep.subr.mxu0 0.0
    %2763 = vmatpush1.msra.mxu0 %v605
    %2764 = vmatprep.subr.mxu0 0.0
    %2765 = vmatpush1.msra.mxu0 0.0
    %2766 = vmatprep.subr.mxu0 0.0
    %2767 = vmatpush1.msra.mxu0 0.0
    %2768 = vmatprep.subr.mxu0 0.0
    %2769 = vmatpush1.msra.mxu0 0.0
    %2770 = vmatprep.subr.mxu0 0.0
    %2771 = vmatpush1.msra.mxu0 0.0
    %2772 = vmatprep.subr.mxu0 0.0
    %2773 = vmatpush1.msra.mxu0 0.0
    %2774 = vmatprep.subr.mxu0 0.0
    %2775 = vmatpush1.msra.mxu0 0.0
    %2776 = vmatprep.subr.mxu0 0.0
    %2777 = vmatpush1.msra.mxu0 0.0
    %2778 = vmatprep.subr.mxu0 0.0
    %2779 = vmatpush1.msra.mxu0 0.0
    %2780 = vmatprep.subr.mxu0 0.0
    %2781 = vmatpush1.msra.mxu0 0.0
    %2782 = vmatprep.subr.mxu0 0.0
    %2783 = vmatpush1.msra.mxu0 0.0
    %2784 = vmatprep.subr.mxu0 0.0
    %2785 = vmatpush1.msra.mxu0 0.0
    %2786 = vmatprep.subr.mxu0 0.0
    %2787 = vmatpush1.msra.mxu0 0.0
    %2788 = vmatprep.subr.mxu0 0.0
    %2789 = vmatpush1.msra.mxu0 0.0
    %2790 = vmatprep.subr.mxu0 0.0
    %2791 = vmatpush1.msra.mxu0 0.0
    %2792 = vmatprep.subr.mxu0 0.0
    %2793 = vmatpush1.msra.mxu0 0.0
    %2794 = vmatprep.subr.mxu0 0.0
    %2795 = vmatpush1.msra.mxu0 0.0
    %2796 = vmatprep.subr.mxu0 0.0
    %2797 = vmatpush1.msra.mxu0 0.0
    %2798 = vmatprep.subr.mxu0 0.0
    %2799 = vmatpush1.msra.mxu0 0.0
    %2800 = vmatprep.subr.mxu0 0.0
    %2801 = vmatpush1.msra.mxu0 0.0
    %2802 = vmatprep.subr.mxu0 0.0
    %2803 = vmatpush1.msra.mxu0 0.0
    %2804 = vmatprep.subr.mxu0 0.0
    %2805 = vmatpush1.msra.mxu0 0.0
    %2806 = vmatprep.subr.mxu0 0.0
    %2807 = vmatpush1.msra.mxu0 0.0
    %2808 = vmatprep.subr.mxu0 0.0
    %2809 = vmatpush1.msra.mxu0 0.0
    %2810 = vmatprep.subr.mxu0 0.0
    %2811 = vmatpush1.msra.mxu0 0.0
    %2812 = vmatprep.subr.mxu0 0.0
    %2813 = vmatpush1.msra.mxu0 0.0
    %2814 = vmatprep.subr.mxu0 0.0
    %2815 = vmatpush1.msra.mxu0 0.0
    %2816 = vmatprep.subr.mxu0 0.0
    %2817 = vmatpush1.msra.mxu0 0.0
    %2818 = vmatprep.subr.mxu0 0.0
    %2819 = vmatpush1.msra.mxu0 0.0
    %2820 = vmatprep.subr.mxu0 0.0
    %2821 = vmatpush1.msra.mxu0 0.0
    %2822 = vmatprep.subr.mxu0 0.0
    %2823 = vmatpush1.msra.mxu0 0.0
    %2824 = vmatprep.subr.mxu0 0.0
    %2825 = vmatpush1.msra.mxu0 0.0
    %2826 = vmatprep.mubr.f32.mxu0 0.0
    %2827 = vmatmul.mubr.f32.gmra.mrb[0].mxu0 %v2760
    %v2828 = vpop.f32.mrb[0].mxu0
    %v2829 = vadd.f32 0.0, %v2828
    %v2830 = vpop.f32.mrb[0].mxu0
    %2831 = vdwg.mxu0
    %v2832 = vlaneseq
    %v2833 = vshrl.u32 %v2832, 7
    %v2834 = vsub.s32 0, %v2833
    %v2835 = vrot.slane %v2829, %v2834
    %v2836 = vsub.f32 %v2630, %v2835
    %v2837 = vsub.f32 %v2631, %v2835
    %v2838 = vsub.f32 %v2632, %v2835
    %v2839 = vsub.f32 %v2633, %v2835
    %v2840 = vsub.f32 %v2634, %v2835
    %v2841 = vsub.f32 %v2635, %v2835
    %v2842 = vsub.f32 %v2636, %v2835
    %v2843 = vsub.f32 %v2637, %v2835
    %v2844 = vsub.f32 %v2638, %v2835
    %v2845 = vsub.f32 %v2639, %v2835
    %v2846 = vsub.f32 %v2640, %v2835
    %v2847 = vsub.f32 %v2641, %v2835
    %v2848 = vsub.f32 %v2642, %v2835
    %v2849 = vsub.f32 %v2643, %v2835
    %v2850 = vsub.f32 %v2644, %v2835
    %v2851 = vsub.f32 %v2645, %v2835
    %v2852 = vmul.f32 %v2836, %v2836
    %v2853 = vmul.f32 %v2837, %v2837
    %v2854 = vmul.f32 %v2838, %v2838
    %v2855 = vmul.f32 %v2839, %v2839
    %v2856 = vmul.f32 %v2840, %v2840
    %v2857 = vmul.f32 %v2841, %v2841
    %v2858 = vmul.f32 %v2842, %v2842
    %v2859 = vmul.f32 %v2843, %v2843
    %v2860 = vmul.f32 %v2844, %v2844
    %v2861 = vmul.f32 %v2845, %v2845
    %v2862 = vmul.f32 %v2846, %v2846
    %v2863 = vmul.f32 %v2847, %v2847
    %v2864 = vmul.f32 %v2848, %v2848
    %v2865 = vmul.f32 %v2849, %v2849
    %v2866 = vmul.f32 %v2850, %v2850
    %v2867 = vmul.f32 %v2851, %v2851
    %v2868 = vsel %vm537, %v2852, 0.0
    %v2869 = vsel %vm537, %v2853, 0.0
    %v2870 = vadd.f32 %v2868, %v2869
    %v2871 = vsel %vm537, %v2854, 0.0
    %v2872 = vadd.f32 %v2870, %v2871
    %v2873 = vsel %vm537, %v2855, 0.0
    %v2874 = vadd.f32 %v2872, %v2873
    %v2875 = vsel %vm537, %v2856, 0.0
    %v2876 = vadd.f32 %v2874, %v2875
    %v2877 = vsel %vm537, %v2857, 0.0
    %v2878 = vadd.f32 %v2876, %v2877
    %v2879 = vsel %vm537, %v2858, 0.0
    %v2880 = vadd.f32 %v2878, %v2879
    %v2881 = vsel %vm537, %v2859, 0.0
    %v2882 = vadd.f32 %v2880, %v2881
    %v2883 = vsel %vm537, %v2860, 0.0
    %v2884 = vadd.f32 %v2882, %v2883
    %v2885 = vsel %vm537, %v2861, 0.0
    %v2886 = vadd.f32 %v2884, %v2885
    %v2887 = vsel %vm537, %v2862, 0.0
    %v2888 = vadd.f32 %v2886, %v2887
    %v2889 = vsel %vm537, %v2863, 0.0
    %v2890 = vadd.f32 %v2888, %v2889
    %v2891 = vsel %vm537, %v2864, 0.0
    %v2892 = vadd.f32 %v2890, %v2891
    %v2893 = vsel %vm537, %v2865, 0.0
    %v2894 = vadd.f32 %v2892, %v2893
    %v2895 = vsel %vm537, %v2866, 0.0
    %v2896 = vadd.f32 %v2894, %v2895
    %v2897 = vsel %vm537, %v2867, 0.0
    %v2898 = vadd.f32 %v2896, %v2897
    %v2899 = vrot.slane %v2898, 4
    %v2900 = vadd.f32 %v2898, %v2899
    %v2901 = vrot.slane %v2900, 2
    %v2902 = vadd.f32 %v2900, %v2901
    %v2903 = vrot.slane %v2902, 1
    %v2904 = vadd.f32 %v2902, %v2903
    %v2906 = vsel %vm537, %v2904, 0
    %2908 = vmatprep.subr.mxu0 0.0
    %2909 = vmatpush1.msra.mxu0 %v597
    %2910 = vmatprep.subr.mxu0 0.0
    %2911 = vmatpush1.msra.mxu0 %v598
    %2912 = vmatprep.subr.mxu0 0.0
    %2913 = vmatpush1.msra.mxu0 %v599
    %2914 = vmatprep.subr.mxu0 0.0
    %2915 = vmatpush1.msra.mxu0 %v600
    %2916 = vmatprep.subr.mxu0 0.0
    %2917 = vmatpush1.msra.mxu0 %v601
    %2918 = vmatprep.subr.mxu0 0.0
    %2919 = vmatpush1.msra.mxu0 %v602
    %2920 = vmatprep.subr.mxu0 0.0
    %2921 = vmatpush1.msra.mxu0 %v603
    %2922 = vmatprep.subr.mxu0 0.0
    %2923 = vmatpush1.msra.mxu0 %v604
    %2924 = vmatprep.subr.mxu0 0.0
    %2925 = vmatpush1.msra.mxu0 0.0
    %2926 = vmatprep.subr.mxu0 0.0
    %2927 = vmatpush1.msra.mxu0 0.0
    %2928 = vmatprep.subr.mxu0 0.0
    %2929 = vmatpush1.msra.mxu0 0.0
    %2930 = vmatprep.subr.mxu0 0.0
    %2931 = vmatpush1.msra.mxu0 0.0
    %2932 = vmatprep.subr.mxu0 0.0
    %2933 = vmatpush1.msra.mxu0 0.0
    %2934 = vmatprep.subr.mxu0 0.0
    %2935 = vmatpush1.msra.mxu0 0.0
    %2936 = vmatprep.subr.mxu0 0.0
    %2937 = vmatpush1.msra.mxu0 0.0
    %2938 = vmatprep.subr.mxu0 0.0
    %2939 = vmatpush1.msra.mxu0 0.0
    %2940 = vmatprep.subr.mxu0 0.0
    %2941 = vmatpush1.msra.mxu0 0.0
    %2942 = vmatprep.subr.mxu0 0.0
    %2943 = vmatpush1.msra.mxu0 0.0
    %2944 = vmatprep.subr.mxu0 0.0
    %2945 = vmatpush1.msra.mxu0 0.0
    %2946 = vmatprep.subr.mxu0 0.0
    %2947 = vmatpush1.msra.mxu0 0.0
    %2948 = vmatprep.subr.mxu0 0.0
    %2949 = vmatpush1.msra.mxu0 0.0
    %2950 = vmatprep.subr.mxu0 0.0
    %2951 = vmatpush1.msra.mxu0 0.0
    %2952 = vmatprep.subr.mxu0 0.0
    %2953 = vmatpush1.msra.mxu0 0.0
    %2954 = vmatprep.subr.mxu0 0.0
    %2955 = vmatpush1.msra.mxu0 0.0
    %2956 = vmatprep.subr.mxu0 0.0
    %2957 = vmatpush1.msra.mxu0 0.0
    %2958 = vmatprep.subr.mxu0 0.0
    %2959 = vmatpush1.msra.mxu0 0.0
    %2960 = vmatprep.subr.mxu0 0.0
    %2961 = vmatpush1.msra.mxu0 0.0
    %2962 = vmatprep.subr.mxu0 0.0
    %2963 = vmatpush1.msra.mxu0 0.0
    %2964 = vmatprep.subr.mxu0 0.0
    %2965 = vmatpush1.msra.mxu0 0.0
    %2966 = vmatprep.subr.mxu0 0.0
    %2967 = vmatpush1.msra.mxu0 0.0
    %2968 = vmatprep.subr.mxu0 0.0
    %2969 = vmatpush1.msra.mxu0 0.0
    %2970 = vmatprep.subr.mxu0 0.0
    %2971 = vmatpush1.msra.mxu0 0.0
    %2972 = vmatprep.mubr.f32.mxu0 0.0
    %2973 = vmatmul.mubr.f32.gmra.mrb[0].mxu0 %v2906
    %v2974 = vpop.f32.mrb[0].mxu0
    %v2975 = vadd.f32 0.0, %v2974
    %v2976 = vpop.f32.mrb[0].mxu0
    %2977 = vdwg.mxu0
    %v2978 = vmul.f32 %v2975, %v2756
    %v2979 = vadd.f32 %v2978, 1e-05
    %v2980 = vrsqrt.pop %v2979
    %v2981 = vmul.f32 %v606, %v2980
    %v2983 = vsel %vm2758, %v2981, 0
    %2985 = vmatprep.subr.mxu0 0.0
    %2986 = vmatpush1.msra.mxu0 %v605
    %2987 = vmatprep.subr.mxu0 0.0
    %2988 = vmatpush1.msra.mxu0 0.0
    %2989 = vmatprep.subr.mxu0 0.0
    %2990 = vmatpush1.msra.mxu0 0.0
    %2991 = vmatprep.subr.mxu0 0.0
    %2992 = vmatpush1.msra.mxu0 0.0
    %2993 = vmatprep.subr.mxu0 0.0
    %2994 = vmatpush1.msra.mxu0 0.0
    %2995 = vmatprep.subr.mxu0 0.0
    %2996 = vmatpush1.msra.mxu0 0.0
    %2997 = vmatprep.subr.mxu0 0.0
    %2998 = vmatpush1.msra.mxu0 0.0
    %2999 = vmatprep.subr.mxu0 0.0
    %3000 = vmatpush1.msra.mxu0 0.0
    %3001 = vmatprep.subr.mxu0 0.0
    %3002 = vmatpush1.msra.mxu0 0.0
    %3003 = vmatprep.subr.mxu0 0.0
    %3004 = vmatpush1.msra.mxu0 0.0
    %3005 = vmatprep.subr.mxu0 0.0
    %3006 = vmatpush1.msra.mxu0 0.0
    %3007 = vmatprep.subr.mxu0 0.0
    %3008 = vmatpush1.msra.mxu0 0.0
    %3009 = vmatprep.subr.mxu0 0.0
    %3010 = vmatpush1.msra.mxu0 0.0
    %3011 = vmatprep.subr.mxu0 0.0
    %3012 = vmatpush1.msra.mxu0 0.0
    %3013 = vmatprep.subr.mxu0 0.0
    %3014 = vmatpush1.msra.mxu0 0.0
    %3015 = vmatprep.subr.mxu0 0.0
    %3016 = vmatpush1.msra.mxu0 0.0
    %3017 = vmatprep.subr.mxu0 0.0
    %3018 = vmatpush1.msra.mxu0 0.0
    %3019 = vmatprep.subr.mxu0 0.0
    %3020 = vmatpush1.msra.mxu0 0.0
    %3021 = vmatprep.subr.mxu0 0.0
    %3022 = vmatpush1.msra.mxu0 0.0
    %3023 = vmatprep.subr.mxu0 0.0
    %3024 = vmatpush1.msra.mxu0 0.0
    %3025 = vmatprep.subr.mxu0 0.0
    %3026 = vmatpush1.msra.mxu0 0.0
    %3027 = vmatprep.subr.mxu0 0.0
    %3028 = vmatpush1.msra.mxu0 0.0
    %3029 = vmatprep.subr.mxu0 0.0
    %3030 = vmatpush1.msra.mxu0 0.0
    %3031 = vmatprep.subr.mxu0 0.0
    %3032 = vmatpush1.msra.mxu0 0.0
    %3033 = vmatprep.subr.mxu0 0.0
    %3034 = vmatpush1.msra.mxu0 0.0
    %3035 = vmatprep.subr.mxu0 0.0
    %3036 = vmatpush1.msra.mxu0 0.0
    %3037 = vmatprep.subr.mxu0 0.0
    %3038 = vmatpush1.msra.mxu0 0.0
    %3039 = vmatprep.subr.mxu0 0.0
    %3040 = vmatpush1.msra.mxu0 0.0
    %3041 = vmatprep.subr.mxu0 0.0
    %3042 = vmatpush1.msra.mxu0 0.0
    %3043 = vmatprep.subr.mxu0 0.0
    %3044 = vmatpush1.msra.mxu0 0.0
    %3045 = vmatprep.subr.mxu0 0.0
    %3046 = vmatpush1.msra.mxu0 0.0
    %3047 = vmatprep.subr.mxu0 0.0
    %3048 = vmatpush1.msra.mxu0 0.0
    %3049 = vmatprep.mubr.f32.mxu0 0.0
    %3050 = vmatmul.mubr.f32.gmra.mrb[0].mxu0 %v2983
    %v3051 = vpop.f32.mrb[0].mxu0
    %v3052 = vadd.f32 0.0, %v3051
    %v3053 = vpop.f32.mrb[0].mxu0
    %3054 = vdwg.mxu0
    %v3056 = vsel %vm2758, %v607, 0
    %3058 = vmatprep.subr.mxu0 0.0
    %3059 = vmatpush1.msra.mxu0 %v605
    %3060 = vmatprep.subr.mxu0 0.0
    %3061 = vmatpush1.msra.mxu0 0.0
    %3062 = vmatprep.subr.mxu0 0.0
    %3063 = vmatpush1.msra.mxu0 0.0
    %3064 = vmatprep.subr.mxu0 0.0
    %3065 = vmatpush1.msra.mxu0 0.0
    %3066 = vmatprep.subr.mxu0 0.0
    %3067 = vmatpush1.msra.mxu0 0.0
    %3068 = vmatprep.subr.mxu0 0.0
    %3069 = vmatpush1.msra.mxu0 0.0
    %3070 = vmatprep.subr.mxu0 0.0
    %3071 = vmatpush1.msra.mxu0 0.0
    %3072 = vmatprep.subr.mxu0 0.0
    %3073 = vmatpush1.msra.mxu0 0.0
    %3074 = vmatprep.subr.mxu0 0.0
    %3075 = vmatpush1.msra.mxu0 0.0
    %3076 = vmatprep.subr.mxu0 0.0
    %3077 = vmatpush1.msra.mxu0 0.0
    %3078 = vmatprep.subr.mxu0 0.0
    %3079 = vmatpush1.msra.mxu0 0.0
    %3080 = vmatprep.subr.mxu0 0.0
    %3081 = vmatpush1.msra.mxu0 0.0
    %3082 = vmatprep.subr.mxu0 0.0
    %3083 = vmatpush1.msra.mxu0 0.0
    %3084 = vmatprep.subr.mxu0 0.0
    %3085 = vmatpush1.msra.mxu0 0.0
    %3086 = vmatprep.subr.mxu0 0.0
    %3087 = vmatpush1.msra.mxu0 0.0
    %3088 = vmatprep.subr.mxu0 0.0
    %3089 = vmatpush1.msra.mxu0 0.0
    %3090 = vmatprep.subr.mxu0 0.0
    %3091 = vmatpush1.msra.mxu0 0.0
    %3092 = vmatprep.subr.mxu0 0.0
    %3093 = vmatpush1.msra.mxu0 0.0
    %3094 = vmatprep.subr.mxu0 0.0
    %3095 = vmatpush1.msra.mxu0 0.0
    %3096 = vmatprep.subr.mxu0 0.0
    %3097 = vmatpush1.msra.mxu0 0.0
    %3098 = vmatprep.subr.mxu0 0.0
    %3099 = vmatpush1.msra.mxu0 0.0
    %3100 = vmatprep.subr.mxu0 0.0
    %3101 = vmatpush1.msra.mxu0 0.0
    %3102 = vmatprep.subr.mxu0 0.0
    %3103 = vmatpush1.msra.mxu0 0.0
    %3104 = vmatprep.subr.mxu0 0.0
    %3105 = vmatpush1.msra.mxu0 0.0
    %3106 = vmatprep.subr.mxu0 0.0
    %3107 = vmatpush1.msra.mxu0 0.0
    %3108 = vmatprep.subr.mxu0 0.0
    %3109 = vmatpush1.msra.mxu0 0.0
    %3110 = vmatprep.subr.mxu0 0.0
    %3111 = vmatpush1.msra.mxu0 0.0
    %3112 = vmatprep.subr.mxu0 0.0
    %3113 = vmatpush1.msra.mxu0 0.0
    %3114 = vmatprep.subr.mxu0 0.0
    %3115 = vmatpush1.msra.mxu0 0.0
    %3116 = vmatprep.subr.mxu0 0.0
    %3117 = vmatpush1.msra.mxu0 0.0
    %3118 = vmatprep.subr.mxu0 0.0
    %3119 = vmatpush1.msra.mxu0 0.0
    %3120 = vmatprep.subr.mxu0 0.0
    %3121 = vmatpush1.msra.mxu0 0.0
    %3122 = vmatprep.mubr.f32.mxu0 0.0
    %3123 = vmatmul.mubr.f32.gmra.mrb[0].mxu0 %v3056
    %v3124 = vpop.f32.mrb[0].mxu0
    %v3125 = vadd.f32 0.0, %v3124
    %v3126 = vpop.f32.mrb[0].mxu0
    %3127 = vdwg.mxu0
    %v3128 = vlaneseq
    %v3129 = vshrl.u32 %v3128, 7
    %v3130 = vsub.s32 0, %v3129
    %v3131 = vrot.slane %v3052, %v3130
    %v3132 = vmul.f32 %v2836, %v3131
    %v3133 = vmul.f32 %v2837, %v3131
    %v3134 = vmul.f32 %v2838, %v3131
    %v3135 = vmul.f32 %v2839, %v3131
    %v3136 = vmul.f32 %v2840, %v3131
    %v3137 = vmul.f32 %v2841, %v3131
    %v3138 = vmul.f32 %v2842, %v3131
    %v3139 = vmul.f32 %v2843, %v3131
    %v3140 = vmul.f32 %v2844, %v3131
    %v3141 = vmul.f32 %v2845, %v3131
    %v3142 = vmul.f32 %v2846, %v3131
    %v3143 = vmul.f32 %v2847, %v3131
    %v3144 = vmul.f32 %v2848, %v3131
    %v3145 = vmul.f32 %v2849, %v3131
    %v3146 = vmul.f32 %v2850, %v3131
    %v3147 = vmul.f32 %v2851, %v3131
    %v3148 = vlaneseq
    %v3149 = vshrl.u32 %v3148, 7
    %v3150 = vsub.s32 0, %v3149
    %v3151 = vrot.slane %v3125, %v3150
    %v3152 = vadd.f32 %v3132, %v3151
    %v3153 = vadd.f32 %v3133, %v3151
    %v3154 = vadd.f32 %v3134, %v3151
    %v3155 = vadd.f32 %v3135, %v3151
    %v3156 = vadd.f32 %v3136, %v3151
    %v3157 = vadd.f32 %v3137, %v3151
    %v3158 = vadd.f32 %v3138, %v3151
    %v3159 = vadd.f32 %v3139, %v3151
    %v3160 = vadd.f32 %v3140, %v3151
    %v3161 = vadd.f32 %v3141, %v3151
    %v3162 = vadd.f32 %v3142, %v3151
    %v3163 = vadd.f32 %v3143, %v3151
    %v3164 = vadd.f32 %v3144, %v3151
    %v3165 = vadd.f32 %v3145, %v3151
    %v3166 = vadd.f32 %v3146, %v3151
    %v3167 = vadd.f32 %v3147, %v3151
    %v3168 = vmax.f32 %v3152, 0.0
    %v3169 = vmax.f32 %v3153, 0.0
    %v3170 = vmax.f32 %v3154, 0.0
    %v3171 = vmax.f32 %v3155, 0.0
    %v3172 = vmax.f32 %v3156, 0.0
    %v3173 = vmax.f32 %v3157, 0.0
    %v3174 = vmax.f32 %v3158, 0.0
    %v3175 = vmax.f32 %v3159, 0.0
    %v3176 = vmax.f32 %v3160, 0.0
    %v3177 = vmax.f32 %v3161, 0.0
    %v3178 = vmax.f32 %v3162, 0.0
    %v3179 = vmax.f32 %v3163, 0.0
    %v3180 = vmax.f32 %v3164, 0.0
    %v3181 = vmax.f32 %v3165, 0.0
    %v3182 = vmax.f32 %v3166, 0.0
    %v3183 = vmax.f32 %v3167, 0.0
    %3184 = vst.msk [vmem:[%s579 + $0x1] sm:$0xff] %vm537, %v3168
    %3185 = vst.msk [vmem:[%s579 + $0x11] sm:$0xff] %vm537, %v3169
    %3186 = vst.msk [vmem:[%s579 + $0x21] sm:$0xff] %vm537, %v3170
    %3187 = vst.msk [vmem:[%s579 + $0x31] sm:$0xff] %vm537, %v3171
    %3188 = vst.msk [vmem:[%s579 + $0x41] sm:$0xff] %vm537, %v3172
    %3189 = vst.msk [vmem:[%s579 + $0x51] sm:$0xff] %vm537, %v3173
    %3190 = vst.msk [vmem:[%s579 + $0x61] sm:$0xff] %vm537, %v3174
    %3191 = vst.msk [vmem:[%s579 + $0x71] sm:$0xff] %vm537, %v3175
    %3192 = vst.msk [vmem:[%s579 + $0xa1] sm:$0xff] %vm537, %v3176
    %3193 = vst.msk [vmem:[%s579 + $0xb1] sm:$0xff] %vm537, %v3177
    %3194 = vst.msk [vmem:[%s579 + $0xc1] sm:$0xff] %vm537, %v3178
    %3195 = vst.msk [vmem:[%s579 + $0xd1] sm:$0xff] %vm537, %v3179
    %3196 = vst.msk [vmem:[%s579 + $0xe1] sm:$0xff] %vm537, %v3180
    %3197 = vst.msk [vmem:[%s579 + $0xf1] sm:$0xff] %vm537, %v3181
    %3198 = vst.msk [vmem:[%s579 + $0x101] sm:$0xff] %vm537, %v3182
    %3199 = vst.msk [vmem:[%s579 + $0x111] sm:$0xff] %vm537, %v3183
    %v3200 = vld [vmem:[%s5] sm:$0x1]
    %v3201 = vld [vmem:[%s6] sm:$0x1]
    %v3202 = vld [vmem:[#allocation2] sm:$0xff]
    %v3203 = vld [vmem:[#allocation2 + $0x10] sm:$0xff]
    %v3204 = vld [vmem:[#allocation2 + $0x20] sm:$0xff]
    %v3205 = vld [vmem:[#allocation2 + $0x30] sm:$0xff]
    %v3206 = vld [vmem:[#allocation2 + $0x40] sm:$0xff]
    %v3207 = vld [vmem:[#allocation2 + $0x50] sm:$0xff]
    %v3208 = vld [vmem:[#allocation2 + $0x60] sm:$0xff]
    %v3209 = vld [vmem:[#allocation2 + $0x70] sm:$0xff]
    %v3210 = vld [vmem:[#allocation2 + $0xa0] sm:$0xff]
    %v3211 = vld [vmem:[#allocation2 + $0xb0] sm:$0xff]
    %v3212 = vld [vmem:[#allocation2 + $0xc0] sm:$0xff]
    %v3213 = vld [vmem:[#allocation2 + $0xd0] sm:$0xff]
    %v3214 = vld [vmem:[#allocation2 + $0xe0] sm:$0xff]
    %v3215 = vld [vmem:[#allocation2 + $0xf0] sm:$0xff]
    %v3216 = vld [vmem:[#allocation2 + $0x100] sm:$0xff]
    %v3217 = vld [vmem:[#allocation2 + $0x110] sm:$0xff]
    %v3218 = vld [vmem:[#allocation7] sm:$0xff]
    %v3219 = vld [vmem:[#allocation7 + $0x8] sm:$0xff]
    %v3220 = vld [vmem:[#allocation7 + $0x10] sm:$0xff]
    %v3221 = vld [vmem:[#allocation7 + $0x18] sm:$0xff]
    %v3222 = vld [vmem:[#allocation7 + $0x20] sm:$0xff]
    %v3223 = vld [vmem:[#allocation7 + $0x28] sm:$0xff]
    %v3224 = vld [vmem:[#allocation7 + $0x30] sm:$0xff]
    %v3225 = vld [vmem:[#allocation7 + $0x38] sm:$0xff]
    %v3226 = vld [vmem:[#allocation2 + $0x1] sm:$0xff]
    %v3227 = vld [vmem:[#allocation2 + $0x11] sm:$0xff]
    %v3228 = vld [vmem:[#allocation2 + $0x21] sm:$0xff]
    %v3229 = vld [vmem:[#allocation2 + $0x31] sm:$0xff]
    %v3230 = vld [vmem:[#allocation2 + $0x41] sm:$0xff]
    %v3231 = vld [vmem:[#allocation2 + $0x51] sm:$0xff]
    %v3232 = vld [vmem:[#allocation2 + $0x61] sm:$0xff]
    %v3233 = vld [vmem:[#allocation2 + $0x71] sm:$0xff]
    %v3234 = vld [vmem:[#allocation2 + $0xa1] sm:$0xff]
    %v3235 = vld [vmem:[#allocation2 + $0xb1] sm:$0xff]
    %v3236 = vld [vmem:[#allocation2 + $0xc1] sm:$0xff]
    %v3237 = vld [vmem:[#allocation2 + $0xd1] sm:$0xff]
    %v3238 = vld [vmem:[#allocation2 + $0xe1] sm:$0xff]
    %v3239 = vld [vmem:[#allocation2 + $0xf1] sm:$0xff]
    %v3240 = vld [vmem:[#allocation2 + $0x101] sm:$0xff]
    %v3241 = vld [vmem:[#allocation2 + $0x111] sm:$0xff]
    %s3242 = scalar_lea.vmem [#allocation7], 64
    %v3243 = vld [vmem:[%s3242] sm:$0xff]
    %v3244 = vld [vmem:[%s3242 + $0x8] sm:$0xff]
    %v3245 = vld [vmem:[%s3242 + $0x10] sm:$0xff]
    %v3246 = vld [vmem:[%s3242 + $0x18] sm:$0xff]
    %v3247 = vld [vmem:[%s3242 + $0x20] sm:$0xff]
    %v3248 = vld [vmem:[%s3242 + $0x28] sm:$0xff]
    %v3249 = vld [vmem:[%s3242 + $0x30] sm:$0xff]
    %v3250 = vld [vmem:[%s3242 + $0x38] sm:$0xff]
    %v3252 = vsel %vm537, %v3226, 0
    %v3255 = vsel %vm537, %v3227, 0
    %v3258 = vsel %vm537, %v3228, 0
    %v3261 = vsel %vm537, %v3229, 0
    %v3264 = vsel %vm537, %v3230, 0
    %v3267 = vsel %vm537, %v3231, 0
    %v3270 = vsel %vm537, %v3232, 0
    %v3273 = vsel %vm537, %v3233, 0
    %v3276 = vsel %vm537, %v3234, 0
    %v3279 = vsel %vm537, %v3235, 0
    %v3282 = vsel %vm537, %v3236, 0
    %v3285 = vsel %vm537, %v3237, 0
    %v3288 = vsel %vm537, %v3238, 0
    %v3291 = vsel %vm537, %v3239, 0
    %v3294 = vsel %vm537, %v3240, 0
    %v3297 = vsel %vm537, %v3241, 0
    %3299 = vmatprep.subr.mxu0 0.0
    %3300 = vmatpush1.msra.mxu0 %v3243
    %3301 = vmatprep.subr.mxu0 0.0
    %3302 = vmatpush1.msra.mxu0 %v3244
    %3303 = vmatprep.subr.mxu0 0.0
    %3304 = vmatpush1.msra.mxu0 %v3245
    %3305 = vmatprep.subr.mxu0 0.0
    %3306 = vmatpush1.msra.mxu0 %v3246
    %3307 = vmatprep.subr.mxu0 0.0
    %3308 = vmatpush1.msra.mxu0 %v3247
    %3309 = vmatprep.subr.mxu0 0.0
    %3310 = vmatpush1.msra.mxu0 %v3248
    %3311 = vmatprep.subr.mxu0 0.0
    %3312 = vmatpush1.msra.mxu0 %v3249
    %3313 = vmatprep.subr.mxu0 0.0
    %3314 = vmatpush1.msra.mxu0 %v3250
    %3315 = vmatprep.subr.mxu0 0.0
    %3316 = vmatpush1.msra.mxu0 0.0
    %3317 = vmatprep.subr.mxu0 0.0
    %3318 = vmatpush1.msra.mxu0 0.0
    %3319 = vmatprep.subr.mxu0 0.0
    %3320 = vmatpush1.msra.mxu0 0.0
    %3321 = vmatprep.subr.mxu0 0.0
    %3322 = vmatpush1.msra.mxu0 0.0
    %3323 = vmatprep.subr.mxu0 0.0
    %3324 = vmatpush1.msra.mxu0 0.0
    %3325 = vmatprep.subr.mxu0 0.0
    %3326 = vmatpush1.msra.mxu0 0.0
    %3327 = vmatprep.subr.mxu0 0.0
    %3328 = vmatpush1.msra.mxu0 0.0
    %3329 = vmatprep.subr.mxu0 0.0
    %3330 = vmatpush1.msra.mxu0 0.0
    %3331 = vmatprep.subr.mxu0 0.0
    %3332 = vmatpush1.msra.mxu0 0.0
    %3333 = vmatprep.subr.mxu0 0.0
    %3334 = vmatpush1.msra.mxu0 0.0
    %3335 = vmatprep.subr.mxu0 0.0
    %3336 = vmatpush1.msra.mxu0 0.0
    %3337 = vmatprep.subr.mxu0 0.0
    %3338 = vmatpush1.msra.mxu0 0.0
    %3339 = vmatprep.subr.mxu0 0.0
    %3340 = vmatpush1.msra.mxu0 0.0
    %3341 = vmatprep.subr.mxu0 0.0
    %3342 = vmatpush1.msra.mxu0 0.0
    %3343 = vmatprep.subr.mxu0 0.0
    %3344 = vmatpush1.msra.mxu0 0.0
    %3345 = vmatprep.subr.mxu0 0.0
    %3346 = vmatpush1.msra.mxu0 0.0
    %3347 = vmatprep.subr.mxu0 0.0
    %3348 = vmatpush1.msra.mxu0 0.0
    %3349 = vmatprep.subr.mxu0 0.0
    %3350 = vmatpush1.msra.mxu0 0.0
    %3351 = vmatprep.subr.mxu0 0.0
    %3352 = vmatpush1.msra.mxu0 0.0
    %3353 = vmatprep.subr.mxu0 0.0
    %3354 = vmatpush1.msra.mxu0 0.0
    %3355 = vmatprep.subr.mxu0 0.0
    %3356 = vmatpush1.msra.mxu0 0.0
    %3357 = vmatprep.subr.mxu0 0.0
    %3358 = vmatpush1.msra.mxu0 0.0
    %3359 = vmatprep.subr.mxu0 0.0
    %3360 = vmatpush1.msra.mxu0 0.0
    %3361 = vmatprep.subr.mxu0 0.0
    %3362 = vmatpush1.msra.mxu0 0.0
    %3363 = vmatprep.mubr.f32.mxu0 0.0
    %3364 = vmatmul.mubr.f32.gmra.mrb[0].mxu0 %v3252
    %v3365 = vpop.f32.mrb[0].mxu0
    %v3366 = vadd.f32 0.0, %v3365
    %v3367 = vpop.f32.mrb[0].mxu0
    %3368 = vmatprep.mubr.f32.mxu0 0.0
    %3369 = vmatmul.mubr.f32.gmra.mrb[0].mxu0 %v3255
    %v3370 = vpop.f32.mrb[0].mxu0
    %v3371 = vadd.f32 0.0, %v3370
    %v3372 = vpop.f32.mrb[0].mxu0
    %3373 = vmatprep.mubr.f32.mxu0 0.0
    %3374 = vmatmul.mubr.f32.gmra.mrb[0].mxu0 %v3258
    %v3375 = vpop.f32.mrb[0].mxu0
    %v3376 = vadd.f32 0.0, %v3375
    %v3377 = vpop.f32.mrb[0].mxu0
    %3378 = vmatprep.mubr.f32.mxu0 0.0
    %3379 = vmatmul.mubr.f32.gmra.mrb[0].mxu0 %v3261
    %v3380 = vpop.f32.mrb[0].mxu0
    %v3381 = vadd.f32 0.0, %v3380
    %v3382 = vpop.f32.mrb[0].mxu0
    %3383 = vmatprep.mubr.f32.mxu0 0.0
    %3384 = vmatmul.mubr.f32.gmra.mrb[0].mxu0 %v3264
    %v3385 = vpop.f32.mrb[0].mxu0
    %v3386 = vadd.f32 0.0, %v3385
    %v3387 = vpop.f32.mrb[0].mxu0
    %3388 = vmatprep.mubr.f32.mxu0 0.0
    %3389 = vmatmul.mubr.f32.gmra.mrb[0].mxu0 %v3267
    %v3390 = vpop.f32.mrb[0].mxu0
    %v3391 = vadd.f32 0.0, %v3390
    %v3392 = vpop.f32.mrb[0].mxu0
    %3393 = vmatprep.mubr.f32.mxu0 0.0
    %3394 = vmatmul.mubr.f32.gmra.mrb[0].mxu0 %v3270
    %v3395 = vpop.f32.mrb[0].mxu0
    %v3396 = vadd.f32 0.0, %v3395
    %v3397 = vpop.f32.mrb[0].mxu0
    %3398 = vmatprep.mubr.f32.mxu0 0.0
    %3399 = vmatmul.mubr.f32.gmra.mrb[0].mxu0 %v3273
    %v3400 = vpop.f32.mrb[0].mxu0
    %v3401 = vadd.f32 0.0, %v3400
    %v3402 = vpop.f32.mrb[0].mxu0
    %3403 = vmatprep.mubr.f32.mxu0 0.0
    %3404 = vmatmul.mubr.f32.gmra.mrb[0].mxu0 %v3276
    %v3405 = vpop.f32.mrb[0].mxu0
    %v3406 = vadd.f32 0.0, %v3405
    %v3407 = vpop.f32.mrb[0].mxu0
    %3408 = vmatprep.mubr.f32.mxu0 0.0
    %3409 = vmatmul.mubr.f32.gmra.mrb[0].mxu0 %v3279
    %v3410 = vpop.f32.mrb[0].mxu0
    %v3411 = vadd.f32 0.0, %v3410
    %v3412 = vpop.f32.mrb[0].mxu0
    %3413 = vmatprep.mubr.f32.mxu0 0.0
    %3414 = vmatmul.mubr.f32.gmra.mrb[0].mxu0 %v3282
    %v3415 = vpop.f32.mrb[0].mxu0
    %v3416 = vadd.f32 0.0, %v3415
    %v3417 = vpop.f32.mrb[0].mxu0
    %3418 = vmatprep.mubr.f32.mxu0 0.0
    %3419 = vmatmul.mubr.f32.gmra.mrb[0].mxu0 %v3285
    %v3420 = vpop.f32.mrb[0].mxu0
    %v3421 = vadd.f32 0.0, %v3420
    %v3422 = vpop.f32.mrb[0].mxu0
    %3423 = vmatprep.mubr.f32.mxu0 0.0
    %3424 = vmatmul.mubr.f32.gmra.mrb[0].mxu0 %v3288
    %v3425 = vpop.f32.mrb[0].mxu0
    %v3426 = vadd.f32 0.0, %v3425
    %v3427 = vpop.f32.mrb[0].mxu0
    %3428 = vmatprep.mubr.f32.mxu0 0.0
    %3429 = vmatmul.mubr.f32.gmra.mrb[0].mxu0 %v3291
    %v3430 = vpop.f32.mrb[0].mxu0
    %v3431 = vadd.f32 0.0, %v3430
    %v3432 = vpop.f32.mrb[0].mxu0
    %3433 = vmatprep.mubr.f32.mxu0 0.0
    %3434 = vmatmul.mubr.f32.gmra.mrb[0].mxu0 %v3294
    %v3435 = vpop.f32.mrb[0].mxu0
    %v3436 = vadd.f32 0.0, %v3435
    %v3437 = vpop.f32.mrb[0].mxu0
    %3438 = vmatprep.mubr.f32.mxu0 0.0
    %3439 = vmatmul.mubr.f32.gmra.mrb[0].mxu0 %v3297
    %v3440 = vpop.f32.mrb[0].mxu0
    %v3441 = vadd.f32 0.0, %v3440
    %v3442 = vpop.f32.mrb[0].mxu0
    %3443 = vdwg.mxu0
    %v3445 = vsel %vm537, %v3202, 0
    %v3448 = vsel %vm537, %v3203, 0
    %v3451 = vsel %vm537, %v3204, 0
    %v3454 = vsel %vm537, %v3205, 0
    %v3457 = vsel %vm537, %v3206, 0
    %v3460 = vsel %vm537, %v3207, 0
    %v3463 = vsel %vm537, %v3208, 0
    %v3466 = vsel %vm537, %v3209, 0
    %v3469 = vsel %vm537, %v3210, 0
    %v3472 = vsel %vm537, %v3211, 0
    %v3475 = vsel %vm537, %v3212, 0
    %v3478 = vsel %vm537, %v3213, 0
    %v3481 = vsel %vm537, %v3214, 0
    %v3484 = vsel %vm537, %v3215, 0
    %v3487 = vsel %vm537, %v3216, 0
    %v3490 = vsel %vm537, %v3217, 0
    %3492 = vmatprep.subr.mxu0 0.0
    %3493 = vmatpush1.msra.mxu0 %v3218
    %3494 = vmatprep.subr.mxu0 0.0
    %3495 = vmatpush1.msra.mxu0 %v3219
    %3496 = vmatprep.subr.mxu0 0.0
    %3497 = vmatpush1.msra.mxu0 %v3220
    %3498 = vmatprep.subr.mxu0 0.0
    %3499 = vmatpush1.msra.mxu0 %v3221
    %3500 = vmatprep.subr.mxu0 0.0
    %3501 = vmatpush1.msra.mxu0 %v3222
    %3502 = vmatprep.subr.mxu0 0.0
    %3503 = vmatpush1.msra.mxu0 %v3223
    %3504 = vmatprep.subr.mxu0 0.0
    %3505 = vmatpush1.msra.mxu0 %v3224
    %3506 = vmatprep.subr.mxu0 0.0
    %3507 = vmatpush1.msra.mxu0 %v3225
    %3508 = vmatprep.subr.mxu0 0.0
    %3509 = vmatpush1.msra.mxu0 0.0
    %3510 = vmatprep.subr.mxu0 0.0
    %3511 = vmatpush1.msra.mxu0 0.0
    %3512 = vmatprep.subr.mxu0 0.0
    %3513 = vmatpush1.msra.mxu0 0.0
    %3514 = vmatprep.subr.mxu0 0.0
    %3515 = vmatpush1.msra.mxu0 0.0
    %3516 = vmatprep.subr.mxu0 0.0
    %3517 = vmatpush1.msra.mxu0 0.0
    %3518 = vmatprep.subr.mxu0 0.0
    %3519 = vmatpush1.msra.mxu0 0.0
    %3520 = vmatprep.subr.mxu0 0.0
    %3521 = vmatpush1.msra.mxu0 0.0
    %3522 = vmatprep.subr.mxu0 0.0
    %3523 = vmatpush1.msra.mxu0 0.0
    %3524 = vmatprep.subr.mxu0 0.0
    %3525 = vmatpush1.msra.mxu0 0.0
    %3526 = vmatprep.subr.mxu0 0.0
    %3527 = vmatpush1.msra.mxu0 0.0
    %3528 = vmatprep.subr.mxu0 0.0
    %3529 = vmatpush1.msra.mxu0 0.0
    %3530 = vmatprep.subr.mxu0 0.0
    %3531 = vmatpush1.msra.mxu0 0.0
    %3532 = vmatprep.subr.mxu0 0.0
    %3533 = vmatpush1.msra.mxu0 0.0
    %3534 = vmatprep.subr.mxu0 0.0
    %3535 = vmatpush1.msra.mxu0 0.0
    %3536 = vmatprep.subr.mxu0 0.0
    %3537 = vmatpush1.msra.mxu0 0.0
    %3538 = vmatprep.subr.mxu0 0.0
    %3539 = vmatpush1.msra.mxu0 0.0
    %3540 = vmatprep.subr.mxu0 0.0
    %3541 = vmatpush1.msra.mxu0 0.0
    %3542 = vmatprep.subr.mxu0 0.0
    %3543 = vmatpush1.msra.mxu0 0.0
    %3544 = vmatprep.subr.mxu0 0.0
    %3545 = vmatpush1.msra.mxu0 0.0
    %3546 = vmatprep.subr.mxu0 0.0
    %3547 = vmatpush1.msra.mxu0 0.0
    %3548 = vmatprep.subr.mxu0 0.0
    %3549 = vmatpush1.msra.mxu0 0.0
    %3550 = vmatprep.subr.mxu0 0.0
    %3551 = vmatpush1.msra.mxu0 0.0
    %3552 = vmatprep.subr.mxu0 0.0
    %3553 = vmatpush1.msra.mxu0 0.0
    %3554 = vmatprep.subr.mxu0 0.0
    %3555 = vmatpush1.msra.mxu0 0.0
    %3556 = vmatprep.mubr.f32.mxu0 0.0
    %3557 = vmatmul.mubr.f32.gmra.mrb[0].mxu0 %v3445
    %v3558 = vpop.f32.mrb[0].mxu0
    %v3559 = vadd.f32 %v3366, %v3558
    %v3560 = vpop.f32.mrb[0].mxu0
    %3561 = vmatprep.mubr.f32.mxu0 0.0
    %3562 = vmatmul.mubr.f32.gmra.mrb[0].mxu0 %v3448
    %v3563 = vpop.f32.mrb[0].mxu0
    %v3564 = vadd.f32 %v3371, %v3563
    %v3565 = vpop.f32.mrb[0].mxu0
    %3566 = vmatprep.mubr.f32.mxu0 0.0
    %3567 = vmatmul.mubr.f32.gmra.mrb[0].mxu0 %v3451
    %v3568 = vpop.f32.mrb[0].mxu0
    %v3569 = vadd.f32 %v3376, %v3568
    %v3570 = vpop.f32.mrb[0].mxu0
    %3571 = vmatprep.mubr.f32.mxu0 0.0
    %3572 = vmatmul.mubr.f32.gmra.mrb[0].mxu0 %v3454
    %v3573 = vpop.f32.mrb[0].mxu0
    %v3574 = vadd.f32 %v3381, %v3573
    %v3575 = vpop.f32.mrb[0].mxu0
    %3576 = vmatprep.mubr.f32.mxu0 0.0
    %3577 = vmatmul.mubr.f32.gmra.mrb[0].mxu0 %v3457
    %v3578 = vpop.f32.mrb[0].mxu0
    %v3579 = vadd.f32 %v3386, %v3578
    %v3580 = vpop.f32.mrb[0].mxu0
    %3581 = vmatprep.mubr.f32.mxu0 0.0
    %3582 = vmatmul.mubr.f32.gmra.mrb[0].mxu0 %v3460
    %v3583 = vpop.f32.mrb[0].mxu0
    %v3584 = vadd.f32 %v3391, %v3583
    %v3585 = vpop.f32.mrb[0].mxu0
    %3586 = vmatprep.mubr.f32.mxu0 0.0
    %3587 = vmatmul.mubr.f32.gmra.mrb[0].mxu0 %v3463
    %v3588 = vpop.f32.mrb[0].mxu0
    %v3589 = vadd.f32 %v3396, %v3588
    %v3590 = vpop.f32.mrb[0].mxu0
    %3591 = vmatprep.mubr.f32.mxu0 0.0
    %3592 = vmatmul.mubr.f32.gmra.mrb[0].mxu0 %v3466
    %v3593 = vpop.f32.mrb[0].mxu0
    %v3594 = vadd.f32 %v3401, %v3593
    %v3595 = vpop.f32.mrb[0].mxu0
    %3596 = vmatprep.mubr.f32.mxu0 0.0
    %3597 = vmatmul.mubr.f32.gmra.mrb[0].mxu0 %v3469
    %v3598 = vpop.f32.mrb[0].mxu0
    %v3599 = vadd.f32 %v3406, %v3598
    %v3600 = vpop.f32.mrb[0].mxu0
    %3601 = vmatprep.mubr.f32.mxu0 0.0
    %3602 = vmatmul.mubr.f32.gmra.mrb[0].mxu0 %v3472
    %v3603 = vpop.f32.mrb[0].mxu0
    %v3604 = vadd.f32 %v3411, %v3603
    %v3605 = vpop.f32.mrb[0].mxu0
    %3606 = vmatprep.mubr.f32.mxu0 0.0
    %3607 = vmatmul.mubr.f32.gmra.mrb[0].mxu0 %v3475
    %v3608 = vpop.f32.mrb[0].mxu0
    %v3609 = vadd.f32 %v3416, %v3608
    %v3610 = vpop.f32.mrb[0].mxu0
    %3611 = vmatprep.mubr.f32.mxu0 0.0
    %3612 = vmatmul.mubr.f32.gmra.mrb[0].mxu0 %v3478
    %v3613 = vpop.f32.mrb[0].mxu0
    %v3614 = vadd.f32 %v3421, %v3613
    %v3615 = vpop.f32.mrb[0].mxu0
    %3616 = vmatprep.mubr.f32.mxu0 0.0
    %3617 = vmatmul.mubr.f32.gmra.mrb[0].mxu0 %v3481
    %v3618 = vpop.f32.mrb[0].mxu0
    %v3619 = vadd.f32 %v3426, %v3618
    %v3620 = vpop.f32.mrb[0].mxu0
    %3621 = vmatprep.mubr.f32.mxu0 0.0
    %3622 = vmatmul.mubr.f32.gmra.mrb[0].mxu0 %v3484
    %v3623 = vpop.f32.mrb[0].mxu0
    %v3624 = vadd.f32 %v3431, %v3623
    %v3625 = vpop.f32.mrb[0].mxu0
    %3626 = vmatprep.mubr.f32.mxu0 0.0
    %3627 = vmatmul.mubr.f32.gmra.mrb[0].mxu0 %v3487
    %v3628 = vpop.f32.mrb[0].mxu0
    %v3629 = vadd.f32 %v3436, %v3628
    %v3630 = vpop.f32.mrb[0].mxu0
    %3631 = vmatprep.mubr.f32.mxu0 0.0
    %3632 = vmatmul.mubr.f32.gmra.mrb[0].mxu0 %v3490
    %v3633 = vpop.f32.mrb[0].mxu0
    %v3634 = vadd.f32 %v3441, %v3633
    %v3635 = vpop.f32.mrb[0].mxu0
    %3636 = vdwg.mxu0
    %v3637 = vld [vmem:[#allocation2 + $0x2] sm:$0xff]
    %v3638 = vld [vmem:[#allocation2 + $0x12] sm:$0xff]
    %v3639 = vld [vmem:[#allocation2 + $0x22] sm:$0xff]
    %v3640 = vld [vmem:[#allocation2 + $0x32] sm:$0xff]
    %v3641 = vld [vmem:[#allocation2 + $0x42] sm:$0xff]
    %v3642 = vld [vmem:[#allocation2 + $0x52] sm:$0xff]
    %v3643 = vld [vmem:[#allocation2 + $0x62] sm:$0xff]
    %v3644 = vld [vmem:[#allocation2 + $0x72] sm:$0xff]
    %v3645 = vld [vmem:[#allocation2 + $0xa2] sm:$0xff]
    %v3646 = vld [vmem:[#allocation2 + $0xb2] sm:$0xff]
    %v3647 = vld [vmem:[#allocation2 + $0xc2] sm:$0xff]
    %v3648 = vld [vmem:[#allocation2 + $0xd2] sm:$0xff]
    %v3649 = vld [vmem:[#allocation2 + $0xe2] sm:$0xff]
    %v3650 = vld [vmem:[#allocation2 + $0xf2] sm:$0xff]
    %v3651 = vld [vmem:[#allocation2 + $0x102] sm:$0xff]
    %v3652 = vld [vmem:[#allocation2 + $0x112] sm:$0xff]
    %s3653 = scalar_lea.vmem [#allocation7], 128
    %v3654 = vld [vmem:[%s3653] sm:$0xff]
    %v3655 = vld [vmem:[%s3653 + $0x8] sm:$0xff]
    %v3656 = vld [vmem:[%s3653 + $0x10] sm:$0xff]
    %v3657 = vld [vmem:[%s3653 + $0x18] sm:$0xff]
    %v3658 = vld [vmem:[%s3653 + $0x20] sm:$0xff]
    %v3659 = vld [vmem:[%s3653 + $0x28] sm:$0xff]
    %v3660 = vld [vmem:[%s3653 + $0x30] sm:$0xff]
    %v3661 = vld [vmem:[%s3653 + $0x38] sm:$0xff]
    %v3663 = vsel %vm537, %v3637, 0
    %v3666 = vsel %vm537, %v3638, 0
    %v3669 = vsel %vm537, %v3639, 0
    %v3672 = vsel %vm537, %v3640, 0
    %v3675 = vsel %vm537, %v3641, 0
    %v3678 = vsel %vm537, %v3642, 0
    %v3681 = vsel %vm537, %v3643, 0
    %v3684 = vsel %vm537, %v3644, 0
    %v3687 = vsel %vm537, %v3645, 0
    %v3690 = vsel %vm537, %v3646, 0
    %v3693 = vsel %vm537, %v3647, 0
    %v3696 = vsel %vm537, %v3648, 0
    %v3699 = vsel %vm537, %v3649, 0
    %v3702 = vsel %vm537, %v3650, 0
    %v3705 = vsel %vm537, %v3651, 0
    %v3708 = vsel %vm537, %v3652, 0
    %3710 = vmatprep.subr.mxu0 0.0
    %3711 = vmatpush1.msra.mxu0 %v3654
    %3712 = vmatprep.subr.mxu0 0.0
    %3713 = vmatpush1.msra.mxu0 %v3655
    %3714 = vmatprep.subr.mxu0 0.0
    %3715 = vmatpush1.msra.mxu0 %v3656
    %3716 = vmatprep.subr.mxu0 0.0
    %3717 = vmatpush1.msra.mxu0 %v3657
    %3718 = vmatprep.subr.mxu0 0.0
    %3719 = vmatpush1.msra.mxu0 %v3658
    %3720 = vmatprep.subr.mxu0 0.0
    %3721 = vmatpush1.msra.mxu0 %v3659
    %3722 = vmatprep.subr.mxu0 0.0
    %3723 = vmatpush1.msra.mxu0 %v3660
    %3724 = vmatprep.subr.mxu0 0.0
    %3725 = vmatpush1.msra.mxu0 %v3661
    %3726 = vmatprep.subr.mxu0 0.0
    %3727 = vmatpush1.msra.mxu0 0.0
    %3728 = vmatprep.subr.mxu0 0.0
    %3729 = vmatpush1.msra.mxu0 0.0
    %3730 = vmatprep.subr.mxu0 0.0
    %3731 = vmatpush1.msra.mxu0 0.0
    %3732 = vmatprep.subr.mxu0 0.0
    %3733 = vmatpush1.msra.mxu0 0.0
    %3734 = vmatprep.subr.mxu0 0.0
    %3735 = vmatpush1.msra.mxu0 0.0
    %3736 = vmatprep.subr.mxu0 0.0
    %3737 = vmatpush1.msra.mxu0 0.0
    %3738 = vmatprep.subr.mxu0 0.0
    %3739 = vmatpush1.msra.mxu0 0.0
    %3740 = vmatprep.subr.mxu0 0.0
    %3741 = vmatpush1.msra.mxu0 0.0
    %3742 = vmatprep.subr.mxu0 0.0
    %3743 = vmatpush1.msra.mxu0 0.0
    %3744 = vmatprep.subr.mxu0 0.0
    %3745 = vmatpush1.msra.mxu0 0.0
    %3746 = vmatprep.subr.mxu0 0.0
    %3747 = vmatpush1.msra.mxu0 0.0
    %3748 = vmatprep.subr.mxu0 0.0
    %3749 = vmatpush1.msra.mxu0 0.0
    %3750 = vmatprep.subr.mxu0 0.0
    %3751 = vmatpush1.msra.mxu0 0.0
    %3752 = vmatprep.subr.mxu0 0.0
    %3753 = vmatpush1.msra.mxu0 0.0
    %3754 = vmatprep.subr.mxu0 0.0
    %3755 = vmatpush1.msra.mxu0 0.0
    %3756 = vmatprep.subr.mxu0 0.0
    %3757 = vmatpush1.msra.mxu0 0.0
    %3758 = vmatprep.subr.mxu0 0.0
    %3759 = vmatpush1.msra.mxu0 0.0
    %3760 = vmatprep.subr.mxu0 0.0
    %3761 = vmatpush1.msra.mxu0 0.0
    %3762 = vmatprep.subr.mxu0 0.0
    %3763 = vmatpush1.msra.mxu0 0.0
    %3764 = vmatprep.subr.mxu0 0.0
    %3765 = vmatpush1.msra.mxu0 0.0
    %3766 = vmatprep.subr.mxu0 0.0
    %3767 = vmatpush1.msra.mxu0 0.0
    %3768 = vmatprep.subr.mxu0 0.0
    %3769 = vmatpush1.msra.mxu0 0.0
    %3770 = vmatprep.subr.mxu0 0.0
    %3771 = vmatpush1.msra.mxu0 0.0
    %3772 = vmatprep.subr.mxu0 0.0
    %3773 = vmatpush1.msra.mxu0 0.0
    %3774 = vmatprep.mubr.f32.mxu0 0.0
    %3775 = vmatmul.mubr.f32.gmra.mrb[0].mxu0 %v3663
    %v3776 = vpop.f32.mrb[0].mxu0
    %v3777 = vadd.f32 0.0, %v3776
    %v3778 = vpop.f32.mrb[0].mxu0
    %3779 = vmatprep.mubr.f32.mxu0 0.0
    %3780 = vmatmul.mubr.f32.gmra.mrb[0].mxu0 %v3666
    %v3781 = vpop.f32.mrb[0].mxu0
    %v3782 = vadd.f32 0.0, %v3781
    %v3783 = vpop.f32.mrb[0].mxu0
    %3784 = vmatprep.mubr.f32.mxu0 0.0
    %3785 = vmatmul.mubr.f32.gmra.mrb[0].mxu0 %v3669
    %v3786 = vpop.f32.mrb[0].mxu0
    %v3787 = vadd.f32 0.0, %v3786
    %v3788 = vpop.f32.mrb[0].mxu0
    %3789 = vmatprep.mubr.f32.mxu0 0.0
    %3790 = vmatmul.mubr.f32.gmra.mrb[0].mxu0 %v3672
    %v3791 = vpop.f32.mrb[0].mxu0
    %v3792 = vadd.f32 0.0, %v3791
    %v3793 = vpop.f32.mrb[0].mxu0
    %3794 = vmatprep.mubr.f32.mxu0 0.0
    %3795 = vmatmul.mubr.f32.gmra.mrb[0].mxu0 %v3675
    %v3796 = vpop.f32.mrb[0].mxu0
    %v3797 = vadd.f32 0.0, %v3796
    %v3798 = vpop.f32.mrb[0].mxu0
    %3799 = vmatprep.mubr.f32.mxu0 0.0
    %3800 = vmatmul.mubr.f32.gmra.mrb[0].mxu0 %v3678
    %v3801 = vpop.f32.mrb[0].mxu0
    %v3802 = vadd.f32 0.0, %v3801
    %v3803 = vpop.f32.mrb[0].mxu0
    %3804 = vmatprep.mubr.f32.mxu0 0.0
    %3805 = vmatmul.mubr.f32.gmra.mrb[0].mxu0 %v3681
    %v3806 = vpop.f32.mrb[0].mxu0
    %v3807 = vadd.f32 0.0, %v3806
    %v3808 = vpop.f32.mrb[0].mxu0
    %3809 = vmatprep.mubr.f32.mxu0 0.0
    %3810 = vmatmul.mubr.f32.gmra.mrb[0].mxu0 %v3684
    %v3811 = vpop.f32.mrb[0].mxu0
    %v3812 = vadd.f32 0.0, %v3811
    %v3813 = vpop.f32.mrb[0].mxu0
    %3814 = vmatprep.mubr.f32.mxu0 0.0
    %3815 = vmatmul.mubr.f32.gmra.mrb[0].mxu0 %v3687
    %v3816 = vpop.f32.mrb[0].mxu0
    %v3817 = vadd.f32 0.0, %v3816
    %v3818 = vpop.f32.mrb[0].mxu0
    %3819 = vmatprep.mubr.f32.mxu0 0.0
    %3820 = vmatmul.mubr.f32.gmra.mrb[0].mxu0 %v3690
    %v3821 = vpop.f32.mrb[0].mxu0
    %v3822 = vadd.f32 0.0, %v3821
    %v3823 = vpop.f32.mrb[0].mxu0
    %3824 = vmatprep.mubr.f32.mxu0 0.0
    %3825 = vmatmul.mubr.f32.gmra.mrb[0].mxu0 %v3693
    %v3826 = vpop.f32.mrb[0].mxu0
    %v3827 = vadd.f32 0.0, %v3826
    %v3828 = vpop.f32.mrb[0].mxu0
    %3829 = vmatprep.mubr.f32.mxu0 0.0
    %3830 = vmatmul.mubr.f32.gmra.mrb[0].mxu0 %v3696
    %v3831 = vpop.f32.mrb[0].mxu0
    %v3832 = vadd.f32 0.0, %v3831
    %v3833 = vpop.f32.mrb[0].mxu0
    %3834 = vmatprep.mubr.f32.mxu0 0.0
    %3835 = vmatmul.mubr.f32.gmra.mrb[0].mxu0 %v3699
    %v3836 = vpop.f32.mrb[0].mxu0
    %v3837 = vadd.f32 0.0, %v3836
    %v3838 = vpop.f32.mrb[0].mxu0
    %3839 = vmatprep.mubr.f32.mxu0 0.0
    %3840 = vmatmul.mubr.f32.gmra.mrb[0].mxu0 %v3702
    %v3841 = vpop.f32.mrb[0].mxu0
    %v3842 = vadd.f32 0.0, %v3841
    %v3843 = vpop.f32.mrb[0].mxu0
    %3844 = vmatprep.mubr.f32.mxu0 0.0
    %3845 = vmatmul.mubr.f32.gmra.mrb[0].mxu0 %v3705
    %v3846 = vpop.f32.mrb[0].mxu0
    %v3847 = vadd.f32 0.0, %v3846
    %v3848 = vpop.f32.mrb[0].mxu0
    %3849 = vmatprep.mubr.f32.mxu0 0.0
    %3850 = vmatmul.mubr.f32.gmra.mrb[0].mxu0 %v3708
    %v3851 = vpop.f32.mrb[0].mxu0
    %v3852 = vadd.f32 0.0, %v3851
    %v3853 = vpop.f32.mrb[0].mxu0
    %3854 = vdwg.mxu0
    %v3855 = vadd.f32 %v3559, %v3777
    %v3856 = vadd.f32 %v3564, %v3782
    %v3857 = vadd.f32 %v3569, %v3787
    %v3858 = vadd.f32 %v3574, %v3792
    %v3859 = vadd.f32 %v3579, %v3797
    %v3860 = vadd.f32 %v3584, %v3802
    %v3861 = vadd.f32 %v3589, %v3807
    %v3862 = vadd.f32 %v3594, %v3812
    %v3863 = vadd.f32 %v3599, %v3817
    %v3864 = vadd.f32 %v3604, %v3822
    %v3865 = vadd.f32 %v3609, %v3827
    %v3866 = vadd.f32 %v3614, %v3832
    %v3867 = vadd.f32 %v3619, %v3837
    %v3868 = vadd.f32 %v3624, %v3842
    %v3869 = vadd.f32 %v3629, %v3847
    %v3870 = vadd.f32 %v3634, %v3852
    %v3871 = vld [vmem:[%s579] sm:$0xff]
    %v3872 = vld [vmem:[%s579 + $0x10] sm:$0xff]
    %v3873 = vld [vmem:[%s579 + $0x20] sm:$0xff]
    %v3874 = vld [vmem:[%s579 + $0x30] sm:$0xff]
    %v3875 = vld [vmem:[%s579 + $0x40] sm:$0xff]
    %v3876 = vld [vmem:[%s579 + $0x50] sm:$0xff]
    %v3877 = vld [vmem:[%s579 + $0x60] sm:$0xff]
    %v3878 = vld [vmem:[%s579 + $0x70] sm:$0xff]
    %v3879 = vld [vmem:[%s579 + $0xa0] sm:$0xff]
    %v3880 = vld [vmem:[%s579 + $0xb0] sm:$0xff]
    %v3881 = vld [vmem:[%s579 + $0xc0] sm:$0xff]
    %v3882 = vld [vmem:[%s579 + $0xd0] sm:$0xff]
    %v3883 = vld [vmem:[%s579 + $0xe0] sm:$0xff]
    %v3884 = vld [vmem:[%s579 + $0xf0] sm:$0xff]
    %v3885 = vld [vmem:[%s579 + $0x100] sm:$0xff]
    %v3886 = vld [vmem:[%s579 + $0x110] sm:$0xff]
    %s3887 = scalar_lea.vmem [#allocation7], 192
    %v3888 = vld [vmem:[%s3887] sm:$0xff]
    %v3889 = vld [vmem:[%s3887 + $0x8] sm:$0xff]
    %v3890 = vld [vmem:[%s3887 + $0x10] sm:$0xff]
    %v3891 = vld [vmem:[%s3887 + $0x18] sm:$0xff]
    %v3892 = vld [vmem:[%s3887 + $0x20] sm:$0xff]
    %v3893 = vld [vmem:[%s3887 + $0x28] sm:$0xff]
    %v3894 = vld [vmem:[%s3887 + $0x30] sm:$0xff]
    %v3895 = vld [vmem:[%s3887 + $0x38] sm:$0xff]
    %v3897 = vsel %vm537, %v3871, 0
    %v3900 = vsel %vm537, %v3872, 0
    %v3903 = vsel %vm537, %v3873, 0
    %v3906 = vsel %vm537, %v3874, 0
    %v3909 = vsel %vm537, %v3875, 0
    %v3912 = vsel %vm537, %v3876, 0
    %v3915 = vsel %vm537, %v3877, 0
    %v3918 = vsel %vm537, %v3878, 0
    %v3921 = vsel %vm537, %v3879, 0
    %v3924 = vsel %vm537, %v3880, 0
    %v3927 = vsel %vm537, %v3881, 0
    %v3930 = vsel %vm537, %v3882, 0
    %v3933 = vsel %vm537, %v3883, 0
    %v3936 = vsel %vm537, %v3884, 0
    %v3939 = vsel %vm537, %v3885, 0
    %v3942 = vsel %vm537, %v3886, 0
    %3944 = vmatprep.subr.mxu0 0.0
    %3945 = vmatpush1.msra.mxu0 %v3888
    %3946 = vmatprep.subr.mxu0 0.0
    %3947 = vmatpush1.msra.mxu0 %v3889
    %3948 = vmatprep.subr.mxu0 0.0
    %3949 = vmatpush1.msra.mxu0 %v3890
    %3950 = vmatprep.subr.mxu0 0.0
    %3951 = vmatpush1.msra.mxu0 %v3891
    %3952 = vmatprep.subr.mxu0 0.0
    %3953 = vmatpush1.msra.mxu0 %v3892
    %3954 = vmatprep.subr.mxu0 0.0
    %3955 = vmatpush1.msra.mxu0 %v3893
    %3956 = vmatprep.subr.mxu0 0.0
    %3957 = vmatpush1.msra.mxu0 %v3894
    %3958 = vmatprep.subr.mxu0 0.0
    %3959 = vmatpush1.msra.mxu0 %v3895
    %3960 = vmatprep.subr.mxu0 0.0
    %3961 = vmatpush1.msra.mxu0 0.0
    %3962 = vmatprep.subr.mxu0 0.0
    %3963 = vmatpush1.msra.mxu0 0.0
    %3964 = vmatprep.subr.mxu0 0.0
    %3965 = vmatpush1.msra.mxu0 0.0
    %3966 = vmatprep.subr.mxu0 0.0
    %3967 = vmatpush1.msra.mxu0 0.0
    %3968 = vmatprep.subr.mxu0 0.0
    %3969 = vmatpush1.msra.mxu0 0.0
    %3970 = vmatprep.subr.mxu0 0.0
    %3971 = vmatpush1.msra.mxu0 0.0
    %3972 = vmatprep.subr.mxu0 0.0
    %3973 = vmatpush1.msra.mxu0 0.0
    %3974 = vmatprep.subr.mxu0 0.0
    %3975 = vmatpush1.msra.mxu0 0.0
    %3976 = vmatprep.subr.mxu0 0.0
    %3977 = vmatpush1.msra.mxu0 0.0
    %3978 = vmatprep.subr.mxu0 0.0
    %3979 = vmatpush1.msra.mxu0 0.0
    %3980 = vmatprep.subr.mxu0 0.0
    %3981 = vmatpush1.msra.mxu0 0.0
    %3982 = vmatprep.subr.mxu0 0.0
    %3983 = vmatpush1.msra.mxu0 0.0
    %3984 = vmatprep.subr.mxu0 0.0
    %3985 = vmatpush1.msra.mxu0 0.0
    %3986 = vmatprep.subr.mxu0 0.0
    %3987 = vmatpush1.msra.mxu0 0.0
    %3988 = vmatprep.subr.mxu0 0.0
    %3989 = vmatpush1.msra.mxu0 0.0
    %3990 = vmatprep.subr.mxu0 0.0
    %3991 = vmatpush1.msra.mxu0 0.0
    %3992 = vmatprep.subr.mxu0 0.0
    %3993 = vmatpush1.msra.mxu0 0.0
    %3994 = vmatprep.subr.mxu0 0.0
    %3995 = vmatpush1.msra.mxu0 0.0
    %3996 = vmatprep.subr.mxu0 0.0
    %3997 = vmatpush1.msra.mxu0 0.0
    %3998 = vmatprep.subr.mxu0 0.0
    %3999 = vmatpush1.msra.mxu0 0.0
    %4000 = vmatprep.subr.mxu0 0.0
    %4001 = vmatpush1.msra.mxu0 0.0
    %4002 = vmatprep.subr.mxu0 0.0
    %4003 = vmatpush1.msra.mxu0 0.0
    %4004 = vmatprep.subr.mxu0 0.0
    %4005 = vmatpush1.msra.mxu0 0.0
    %4006 = vmatprep.subr.mxu0 0.0
    %4007 = vmatpush1.msra.mxu0 0.0
    %4008 = vmatprep.mubr.f32.mxu0 0.0
    %4009 = vmatmul.mubr.f32.gmra.mrb[0].mxu0 %v3897
    %v4010 = vpop.f32.mrb[0].mxu0
    %v4011 = vadd.f32 0.0, %v4010
    %v4012 = vpop.f32.mrb[0].mxu0
    %4013 = vmatprep.mubr.f32.mxu0 0.0
    %4014 = vmatmul.mubr.f32.gmra.mrb[0].mxu0 %v3900
    %v4015 = vpop.f32.mrb[0].mxu0
    %v4016 = vadd.f32 0.0, %v4015
    %v4017 = vpop.f32.mrb[0].mxu0
    %4018 = vmatprep.mubr.f32.mxu0 0.0
    %4019 = vmatmul.mubr.f32.gmra.mrb[0].mxu0 %v3903
    %v4020 = vpop.f32.mrb[0].mxu0
    %v4021 = vadd.f32 0.0, %v4020
    %v4022 = vpop.f32.mrb[0].mxu0
    %4023 = vmatprep.mubr.f32.mxu0 0.0
    %4024 = vmatmul.mubr.f32.gmra.mrb[0].mxu0 %v3906
    %v4025 = vpop.f32.mrb[0].mxu0
    %v4026 = vadd.f32 0.0, %v4025
    %v4027 = vpop.f32.mrb[0].mxu0
    %4028 = vmatprep.mubr.f32.mxu0 0.0
    %4029 = vmatmul.mubr.f32.gmra.mrb[0].mxu0 %v3909
    %v4030 = vpop.f32.mrb[0].mxu0
    %v4031 = vadd.f32 0.0, %v4030
    %v4032 = vpop.f32.mrb[0].mxu0
    %4033 = vmatprep.mubr.f32.mxu0 0.0
    %4034 = vmatmul.mubr.f32.gmra.mrb[0].mxu0 %v3912
    %v4035 = vpop.f32.mrb[0].mxu0
    %v4036 = vadd.f32 0.0, %v4035
    %v4037 = vpop.f32.mrb[0].mxu0
    %4038 = vmatprep.mubr.f32.mxu0 0.0
    %4039 = vmatmul.mubr.f32.gmra.mrb[0].mxu0 %v3915
    %v4040 = vpop.f32.mrb[0].mxu0
    %v4041 = vadd.f32 0.0, %v4040
    %v4042 = vpop.f32.mrb[0].mxu0
    %4043 = vmatprep.mubr.f32.mxu0 0.0
    %4044 = vmatmul.mubr.f32.gmra.mrb[0].mxu0 %v3918
    %v4045 = vpop.f32.mrb[0].mxu0
    %v4046 = vadd.f32 0.0, %v4045
    %v4047 = vpop.f32.mrb[0].mxu0
    %4048 = vmatprep.mubr.f32.mxu0 0.0
    %4049 = vmatmul.mubr.f32.gmra.mrb[0].mxu0 %v3921
    %v4050 = vpop.f32.mrb[0].mxu0
    %v4051 = vadd.f32 0.0, %v4050
    %v4052 = vpop.f32.mrb[0].mxu0
    %4053 = vmatprep.mubr.f32.mxu0 0.0
    %4054 = vmatmul.mubr.f32.gmra.mrb[0].mxu0 %v3924
    %v4055 = vpop.f32.mrb[0].mxu0
    %v4056 = vadd.f32 0.0, %v4055
    %v4057 = vpop.f32.mrb[0].mxu0
    %4058 = vmatprep.mubr.f32.mxu0 0.0
    %4059 = vmatmul.mubr.f32.gmra.mrb[0].mxu0 %v3927
    %v4060 = vpop.f32.mrb[0].mxu0
    %v4061 = vadd.f32 0.0, %v4060
    %v4062 = vpop.f32.mrb[0].mxu0
    %4063 = vmatprep.mubr.f32.mxu0 0.0
    %4064 = vmatmul.mubr.f32.gmra.mrb[0].mxu0 %v3930
    %v4065 = vpop.f32.mrb[0].mxu0
    %v4066 = vadd.f32 0.0, %v4065
    %v4067 = vpop.f32.mrb[0].mxu0
    %4068 = vmatprep.mubr.f32.mxu0 0.0
    %4069 = vmatmul.mubr.f32.gmra.mrb[0].mxu0 %v3933
    %v4070 = vpop.f32.mrb[0].mxu0
    %v4071 = vadd.f32 0.0, %v4070
    %v4072 = vpop.f32.mrb[0].mxu0
    %4073 = vmatprep.mubr.f32.mxu0 0.0
    %4074 = vmatmul.mubr.f32.gmra.mrb[0].mxu0 %v3936
    %v4075 = vpop.f32.mrb[0].mxu0
    %v4076 = vadd.f32 0.0, %v4075
    %v4077 = vpop.f32.mrb[0].mxu0
    %4078 = vmatprep.mubr.f32.mxu0 0.0
    %4079 = vmatmul.mubr.f32.gmra.mrb[0].mxu0 %v3939
    %v4080 = vpop.f32.mrb[0].mxu0
    %v4081 = vadd.f32 0.0, %v4080
    %v4082 = vpop.f32.mrb[0].mxu0
    %4083 = vmatprep.mubr.f32.mxu0 0.0
    %4084 = vmatmul.mubr.f32.gmra.mrb[0].mxu0 %v3942
    %v4085 = vpop.f32.mrb[0].mxu0
    %v4086 = vadd.f32 0.0, %v4085
    %v4087 = vpop.f32.mrb[0].mxu0
    %4088 = vdwg.mxu0
    %v4089 = vadd.f32 %v3855, %v4011
    %v4090 = vadd.f32 %v3856, %v4016
    %v4091 = vadd.f32 %v3857, %v4021
    %v4092 = vadd.f32 %v3858, %v4026
    %v4093 = vadd.f32 %v3859, %v4031
    %v4094 = vadd.f32 %v3860, %v4036
    %v4095 = vadd.f32 %v3861, %v4041
    %v4096 = vadd.f32 %v3862, %v4046
    %v4097 = vadd.f32 %v3863, %v4051
    %v4098 = vadd.f32 %v3864, %v4056
    %v4099 = vadd.f32 %v3865, %v4061
    %v4100 = vadd.f32 %v3866, %v4066
    %v4101 = vadd.f32 %v3867, %v4071
    %v4102 = vadd.f32 %v3868, %v4076
    %v4103 = vadd.f32 %v3869, %v4081
    %v4104 = vadd.f32 %v3870, %v4086
    %v4105 = vld [vmem:[%s579 + $0x1] sm:$0xff]
    %v4106 = vld [vmem:[%s579 + $0x11] sm:$0xff]
    %v4107 = vld [vmem:[%s579 + $0x21] sm:$0xff]
    %v4108 = vld [vmem:[%s579 + $0x31] sm:$0xff]
    %v4109 = vld [vmem:[%s579 + $0x41] sm:$0xff]
    %v4110 = vld [vmem:[%s579 + $0x51] sm:$0xff]
    %v4111 = vld [vmem:[%s579 + $0x61] sm:$0xff]
    %v4112 = vld [vmem:[%s579 + $0x71] sm:$0xff]
    %v4113 = vld [vmem:[%s579 + $0xa1] sm:$0xff]
    %v4114 = vld [vmem:[%s579 + $0xb1] sm:$0xff]
    %v4115 = vld [vmem:[%s579 + $0xc1] sm:$0xff]
    %v4116 = vld [vmem:[%s579 + $0xd1] sm:$0xff]
    %v4117 = vld [vmem:[%s579 + $0xe1] sm:$0xff]
    %v4118 = vld [vmem:[%s579 + $0xf1] sm:$0xff]
    %v4119 = vld [vmem:[%s579 + $0x101] sm:$0xff]
    %v4120 = vld [vmem:[%s579 + $0x111] sm:$0xff]
    %s4121 = scalar_lea.vmem [#allocation7], 256
    %v4122 = vld [vmem:[%s4121] sm:$0xff]
    %v4123 = vld [vmem:[%s4121 + $0x8] sm:$0xff]
    %v4124 = vld [vmem:[%s4121 + $0x10] sm:$0xff]
    %v4125 = vld [vmem:[%s4121 + $0x18] sm:$0xff]
    %v4126 = vld [vmem:[%s4121 + $0x20] sm:$0xff]
    %v4127 = vld [vmem:[%s4121 + $0x28] sm:$0xff]
    %v4128 = vld [vmem:[%s4121 + $0x30] sm:$0xff]
    %v4129 = vld [vmem:[%s4121 + $0x38] sm:$0xff]
    %v4131 = vsel %vm537, %v4105, 0
    %v4134 = vsel %vm537, %v4106, 0
    %v4137 = vsel %vm537, %v4107, 0
    %v4140 = vsel %vm537, %v4108, 0
    %v4143 = vsel %vm537, %v4109, 0
    %v4146 = vsel %vm537, %v4110, 0
    %v4149 = vsel %vm537, %v4111, 0
    %v4152 = vsel %vm537, %v4112, 0
    %v4155 = vsel %vm537, %v4113, 0
    %v4158 = vsel %vm537, %v4114, 0
    %v4161 = vsel %vm537, %v4115, 0
    %v4164 = vsel %vm537, %v4116, 0
    %v4167 = vsel %vm537, %v4117, 0
    %v4170 = vsel %vm537, %v4118, 0
    %v4173 = vsel %vm537, %v4119, 0
    %v4176 = vsel %vm537, %v4120, 0
    %4178 = vmatprep.subr.mxu0 0.0
    %4179 = vmatpush1.msra.mxu0 %v4122
    %4180 = vmatprep.subr.mxu0 0.0
    %4181 = vmatpush1.msra.mxu0 %v4123
    %4182 = vmatprep.subr.mxu0 0.0
    %4183 = vmatpush1.msra.mxu0 %v4124
    %4184 = vmatprep.subr.mxu0 0.0
    %4185 = vmatpush1.msra.mxu0 %v4125
    %4186 = vmatprep.subr.mxu0 0.0
    %4187 = vmatpush1.msra.mxu0 %v4126
    %4188 = vmatprep.subr.mxu0 0.0
    %4189 = vmatpush1.msra.mxu0 %v4127
    %4190 = vmatprep.subr.mxu0 0.0
    %4191 = vmatpush1.msra.mxu0 %v4128
    %4192 = vmatprep.subr.mxu0 0.0
    %4193 = vmatpush1.msra.mxu0 %v4129
    %4194 = vmatprep.subr.mxu0 0.0
    %4195 = vmatpush1.msra.mxu0 0.0
    %4196 = vmatprep.subr.mxu0 0.0
    %4197 = vmatpush1.msra.mxu0 0.0
    %4198 = vmatprep.subr.mxu0 0.0
    %4199 = vmatpush1.msra.mxu0 0.0
    %4200 = vmatprep.subr.mxu0 0.0
    %4201 = vmatpush1.msra.mxu0 0.0
    %4202 = vmatprep.subr.mxu0 0.0
    %4203 = vmatpush1.msra.mxu0 0.0
    %4204 = vmatprep.subr.mxu0 0.0
    %4205 = vmatpush1.msra.mxu0 0.0
    %4206 = vmatprep.subr.mxu0 0.0
    %4207 = vmatpush1.msra.mxu0 0.0
    %4208 = vmatprep.subr.mxu0 0.0
    %4209 = vmatpush1.msra.mxu0 0.0
    %4210 = vmatprep.subr.mxu0 0.0
    %4211 = vmatpush1.msra.mxu0 0.0
    %4212 = vmatprep.subr.mxu0 0.0
    %4213 = vmatpush1.msra.mxu0 0.0
    %4214 = vmatprep.subr.mxu0 0.0
    %4215 = vmatpush1.msra.mxu0 0.0
    %4216 = vmatprep.subr.mxu0 0.0
    %4217 = vmatpush1.msra.mxu0 0.0
    %4218 = vmatprep.subr.mxu0 0.0
    %4219 = vmatpush1.msra.mxu0 0.0
    %4220 = vmatprep.subr.mxu0 0.0
    %4221 = vmatpush1.msra.mxu0 0.0
    %4222 = vmatprep.subr.mxu0 0.0
    %4223 = vmatpush1.msra.mxu0 0.0
    %4224 = vmatprep.subr.mxu0 0.0
    %4225 = vmatpush1.msra.mxu0 0.0
    %4226 = vmatprep.subr.mxu0 0.0
    %4227 = vmatpush1.msra.mxu0 0.0
    %4228 = vmatprep.subr.mxu0 0.0
    %4229 = vmatpush1.msra.mxu0 0.0
    %4230 = vmatprep.subr.mxu0 0.0
    %4231 = vmatpush1.msra.mxu0 0.0
    %4232 = vmatprep.subr.mxu0 0.0
    %4233 = vmatpush1.msra.mxu0 0.0
    %4234 = vmatprep.subr.mxu0 0.0
    %4235 = vmatpush1.msra.mxu0 0.0
    %4236 = vmatprep.subr.mxu0 0.0
    %4237 = vmatpush1.msra.mxu0 0.0
    %4238 = vmatprep.subr.mxu0 0.0
    %4239 = vmatpush1.msra.mxu0 0.0
    %4240 = vmatprep.subr.mxu0 0.0
    %4241 = vmatpush1.msra.mxu0 0.0
    %4242 = vmatprep.mubr.f32.mxu0 0.0
    %4243 = vmatmul.mubr.f32.gmra.mrb[0].mxu0 %v4131
    %v4244 = vpop.f32.mrb[0].mxu0
    %v4245 = vadd.f32 0.0, %v4244
    %v4246 = vpop.f32.mrb[0].mxu0
    %4247 = vmatprep.mubr.f32.mxu0 0.0
    %4248 = vmatmul.mubr.f32.gmra.mrb[0].mxu0 %v4134
    %v4249 = vpop.f32.mrb[0].mxu0
    %v4250 = vadd.f32 0.0, %v4249
    %v4251 = vpop.f32.mrb[0].mxu0
    %4252 = vmatprep.mubr.f32.mxu0 0.0
    %4253 = vmatmul.mubr.f32.gmra.mrb[0].mxu0 %v4137
    %v4254 = vpop.f32.mrb[0].mxu0
    %v4255 = vadd.f32 0.0, %v4254
    %v4256 = vpop.f32.mrb[0].mxu0
    %4257 = vmatprep.mubr.f32.mxu0 0.0
    %4258 = vmatmul.mubr.f32.gmra.mrb[0].mxu0 %v4140
    %v4259 = vpop.f32.mrb[0].mxu0
    %v4260 = vadd.f32 0.0, %v4259
    %v4261 = vpop.f32.mrb[0].mxu0
    %4262 = vmatprep.mubr.f32.mxu0 0.0
    %4263 = vmatmul.mubr.f32.gmra.mrb[0].mxu0 %v4143
    %v4264 = vpop.f32.mrb[0].mxu0
    %v4265 = vadd.f32 0.0, %v4264
    %v4266 = vpop.f32.mrb[0].mxu0
    %4267 = vmatprep.mubr.f32.mxu0 0.0
    %4268 = vmatmul.mubr.f32.gmra.mrb[0].mxu0 %v4146
    %v4269 = vpop.f32.mrb[0].mxu0
    %v4270 = vadd.f32 0.0, %v4269
    %v4271 = vpop.f32.mrb[0].mxu0
    %4272 = vmatprep.mubr.f32.mxu0 0.0
    %4273 = vmatmul.mubr.f32.gmra.mrb[0].mxu0 %v4149
    %v4274 = vpop.f32.mrb[0].mxu0
    %v4275 = vadd.f32 0.0, %v4274
    %v4276 = vpop.f32.mrb[0].mxu0
    %4277 = vmatprep.mubr.f32.mxu0 0.0
    %4278 = vmatmul.mubr.f32.gmra.mrb[0].mxu0 %v4152
    %v4279 = vpop.f32.mrb[0].mxu0
    %v4280 = vadd.f32 0.0, %v4279
    %v4281 = vpop.f32.mrb[0].mxu0
    %4282 = vmatprep.mubr.f32.mxu0 0.0
    %4283 = vmatmul.mubr.f32.gmra.mrb[0].mxu0 %v4155
    %v4284 = vpop.f32.mrb[0].mxu0
    %v4285 = vadd.f32 0.0, %v4284
    %v4286 = vpop.f32.mrb[0].mxu0
    %4287 = vmatprep.mubr.f32.mxu0 0.0
    %4288 = vmatmul.mubr.f32.gmra.mrb[0].mxu0 %v4158
    %v4289 = vpop.f32.mrb[0].mxu0
    %v4290 = vadd.f32 0.0, %v4289
    %v4291 = vpop.f32.mrb[0].mxu0
    %4292 = vmatprep.mubr.f32.mxu0 0.0
    %4293 = vmatmul.mubr.f32.gmra.mrb[0].mxu0 %v4161
    %v4294 = vpop.f32.mrb[0].mxu0
    %v4295 = vadd.f32 0.0, %v4294
    %v4296 = vpop.f32.mrb[0].mxu0
    %4297 = vmatprep.mubr.f32.mxu0 0.0
    %4298 = vmatmul.mubr.f32.gmra.mrb[0].mxu0 %v4164
    %v4299 = vpop.f32.mrb[0].mxu0
    %v4300 = vadd.f32 0.0, %v4299
    %v4301 = vpop.f32.mrb[0].mxu0
    %4302 = vmatprep.mubr.f32.mxu0 0.0
    %4303 = vmatmul.mubr.f32.gmra.mrb[0].mxu0 %v4167
    %v4304 = vpop.f32.mrb[0].mxu0
    %v4305 = vadd.f32 0.0, %v4304
    %v4306 = vpop.f32.mrb[0].mxu0
    %4307 = vmatprep.mubr.f32.mxu0 0.0
    %4308 = vmatmul.mubr.f32.gmra.mrb[0].mxu0 %v4170
    %v4309 = vpop.f32.mrb[0].mxu0
    %v4310 = vadd.f32 0.0, %v4309
    %v4311 = vpop.f32.mrb[0].mxu0
    %4312 = vmatprep.mubr.f32.mxu0 0.0
    %4313 = vmatmul.mubr.f32.gmra.mrb[0].mxu0 %v4173
    %v4314 = vpop.f32.mrb[0].mxu0
    %v4315 = vadd.f32 0.0, %v4314
    %v4316 = vpop.f32.mrb[0].mxu0
    %4317 = vmatprep.mubr.f32.mxu0 0.0
    %4318 = vmatmul.mubr.f32.gmra.mrb[0].mxu0 %v4176
    %v4319 = vpop.f32.mrb[0].mxu0
    %v4320 = vadd.f32 0.0, %v4319
    %v4321 = vpop.f32.mrb[0].mxu0
    %4322 = vdwg.mxu0
    %v4323 = vadd.f32 %v4089, %v4245
    %v4324 = vadd.f32 %v4090, %v4250
    %v4325 = vadd.f32 %v4091, %v4255
    %v4326 = vadd.f32 %v4092, %v4260
    %v4327 = vadd.f32 %v4093, %v4265
    %v4328 = vadd.f32 %v4094, %v4270
    %v4329 = vadd.f32 %v4095, %v4275
    %v4330 = vadd.f32 %v4096, %v4280
    %v4331 = vadd.f32 %v4097, %v4285
    %v4332 = vadd.f32 %v4098, %v4290
    %v4333 = vadd.f32 %v4099, %v4295
    %v4334 = vadd.f32 %v4100, %v4300
    %v4335 = vadd.f32 %v4101, %v4305
    %v4336 = vadd.f32 %v4102, %v4310
    %v4337 = vadd.f32 %v4103, %v4315
    %v4338 = vadd.f32 %v4104, %v4320
    %v4339 = vld [vmem:[%s579 + $0x2] sm:$0xff]
    %v4340 = vld [vmem:[%s579 + $0x12] sm:$0xff]
    %v4341 = vld [vmem:[%s579 + $0x22] sm:$0xff]
    %v4342 = vld [vmem:[%s579 + $0x32] sm:$0xff]
    %v4343 = vld [vmem:[%s579 + $0x42] sm:$0xff]
    %v4344 = vld [vmem:[%s579 + $0x52] sm:$0xff]
    %v4345 = vld [vmem:[%s579 + $0x62] sm:$0xff]
    %v4346 = vld [vmem:[%s579 + $0x72] sm:$0xff]
    %v4347 = vld [vmem:[%s579 + $0xa2] sm:$0xff]
    %v4348 = vld [vmem:[%s579 + $0xb2] sm:$0xff]
    %v4349 = vld [vmem:[%s579 + $0xc2] sm:$0xff]
    %v4350 = vld [vmem:[%s579 + $0xd2] sm:$0xff]
    %v4351 = vld [vmem:[%s579 + $0xe2] sm:$0xff]
    %v4352 = vld [vmem:[%s579 + $0xf2] sm:$0xff]
    %v4353 = vld [vmem:[%s579 + $0x102] sm:$0xff]
    %v4354 = vld [vmem:[%s579 + $0x112] sm:$0xff]
    %s4355 = scalar_lea.vmem [#allocation7], 320
    %v4356 = vld [vmem:[%s4355] sm:$0xff]
    %v4357 = vld [vmem:[%s4355 + $0x8] sm:$0xff]
    %v4358 = vld [vmem:[%s4355 + $0x10] sm:$0xff]
    %v4359 = vld [vmem:[%s4355 + $0x18] sm:$0xff]
    %v4360 = vld [vmem:[%s4355 + $0x20] sm:$0xff]
    %v4361 = vld [vmem:[%s4355 + $0x28] sm:$0xff]
    %v4362 = vld [vmem:[%s4355 + $0x30] sm:$0xff]
    %v4363 = vld [vmem:[%s4355 + $0x38] sm:$0xff]
    %v4365 = vsel %vm537, %v4339, 0
    %v4368 = vsel %vm537, %v4340, 0
    %v4371 = vsel %vm537, %v4341, 0
    %v4374 = vsel %vm537, %v4342, 0
    %v4377 = vsel %vm537, %v4343, 0
    %v4380 = vsel %vm537, %v4344, 0
    %v4383 = vsel %vm537, %v4345, 0
    %v4386 = vsel %vm537, %v4346, 0
    %v4389 = vsel %vm537, %v4347, 0
    %v4392 = vsel %vm537, %v4348, 0
    %v4395 = vsel %vm537, %v4349, 0
    %v4398 = vsel %vm537, %v4350, 0
    %v4401 = vsel %vm537, %v4351, 0
    %v4404 = vsel %vm537, %v4352, 0
    %v4407 = vsel %vm537, %v4353, 0
    %v4410 = vsel %vm537, %v4354, 0
    %4412 = vmatprep.subr.mxu0 0.0
    %4413 = vmatpush1.msra.mxu0 %v4356
    %4414 = vmatprep.subr.mxu0 0.0
    %4415 = vmatpush1.msra.mxu0 %v4357
    %4416 = vmatprep.subr.mxu0 0.0
    %4417 = vmatpush1.msra.mxu0 %v4358
    %4418 = vmatprep.subr.mxu0 0.0
    %4419 = vmatpush1.msra.mxu0 %v4359
    %4420 = vmatprep.subr.mxu0 0.0
    %4421 = vmatpush1.msra.mxu0 %v4360
    %4422 = vmatprep.subr.mxu0 0.0
    %4423 = vmatpush1.msra.mxu0 %v4361
    %4424 = vmatprep.subr.mxu0 0.0
    %4425 = vmatpush1.msra.mxu0 %v4362
    %4426 = vmatprep.subr.mxu0 0.0
    %4427 = vmatpush1.msra.mxu0 %v4363
    %4428 = vmatprep.subr.mxu0 0.0
    %4429 = vmatpush1.msra.mxu0 0.0
    %4430 = vmatprep.subr.mxu0 0.0
    %4431 = vmatpush1.msra.mxu0 0.0
    %4432 = vmatprep.subr.mxu0 0.0
    %4433 = vmatpush1.msra.mxu0 0.0
    %4434 = vmatprep.subr.mxu0 0.0
    %4435 = vmatpush1.msra.mxu0 0.0
    %4436 = vmatprep.subr.mxu0 0.0
    %4437 = vmatpush1.msra.mxu0 0.0
    %4438 = vmatprep.subr.mxu0 0.0
    %4439 = vmatpush1.msra.mxu0 0.0
    %4440 = vmatprep.subr.mxu0 0.0
    %4441 = vmatpush1.msra.mxu0 0.0
    %4442 = vmatprep.subr.mxu0 0.0
    %4443 = vmatpush1.msra.mxu0 0.0
    %4444 = vmatprep.subr.mxu0 0.0
    %4445 = vmatpush1.msra.mxu0 0.0
    %4446 = vmatprep.subr.mxu0 0.0
    %4447 = vmatpush1.msra.mxu0 0.0
    %4448 = vmatprep.subr.mxu0 0.0
    %4449 = vmatpush1.msra.mxu0 0.0
    %4450 = vmatprep.subr.mxu0 0.0
    %4451 = vmatpush1.msra.mxu0 0.0
    %4452 = vmatprep.subr.mxu0 0.0
    %4453 = vmatpush1.msra.mxu0 0.0
    %4454 = vmatprep.subr.mxu0 0.0
    %4455 = vmatpush1.msra.mxu0 0.0
    %4456 = vmatprep.subr.mxu0 0.0
    %4457 = vmatpush1.msra.mxu0 0.0
    %4458 = vmatprep.subr.mxu0 0.0
    %4459 = vmatpush1.msra.mxu0 0.0
    %4460 = vmatprep.subr.mxu0 0.0
    %4461 = vmatpush1.msra.mxu0 0.0
    %4462 = vmatprep.subr.mxu0 0.0
    %4463 = vmatpush1.msra.mxu0 0.0
    %4464 = vmatprep.subr.mxu0 0.0
    %4465 = vmatpush1.msra.mxu0 0.0
    %4466 = vmatprep.subr.mxu0 0.0
    %4467 = vmatpush1.msra.mxu0 0.0
    %4468 = vmatprep.subr.mxu0 0.0
    %4469 = vmatpush1.msra.mxu0 0.0
    %4470 = vmatprep.subr.mxu0 0.0
    %4471 = vmatpush1.msra.mxu0 0.0
    %4472 = vmatprep.subr.mxu0 0.0
    %4473 = vmatpush1.msra.mxu0 0.0
    %4474 = vmatprep.subr.mxu0 0.0
    %4475 = vmatpush1.msra.mxu0 0.0
    %4476 = vmatprep.mubr.f32.mxu0 0.0
    %4477 = vmatmul.mubr.f32.gmra.mrb[0].mxu0 %v4365
    %v4478 = vpop.f32.mrb[0].mxu0
    %v4479 = vadd.f32 0.0, %v4478
    %v4480 = vpop.f32.mrb[0].mxu0
    %4481 = vmatprep.mubr.f32.mxu0 0.0
    %4482 = vmatmul.mubr.f32.gmra.mrb[0].mxu0 %v4368
    %v4483 = vpop.f32.mrb[0].mxu0
    %v4484 = vadd.f32 0.0, %v4483
    %v4485 = vpop.f32.mrb[0].mxu0
    %4486 = vmatprep.mubr.f32.mxu0 0.0
    %4487 = vmatmul.mubr.f32.gmra.mrb[0].mxu0 %v4371
    %v4488 = vpop.f32.mrb[0].mxu0
    %v4489 = vadd.f32 0.0, %v4488
    %v4490 = vpop.f32.mrb[0].mxu0
    %4491 = vmatprep.mubr.f32.mxu0 0.0
    %4492 = vmatmul.mubr.f32.gmra.mrb[0].mxu0 %v4374
    %v4493 = vpop.f32.mrb[0].mxu0
    %v4494 = vadd.f32 0.0, %v4493
    %v4495 = vpop.f32.mrb[0].mxu0
    %4496 = vmatprep.mubr.f32.mxu0 0.0
    %4497 = vmatmul.mubr.f32.gmra.mrb[0].mxu0 %v4377
    %v4498 = vpop.f32.mrb[0].mxu0
    %v4499 = vadd.f32 0.0, %v4498
    %v4500 = vpop.f32.mrb[0].mxu0
    %4501 = vmatprep.mubr.f32.mxu0 0.0
    %4502 = vmatmul.mubr.f32.gmra.mrb[0].mxu0 %v4380
    %v4503 = vpop.f32.mrb[0].mxu0
    %v4504 = vadd.f32 0.0, %v4503
    %v4505 = vpop.f32.mrb[0].mxu0
    %4506 = vmatprep.mubr.f32.mxu0 0.0
    %4507 = vmatmul.mubr.f32.gmra.mrb[0].mxu0 %v4383
    %v4508 = vpop.f32.mrb[0].mxu0
    %v4509 = vadd.f32 0.0, %v4508
    %v4510 = vpop.f32.mrb[0].mxu0
    %4511 = vmatprep.mubr.f32.mxu0 0.0
    %4512 = vmatmul.mubr.f32.gmra.mrb[0].mxu0 %v4386
    %v4513 = vpop.f32.mrb[0].mxu0
    %v4514 = vadd.f32 0.0, %v4513
    %v4515 = vpop.f32.mrb[0].mxu0
    %4516 = vmatprep.mubr.f32.mxu0 0.0
    %4517 = vmatmul.mubr.f32.gmra.mrb[0].mxu0 %v4389
    %v4518 = vpop.f32.mrb[0].mxu0
    %v4519 = vadd.f32 0.0, %v4518
    %v4520 = vpop.f32.mrb[0].mxu0
    %4521 = vmatprep.mubr.f32.mxu0 0.0
    %4522 = vmatmul.mubr.f32.gmra.mrb[0].mxu0 %v4392
    %v4523 = vpop.f32.mrb[0].mxu0
    %v4524 = vadd.f32 0.0, %v4523
    %v4525 = vpop.f32.mrb[0].mxu0
    %4526 = vmatprep.mubr.f32.mxu0 0.0
    %4527 = vmatmul.mubr.f32.gmra.mrb[0].mxu0 %v4395
    %v4528 = vpop.f32.mrb[0].mxu0
    %v4529 = vadd.f32 0.0, %v4528
    %v4530 = vpop.f32.mrb[0].mxu0
    %4531 = vmatprep.mubr.f32.mxu0 0.0
    %4532 = vmatmul.mubr.f32.gmra.mrb[0].mxu0 %v4398
    %v4533 = vpop.f32.mrb[0].mxu0
    %v4534 = vadd.f32 0.0, %v4533
    %v4535 = vpop.f32.mrb[0].mxu0
    %4536 = vmatprep.mubr.f32.mxu0 0.0
    %4537 = vmatmul.mubr.f32.gmra.mrb[0].mxu0 %v4401
    %v4538 = vpop.f32.mrb[0].mxu0
    %v4539 = vadd.f32 0.0, %v4538
    %v4540 = vpop.f32.mrb[0].mxu0
    %4541 = vmatprep.mubr.f32.mxu0 0.0
    %4542 = vmatmul.mubr.f32.gmra.mrb[0].mxu0 %v4404
    %v4543 = vpop.f32.mrb[0].mxu0
    %v4544 = vadd.f32 0.0, %v4543
    %v4545 = vpop.f32.mrb[0].mxu0
    %4546 = vmatprep.mubr.f32.mxu0 0.0
    %4547 = vmatmul.mubr.f32.gmra.mrb[0].mxu0 %v4407
    %v4548 = vpop.f32.mrb[0].mxu0
    %v4549 = vadd.f32 0.0, %v4548
    %v4550 = vpop.f32.mrb[0].mxu0
    %4551 = vmatprep.mubr.f32.mxu0 0.0
    %4552 = vmatmul.mubr.f32.gmra.mrb[0].mxu0 %v4410
    %v4553 = vpop.f32.mrb[0].mxu0
    %v4554 = vadd.f32 0.0, %v4553
    %v4555 = vpop.f32.mrb[0].mxu0
    %4556 = vdwg.mxu0
    %v4557 = vadd.f32 %v4323, %v4479
    %v4558 = vadd.f32 %v4324, %v4484
    %v4559 = vadd.f32 %v4325, %v4489
    %v4560 = vadd.f32 %v4326, %v4494
    %v4561 = vadd.f32 %v4327, %v4499
    %v4562 = vadd.f32 %v4328, %v4504
    %v4563 = vadd.f32 %v4329, %v4509
    %v4564 = vadd.f32 %v4330, %v4514
    %v4565 = vadd.f32 %v4331, %v4519
    %v4566 = vadd.f32 %v4332, %v4524
    %v4567 = vadd.f32 %v4333, %v4529
    %v4568 = vadd.f32 %v4334, %v4534
    %v4569 = vadd.f32 %v4335, %v4539
    %v4570 = vadd.f32 %v4336, %v4544
    %v4571 = vadd.f32 %v4337, %v4549
    %v4572 = vadd.f32 %v4338, %v4554
    %v4573 = vld [vmem:[%s1955] sm:$0xff]
    %v4574 = vld [vmem:[%s1955 + $0x10] sm:$0xff]
    %v4575 = vld [vmem:[%s1955 + $0x20] sm:$0xff]
    %v4576 = vld [vmem:[%s1955 + $0x30] sm:$0xff]
    %v4577 = vld [vmem:[%s1955 + $0x40] sm:$0xff]
    %v4578 = vld [vmem:[%s1955 + $0x50] sm:$0xff]
    %v4579 = vld [vmem:[%s1955 + $0x60] sm:$0xff]
    %v4580 = vld [vmem:[%s1955 + $0x70] sm:$0xff]
    %v4581 = vld [vmem:[%s1955 + $0xa0] sm:$0xff]
    %v4582 = vld [vmem:[%s1955 + $0xb0] sm:$0xff]
    %v4583 = vld [vmem:[%s1955 + $0xc0] sm:$0xff]
    %v4584 = vld [vmem:[%s1955 + $0xd0] sm:$0xff]
    %v4585 = vld [vmem:[%s1955 + $0xe0] sm:$0xff]
    %v4586 = vld [vmem:[%s1955 + $0xf0] sm:$0xff]
    %v4587 = vld [vmem:[%s1955 + $0x100] sm:$0xff]
    %v4588 = vld [vmem:[%s1955 + $0x110] sm:$0xff]
    %s4589 = scalar_lea.vmem [#allocation7], 384
    %v4590 = vld [vmem:[%s4589] sm:$0xff]
    %v4591 = vld [vmem:[%s4589 + $0x8] sm:$0xff]
    %v4592 = vld [vmem:[%s4589 + $0x10] sm:$0xff]
    %v4593 = vld [vmem:[%s4589 + $0x18] sm:$0xff]
    %v4594 = vld [vmem:[%s4589 + $0x20] sm:$0xff]
    %v4595 = vld [vmem:[%s4589 + $0x28] sm:$0xff]
    %v4596 = vld [vmem:[%s4589 + $0x30] sm:$0xff]
    %v4597 = vld [vmem:[%s4589 + $0x38] sm:$0xff]
    %v4599 = vsel %vm537, %v4573, 0
    %v4602 = vsel %vm537, %v4574, 0
    %v4605 = vsel %vm537, %v4575, 0
    %v4608 = vsel %vm537, %v4576, 0
    %v4611 = vsel %vm537, %v4577, 0
    %v4614 = vsel %vm537, %v4578, 0
    %v4617 = vsel %vm537, %v4579, 0
    %v4620 = vsel %vm537, %v4580, 0
    %v4623 = vsel %vm537, %v4581, 0
    %v4626 = vsel %vm537, %v4582, 0
    %v4629 = vsel %vm537, %v4583, 0
    %v4632 = vsel %vm537, %v4584, 0
    %v4635 = vsel %vm537, %v4585, 0
    %v4638 = vsel %vm537, %v4586, 0
    %v4641 = vsel %vm537, %v4587, 0
    %v4644 = vsel %vm537, %v4588, 0
    %4646 = vmatprep.subr.mxu0 0.0
    %4647 = vmatpush1.msra.mxu0 %v4590
    %4648 = vmatprep.subr.mxu0 0.0
    %4649 = vmatpush1.msra.mxu0 %v4591
    %4650 = vmatprep.subr.mxu0 0.0
    %4651 = vmatpush1.msra.mxu0 %v4592
    %4652 = vmatprep.subr.mxu0 0.0
    %4653 = vmatpush1.msra.mxu0 %v4593
    %4654 = vmatprep.subr.mxu0 0.0
    %4655 = vmatpush1.msra.mxu0 %v4594
    %4656 = vmatprep.subr.mxu0 0.0
    %4657 = vmatpush1.msra.mxu0 %v4595
    %4658 = vmatprep.subr.mxu0 0.0
    %4659 = vmatpush1.msra.mxu0 %v4596
    %4660 = vmatprep.subr.mxu0 0.0
    %4661 = vmatpush1.msra.mxu0 %v4597
    %4662 = vmatprep.subr.mxu0 0.0
    %4663 = vmatpush1.msra.mxu0 0.0
    %4664 = vmatprep.subr.mxu0 0.0
    %4665 = vmatpush1.msra.mxu0 0.0
    %4666 = vmatprep.subr.mxu0 0.0
    %4667 = vmatpush1.msra.mxu0 0.0
    %4668 = vmatprep.subr.mxu0 0.0
    %4669 = vmatpush1.msra.mxu0 0.0
    %4670 = vmatprep.subr.mxu0 0.0
    %4671 = vmatpush1.msra.mxu0 0.0
    %4672 = vmatprep.subr.mxu0 0.0
    %4673 = vmatpush1.msra.mxu0 0.0
    %4674 = vmatprep.subr.mxu0 0.0
    %4675 = vmatpush1.msra.mxu0 0.0
    %4676 = vmatprep.subr.mxu0 0.0
    %4677 = vmatpush1.msra.mxu0 0.0
    %4678 = vmatprep.subr.mxu0 0.0
    %4679 = vmatpush1.msra.mxu0 0.0
    %4680 = vmatprep.subr.mxu0 0.0
    %4681 = vmatpush1.msra.mxu0 0.0
    %4682 = vmatprep.subr.mxu0 0.0
    %4683 = vmatpush1.msra.mxu0 0.0
    %4684 = vmatprep.subr.mxu0 0.0
    %4685 = vmatpush1.msra.mxu0 0.0
    %4686 = vmatprep.subr.mxu0 0.0
    %4687 = vmatpush1.msra.mxu0 0.0
    %4688 = vmatprep.subr.mxu0 0.0
    %4689 = vmatpush1.msra.mxu0 0.0
    %4690 = vmatprep.subr.mxu0 0.0
    %4691 = vmatpush1.msra.mxu0 0.0
    %4692 = vmatprep.subr.mxu0 0.0
    %4693 = vmatpush1.msra.mxu0 0.0
    %4694 = vmatprep.subr.mxu0 0.0
    %4695 = vmatpush1.msra.mxu0 0.0
    %4696 = vmatprep.subr.mxu0 0.0
    %4697 = vmatpush1.msra.mxu0 0.0
    %4698 = vmatprep.subr.mxu0 0.0
    %4699 = vmatpush1.msra.mxu0 0.0
    %4700 = vmatprep.subr.mxu0 0.0
    %4701 = vmatpush1.msra.mxu0 0.0
    %4702 = vmatprep.subr.mxu0 0.0
    %4703 = vmatpush1.msra.mxu0 0.0
    %4704 = vmatprep.subr.mxu0 0.0
    %4705 = vmatpush1.msra.mxu0 0.0
    %4706 = vmatprep.subr.mxu0 0.0
    %4707 = vmatpush1.msra.mxu0 0.0
    %4708 = vmatprep.subr.mxu0 0.0
    %4709 = vmatpush1.msra.mxu0 0.0
    %4710 = vmatprep.mubr.f32.mxu0 0.0
    %4711 = vmatmul.mubr.f32.gmra.mrb[0].mxu0 %v4599
    %v4712 = vpop.f32.mrb[0].mxu0
    %v4713 = vadd.f32 0.0, %v4712
    %v4714 = vpop.f32.mrb[0].mxu0
    %4715 = vmatprep.mubr.f32.mxu0 0.0
    %4716 = vmatmul.mubr.f32.gmra.mrb[0].mxu0 %v4602
    %v4717 = vpop.f32.mrb[0].mxu0
    %v4718 = vadd.f32 0.0, %v4717
    %v4719 = vpop.f32.mrb[0].mxu0
    %4720 = vmatprep.mubr.f32.mxu0 0.0
    %4721 = vmatmul.mubr.f32.gmra.mrb[0].mxu0 %v4605
    %v4722 = vpop.f32.mrb[0].mxu0
    %v4723 = vadd.f32 0.0, %v4722
    %v4724 = vpop.f32.mrb[0].mxu0
    %4725 = vmatprep.mubr.f32.mxu0 0.0
    %4726 = vmatmul.mubr.f32.gmra.mrb[0].mxu0 %v4608
    %v4727 = vpop.f32.mrb[0].mxu0
    %v4728 = vadd.f32 0.0, %v4727
    %v4729 = vpop.f32.mrb[0].mxu0
    %4730 = vmatprep.mubr.f32.mxu0 0.0
    %4731 = vmatmul.mubr.f32.gmra.mrb[0].mxu0 %v4611
    %v4732 = vpop.f32.mrb[0].mxu0
    %v4733 = vadd.f32 0.0, %v4732
    %v4734 = vpop.f32.mrb[0].mxu0
    %4735 = vmatprep.mubr.f32.mxu0 0.0
    %4736 = vmatmul.mubr.f32.gmra.mrb[0].mxu0 %v4614
    %v4737 = vpop.f32.mrb[0].mxu0
    %v4738 = vadd.f32 0.0, %v4737
    %v4739 = vpop.f32.mrb[0].mxu0
    %4740 = vmatprep.mubr.f32.mxu0 0.0
    %4741 = vmatmul.mubr.f32.gmra.mrb[0].mxu0 %v4617
    %v4742 = vpop.f32.mrb[0].mxu0
    %v4743 = vadd.f32 0.0, %v4742
    %v4744 = vpop.f32.mrb[0].mxu0
    %4745 = vmatprep.mubr.f32.mxu0 0.0
    %4746 = vmatmul.mubr.f32.gmra.mrb[0].mxu0 %v4620
    %v4747 = vpop.f32.mrb[0].mxu0
    %v4748 = vadd.f32 0.0, %v4747
    %v4749 = vpop.f32.mrb[0].mxu0
    %4750 = vmatprep.mubr.f32.mxu0 0.0
    %4751 = vmatmul.mubr.f32.gmra.mrb[0].mxu0 %v4623
    %v4752 = vpop.f32.mrb[0].mxu0
    %v4753 = vadd.f32 0.0, %v4752
    %v4754 = vpop.f32.mrb[0].mxu0
    %4755 = vmatprep.mubr.f32.mxu0 0.0
    %4756 = vmatmul.mubr.f32.gmra.mrb[0].mxu0 %v4626
    %v4757 = vpop.f32.mrb[0].mxu0
    %v4758 = vadd.f32 0.0, %v4757
    %v4759 = vpop.f32.mrb[0].mxu0
    %4760 = vmatprep.mubr.f32.mxu0 0.0
    %4761 = vmatmul.mubr.f32.gmra.mrb[0].mxu0 %v4629
    %v4762 = vpop.f32.mrb[0].mxu0
    %v4763 = vadd.f32 0.0, %v4762
    %v4764 = vpop.f32.mrb[0].mxu0
    %4765 = vmatprep.mubr.f32.mxu0 0.0
    %4766 = vmatmul.mubr.f32.gmra.mrb[0].mxu0 %v4632
    %v4767 = vpop.f32.mrb[0].mxu0
    %v4768 = vadd.f32 0.0, %v4767
    %v4769 = vpop.f32.mrb[0].mxu0
    %4770 = vmatprep.mubr.f32.mxu0 0.0
    %4771 = vmatmul.mubr.f32.gmra.mrb[0].mxu0 %v4635
    %v4772 = vpop.f32.mrb[0].mxu0
    %v4773 = vadd.f32 0.0, %v4772
    %v4774 = vpop.f32.mrb[0].mxu0
    %4775 = vmatprep.mubr.f32.mxu0 0.0
    %4776 = vmatmul.mubr.f32.gmra.mrb[0].mxu0 %v4638
    %v4777 = vpop.f32.mrb[0].mxu0
    %v4778 = vadd.f32 0.0, %v4777
    %v4779 = vpop.f32.mrb[0].mxu0
    %4780 = vmatprep.mubr.f32.mxu0 0.0
    %4781 = vmatmul.mubr.f32.gmra.mrb[0].mxu0 %v4641
    %v4782 = vpop.f32.mrb[0].mxu0
    %v4783 = vadd.f32 0.0, %v4782
    %v4784 = vpop.f32.mrb[0].mxu0
    %4785 = vmatprep.mubr.f32.mxu0 0.0
    %4786 = vmatmul.mubr.f32.gmra.mrb[0].mxu0 %v4644
    %v4787 = vpop.f32.mrb[0].mxu0
    %v4788 = vadd.f32 0.0, %v4787
    %v4789 = vpop.f32.mrb[0].mxu0
    %4790 = vdwg.mxu0
    %v4791 = vadd.f32 %v4557, %v4713
    %v4792 = vadd.f32 %v4558, %v4718
    %v4793 = vadd.f32 %v4559, %v4723
    %v4794 = vadd.f32 %v4560, %v4728
    %v4795 = vadd.f32 %v4561, %v4733
    %v4796 = vadd.f32 %v4562, %v4738
    %v4797 = vadd.f32 %v4563, %v4743
    %v4798 = vadd.f32 %v4564, %v4748
    %v4799 = vadd.f32 %v4565, %v4753
    %v4800 = vadd.f32 %v4566, %v4758
    %v4801 = vadd.f32 %v4567, %v4763
    %v4802 = vadd.f32 %v4568, %v4768
    %v4803 = vadd.f32 %v4569, %v4773
    %v4804 = vadd.f32 %v4570, %v4778
    %v4805 = vadd.f32 %v4571, %v4783
    %v4806 = vadd.f32 %v4572, %v4788
    %v4807 = vld [vmem:[%s1955 + $0x1] sm:$0xff]
    %v4808 = vld [vmem:[%s1955 + $0x11] sm:$0xff]
    %v4809 = vld [vmem:[%s1955 + $0x21] sm:$0xff]
    %v4810 = vld [vmem:[%s1955 + $0x31] sm:$0xff]
    %v4811 = vld [vmem:[%s1955 + $0x41] sm:$0xff]
    %v4812 = vld [vmem:[%s1955 + $0x51] sm:$0xff]
    %v4813 = vld [vmem:[%s1955 + $0x61] sm:$0xff]
    %v4814 = vld [vmem:[%s1955 + $0x71] sm:$0xff]
    %v4815 = vld [vmem:[%s1955 + $0xa1] sm:$0xff]
    %v4816 = vld [vmem:[%s1955 + $0xb1] sm:$0xff]
    %v4817 = vld [vmem:[%s1955 + $0xc1] sm:$0xff]
    %v4818 = vld [vmem:[%s1955 + $0xd1] sm:$0xff]
    %v4819 = vld [vmem:[%s1955 + $0xe1] sm:$0xff]
    %v4820 = vld [vmem:[%s1955 + $0xf1] sm:$0xff]
    %v4821 = vld [vmem:[%s1955 + $0x101] sm:$0xff]
    %v4822 = vld [vmem:[%s1955 + $0x111] sm:$0xff]
    %s4823 = scalar_lea.vmem [#allocation7], 448
    %v4824 = vld [vmem:[%s4823] sm:$0xff]
    %v4825 = vld [vmem:[%s4823 + $0x8] sm:$0xff]
    %v4826 = vld [vmem:[%s4823 + $0x10] sm:$0xff]
    %v4827 = vld [vmem:[%s4823 + $0x18] sm:$0xff]
    %v4828 = vld [vmem:[%s4823 + $0x20] sm:$0xff]
    %v4829 = vld [vmem:[%s4823 + $0x28] sm:$0xff]
    %v4830 = vld [vmem:[%s4823 + $0x30] sm:$0xff]
    %v4831 = vld [vmem:[%s4823 + $0x38] sm:$0xff]
    %v4833 = vsel %vm537, %v4807, 0
    %v4836 = vsel %vm537, %v4808, 0
    %v4839 = vsel %vm537, %v4809, 0
    %v4842 = vsel %vm537, %v4810, 0
    %v4845 = vsel %vm537, %v4811, 0
    %v4848 = vsel %vm537, %v4812, 0
    %v4851 = vsel %vm537, %v4813, 0
    %v4854 = vsel %vm537, %v4814, 0
    %v4857 = vsel %vm537, %v4815, 0
    %v4860 = vsel %vm537, %v4816, 0
    %v4863 = vsel %vm537, %v4817, 0
    %v4866 = vsel %vm537, %v4818, 0
    %v4869 = vsel %vm537, %v4819, 0
    %v4872 = vsel %vm537, %v4820, 0
    %v4875 = vsel %vm537, %v4821, 0
    %v4878 = vsel %vm537, %v4822, 0
    %4880 = vmatprep.subr.mxu0 0.0
    %4881 = vmatpush1.msra.mxu0 %v4824
    %4882 = vmatprep.subr.mxu0 0.0
    %4883 = vmatpush1.msra.mxu0 %v4825
    %4884 = vmatprep.subr.mxu0 0.0
    %4885 = vmatpush1.msra.mxu0 %v4826
    %4886 = vmatprep.subr.mxu0 0.0
    %4887 = vmatpush1.msra.mxu0 %v4827
    %4888 = vmatprep.subr.mxu0 0.0
    %4889 = vmatpush1.msra.mxu0 %v4828
    %4890 = vmatprep.subr.mxu0 0.0
    %4891 = vmatpush1.msra.mxu0 %v4829
    %4892 = vmatprep.subr.mxu0 0.0
    %4893 = vmatpush1.msra.mxu0 %v4830
    %4894 = vmatprep.subr.mxu0 0.0
    %4895 = vmatpush1.msra.mxu0 %v4831
    %4896 = vmatprep.subr.mxu0 0.0
    %4897 = vmatpush1.msra.mxu0 0.0
    %4898 = vmatprep.subr.mxu0 0.0
    %4899 = vmatpush1.msra.mxu0 0.0
    %4900 = vmatprep.subr.mxu0 0.0
    %4901 = vmatpush1.msra.mxu0 0.0
    %4902 = vmatprep.subr.mxu0 0.0
    %4903 = vmatpush1.msra.mxu0 0.0
    %4904 = vmatprep.subr.mxu0 0.0
    %4905 = vmatpush1.msra.mxu0 0.0
    %4906 = vmatprep.subr.mxu0 0.0
    %4907 = vmatpush1.msra.mxu0 0.0
    %4908 = vmatprep.subr.mxu0 0.0
    %4909 = vmatpush1.msra.mxu0 0.0
    %4910 = vmatprep.subr.mxu0 0.0
    %4911 = vmatpush1.msra.mxu0 0.0
    %4912 = vmatprep.subr.mxu0 0.0
    %4913 = vmatpush1.msra.mxu0 0.0
    %4914 = vmatprep.subr.mxu0 0.0
    %4915 = vmatpush1.msra.mxu0 0.0
    %4916 = vmatprep.subr.mxu0 0.0
    %4917 = vmatpush1.msra.mxu0 0.0
    %4918 = vmatprep.subr.mxu0 0.0
    %4919 = vmatpush1.msra.mxu0 0.0
    %4920 = vmatprep.subr.mxu0 0.0
    %4921 = vmatpush1.msra.mxu0 0.0
    %4922 = vmatprep.subr.mxu0 0.0
    %4923 = vmatpush1.msra.mxu0 0.0
    %4924 = vmatprep.subr.mxu0 0.0
    %4925 = vmatpush1.msra.mxu0 0.0
    %4926 = vmatprep.subr.mxu0 0.0
    %4927 = vmatpush1.msra.mxu0 0.0
    %4928 = vmatprep.subr.mxu0 0.0
    %4929 = vmatpush1.msra.mxu0 0.0
    %4930 = vmatprep.subr.mxu0 0.0
    %4931 = vmatpush1.msra.mxu0 0.0
    %4932 = vmatprep.subr.mxu0 0.0
    %4933 = vmatpush1.msra.mxu0 0.0
    %4934 = vmatprep.subr.mxu0 0.0
    %4935 = vmatpush1.msra.mxu0 0.0
    %4936 = vmatprep.subr.mxu0 0.0
    %4937 = vmatpush1.msra.mxu0 0.0
    %4938 = vmatprep.subr.mxu0 0.0
    %4939 = vmatpush1.msra.mxu0 0.0
    %4940 = vmatprep.subr.mxu0 0.0
    %4941 = vmatpush1.msra.mxu0 0.0
    %4942 = vmatprep.subr.mxu0 0.0
    %4943 = vmatpush1.msra.mxu0 0.0
    %4944 = vmatprep.mubr.f32.mxu0 0.0
    %4945 = vmatmul.mubr.f32.gmra.mrb[0].mxu0 %v4833
    %v4946 = vpop.f32.mrb[0].mxu0
    %v4947 = vadd.f32 0.0, %v4946
    %v4948 = vpop.f32.mrb[0].mxu0
    %4949 = vmatprep.mubr.f32.mxu0 0.0
    %4950 = vmatmul.mubr.f32.gmra.mrb[0].mxu0 %v4836
    %v4951 = vpop.f32.mrb[0].mxu0
    %v4952 = vadd.f32 0.0, %v4951
    %v4953 = vpop.f32.mrb[0].mxu0
    %4954 = vmatprep.mubr.f32.mxu0 0.0
    %4955 = vmatmul.mubr.f32.gmra.mrb[0].mxu0 %v4839
    %v4956 = vpop.f32.mrb[0].mxu0
    %v4957 = vadd.f32 0.0, %v4956
    %v4958 = vpop.f32.mrb[0].mxu0
    %4959 = vmatprep.mubr.f32.mxu0 0.0
    %4960 = vmatmul.mubr.f32.gmra.mrb[0].mxu0 %v4842
    %v4961 = vpop.f32.mrb[0].mxu0
    %v4962 = vadd.f32 0.0, %v4961
    %v4963 = vpop.f32.mrb[0].mxu0
    %4964 = vmatprep.mubr.f32.mxu0 0.0
    %4965 = vmatmul.mubr.f32.gmra.mrb[0].mxu0 %v4845
    %v4966 = vpop.f32.mrb[0].mxu0
    %v4967 = vadd.f32 0.0, %v4966
    %v4968 = vpop.f32.mrb[0].mxu0
    %4969 = vmatprep.mubr.f32.mxu0 0.0
    %4970 = vmatmul.mubr.f32.gmra.mrb[0].mxu0 %v4848
    %v4971 = vpop.f32.mrb[0].mxu0
    %v4972 = vadd.f32 0.0, %v4971
    %v4973 = vpop.f32.mrb[0].mxu0
    %4974 = vmatprep.mubr.f32.mxu0 0.0
    %4975 = vmatmul.mubr.f32.gmra.mrb[0].mxu0 %v4851
    %v4976 = vpop.f32.mrb[0].mxu0
    %v4977 = vadd.f32 0.0, %v4976
    %v4978 = vpop.f32.mrb[0].mxu0
    %4979 = vmatprep.mubr.f32.mxu0 0.0
    %4980 = vmatmul.mubr.f32.gmra.mrb[0].mxu0 %v4854
    %v4981 = vpop.f32.mrb[0].mxu0
    %v4982 = vadd.f32 0.0, %v4981
    %v4983 = vpop.f32.mrb[0].mxu0
    %4984 = vmatprep.mubr.f32.mxu0 0.0
    %4985 = vmatmul.mubr.f32.gmra.mrb[0].mxu0 %v4857
    %v4986 = vpop.f32.mrb[0].mxu0
    %v4987 = vadd.f32 0.0, %v4986
    %v4988 = vpop.f32.mrb[0].mxu0
    %4989 = vmatprep.mubr.f32.mxu0 0.0
    %4990 = vmatmul.mubr.f32.gmra.mrb[0].mxu0 %v4860
    %v4991 = vpop.f32.mrb[0].mxu0
    %v4992 = vadd.f32 0.0, %v4991
    %v4993 = vpop.f32.mrb[0].mxu0
    %4994 = vmatprep.mubr.f32.mxu0 0.0
    %4995 = vmatmul.mubr.f32.gmra.mrb[0].mxu0 %v4863
    %v4996 = vpop.f32.mrb[0].mxu0
    %v4997 = vadd.f32 0.0, %v4996
    %v4998 = vpop.f32.mrb[0].mxu0
    %4999 = vmatprep.mubr.f32.mxu0 0.0
    %5000 = vmatmul.mubr.f32.gmra.mrb[0].mxu0 %v4866
    %v5001 = vpop.f32.mrb[0].mxu0
    %v5002 = vadd.f32 0.0, %v5001
    %v5003 = vpop.f32.mrb[0].mxu0
    %5004 = vmatprep.mubr.f32.mxu0 0.0
    %5005 = vmatmul.mubr.f32.gmra.mrb[0].mxu0 %v4869
    %v5006 = vpop.f32.mrb[0].mxu0
    %v5007 = vadd.f32 0.0, %v5006
    %v5008 = vpop.f32.mrb[0].mxu0
    %5009 = vmatprep.mubr.f32.mxu0 0.0
    %5010 = vmatmul.mubr.f32.gmra.mrb[0].mxu0 %v4872
    %v5011 = vpop.f32.mrb[0].mxu0
    %v5012 = vadd.f32 0.0, %v5011
    %v5013 = vpop.f32.mrb[0].mxu0
    %5014 = vmatprep.mubr.f32.mxu0 0.0
    %5015 = vmatmul.mubr.f32.gmra.mrb[0].mxu0 %v4875
    %v5016 = vpop.f32.mrb[0].mxu0
    %v5017 = vadd.f32 0.0, %v5016
    %v5018 = vpop.f32.mrb[0].mxu0
    %5019 = vmatprep.mubr.f32.mxu0 0.0
    %5020 = vmatmul.mubr.f32.gmra.mrb[0].mxu0 %v4878
    %v5021 = vpop.f32.mrb[0].mxu0
    %v5022 = vadd.f32 0.0, %v5021
    %v5023 = vpop.f32.mrb[0].mxu0
    %5024 = vdwg.mxu0
    %v5025 = vadd.f32 %v4791, %v4947
    %v5026 = vadd.f32 %v4792, %v4952
    %v5027 = vadd.f32 %v4793, %v4957
    %v5028 = vadd.f32 %v4794, %v4962
    %v5029 = vadd.f32 %v4795, %v4967
    %v5030 = vadd.f32 %v4796, %v4972
    %v5031 = vadd.f32 %v4797, %v4977
    %v5032 = vadd.f32 %v4798, %v4982
    %v5033 = vadd.f32 %v4799, %v4987
    %v5034 = vadd.f32 %v4800, %v4992
    %v5035 = vadd.f32 %v4801, %v4997
    %v5036 = vadd.f32 %v4802, %v5002
    %v5037 = vadd.f32 %v4803, %v5007
    %v5038 = vadd.f32 %v4804, %v5012
    %v5039 = vadd.f32 %v4805, %v5017
    %v5040 = vadd.f32 %v4806, %v5022
    %v5041 = vld [vmem:[%s1955 + $0x2] sm:$0xff]
    %v5042 = vld [vmem:[%s1955 + $0x12] sm:$0xff]
    %v5043 = vld [vmem:[%s1955 + $0x22] sm:$0xff]
    %v5044 = vld [vmem:[%s1955 + $0x32] sm:$0xff]
    %v5045 = vld [vmem:[%s1955 + $0x42] sm:$0xff]
    %v5046 = vld [vmem:[%s1955 + $0x52] sm:$0xff]
    %v5047 = vld [vmem:[%s1955 + $0x62] sm:$0xff]
    %v5048 = vld [vmem:[%s1955 + $0x72] sm:$0xff]
    %v5049 = vld [vmem:[%s1955 + $0xa2] sm:$0xff]
    %v5050 = vld [vmem:[%s1955 + $0xb2] sm:$0xff]
    %v5051 = vld [vmem:[%s1955 + $0xc2] sm:$0xff]
    %v5052 = vld [vmem:[%s1955 + $0xd2] sm:$0xff]
    %v5053 = vld [vmem:[%s1955 + $0xe2] sm:$0xff]
    %v5054 = vld [vmem:[%s1955 + $0xf2] sm:$0xff]
    %v5055 = vld [vmem:[%s1955 + $0x102] sm:$0xff]
    %v5056 = vld [vmem:[%s1955 + $0x112] sm:$0xff]
    %s5057 = scalar_lea.vmem [#allocation7], 512
    %v5058 = vld [vmem:[%s5057] sm:$0xff]
    %v5059 = vld [vmem:[%s5057 + $0x8] sm:$0xff]
    %v5060 = vld [vmem:[%s5057 + $0x10] sm:$0xff]
    %v5061 = vld [vmem:[%s5057 + $0x18] sm:$0xff]
    %v5062 = vld [vmem:[%s5057 + $0x20] sm:$0xff]
    %v5063 = vld [vmem:[%s5057 + $0x28] sm:$0xff]
    %v5064 = vld [vmem:[%s5057 + $0x30] sm:$0xff]
    %v5065 = vld [vmem:[%s5057 + $0x38] sm:$0xff]
    %v5067 = vsel %vm537, %v5041, 0
    %v5070 = vsel %vm537, %v5042, 0
    %v5073 = vsel %vm537, %v5043, 0
    %v5076 = vsel %vm537, %v5044, 0
    %v5079 = vsel %vm537, %v5045, 0
    %v5082 = vsel %vm537, %v5046, 0
    %v5085 = vsel %vm537, %v5047, 0
    %v5088 = vsel %vm537, %v5048, 0
    %v5091 = vsel %vm537, %v5049, 0
    %v5094 = vsel %vm537, %v5050, 0
    %v5097 = vsel %vm537, %v5051, 0
    %v5100 = vsel %vm537, %v5052, 0
    %v5103 = vsel %vm537, %v5053, 0
    %v5106 = vsel %vm537, %v5054, 0
    %v5109 = vsel %vm537, %v5055, 0
    %v5112 = vsel %vm537, %v5056, 0
    %5114 = vmatprep.subr.mxu0 0.0
    %5115 = vmatpush1.msra.mxu0 %v5058
    %5116 = vmatprep.subr.mxu0 0.0
    %5117 = vmatpush1.msra.mxu0 %v5059
    %5118 = vmatprep.subr.mxu0 0.0
    %5119 = vmatpush1.msra.mxu0 %v5060
    %5120 = vmatprep.subr.mxu0 0.0
    %5121 = vmatpush1.msra.mxu0 %v5061
    %5122 = vmatprep.subr.mxu0 0.0
    %5123 = vmatpush1.msra.mxu0 %v5062
    %5124 = vmatprep.subr.mxu0 0.0
    %5125 = vmatpush1.msra.mxu0 %v5063
    %5126 = vmatprep.subr.mxu0 0.0
    %5127 = vmatpush1.msra.mxu0 %v5064
    %5128 = vmatprep.subr.mxu0 0.0
    %5129 = vmatpush1.msra.mxu0 %v5065
    %5130 = vmatprep.subr.mxu0 0.0
    %5131 = vmatpush1.msra.mxu0 0.0
    %5132 = vmatprep.subr.mxu0 0.0
    %5133 = vmatpush1.msra.mxu0 0.0
    %5134 = vmatprep.subr.mxu0 0.0
    %5135 = vmatpush1.msra.mxu0 0.0
    %5136 = vmatprep.subr.mxu0 0.0
    %5137 = vmatpush1.msra.mxu0 0.0
    %5138 = vmatprep.subr.mxu0 0.0
    %5139 = vmatpush1.msra.mxu0 0.0
    %5140 = vmatprep.subr.mxu0 0.0
    %5141 = vmatpush1.msra.mxu0 0.0
    %5142 = vmatprep.subr.mxu0 0.0
    %5143 = vmatpush1.msra.mxu0 0.0
    %5144 = vmatprep.subr.mxu0 0.0
    %5145 = vmatpush1.msra.mxu0 0.0
    %5146 = vmatprep.subr.mxu0 0.0
    %5147 = vmatpush1.msra.mxu0 0.0
    %5148 = vmatprep.subr.mxu0 0.0
    %5149 = vmatpush1.msra.mxu0 0.0
    %5150 = vmatprep.subr.mxu0 0.0
    %5151 = vmatpush1.msra.mxu0 0.0
    %5152 = vmatprep.subr.mxu0 0.0
    %5153 = vmatpush1.msra.mxu0 0.0
    %5154 = vmatprep.subr.mxu0 0.0
    %5155 = vmatpush1.msra.mxu0 0.0
    %5156 = vmatprep.subr.mxu0 0.0
    %5157 = vmatpush1.msra.mxu0 0.0
    %5158 = vmatprep.subr.mxu0 0.0
    %5159 = vmatpush1.msra.mxu0 0.0
    %5160 = vmatprep.subr.mxu0 0.0
    %5161 = vmatpush1.msra.mxu0 0.0
    %5162 = vmatprep.subr.mxu0 0.0
    %5163 = vmatpush1.msra.mxu0 0.0
    %5164 = vmatprep.subr.mxu0 0.0
    %5165 = vmatpush1.msra.mxu0 0.0
    %5166 = vmatprep.subr.mxu0 0.0
    %5167 = vmatpush1.msra.mxu0 0.0
    %5168 = vmatprep.subr.mxu0 0.0
    %5169 = vmatpush1.msra.mxu0 0.0
    %5170 = vmatprep.subr.mxu0 0.0
    %5171 = vmatpush1.msra.mxu0 0.0
    %5172 = vmatprep.subr.mxu0 0.0
    %5173 = vmatpush1.msra.mxu0 0.0
    %5174 = vmatprep.subr.mxu0 0.0
    %5175 = vmatpush1.msra.mxu0 0.0
    %5176 = vmatprep.subr.mxu0 0.0
    %5177 = vmatpush1.msra.mxu0 0.0
    %5178 = vmatprep.mubr.f32.mxu0 0.0
    %5179 = vmatmul.mubr.f32.gmra.mrb[0].mxu0 %v5067
    %v5180 = vpop.f32.mrb[0].mxu0
    %v5181 = vadd.f32 0.0, %v5180
    %v5182 = vpop.f32.mrb[0].mxu0
    %5183 = vmatprep.mubr.f32.mxu0 0.0
    %5184 = vmatmul.mubr.f32.gmra.mrb[0].mxu0 %v5070
    %v5185 = vpop.f32.mrb[0].mxu0
    %v5186 = vadd.f32 0.0, %v5185
    %v5187 = vpop.f32.mrb[0].mxu0
    %5188 = vmatprep.mubr.f32.mxu0 0.0
    %5189 = vmatmul.mubr.f32.gmra.mrb[0].mxu0 %v5073
    %v5190 = vpop.f32.mrb[0].mxu0
    %v5191 = vadd.f32 0.0, %v5190
    %v5192 = vpop.f32.mrb[0].mxu0
    %5193 = vmatprep.mubr.f32.mxu0 0.0
    %5194 = vmatmul.mubr.f32.gmra.mrb[0].mxu0 %v5076
    %v5195 = vpop.f32.mrb[0].mxu0
    %v5196 = vadd.f32 0.0, %v5195
    %v5197 = vpop.f32.mrb[0].mxu0
    %5198 = vmatprep.mubr.f32.mxu0 0.0
    %5199 = vmatmul.mubr.f32.gmra.mrb[0].mxu0 %v5079
    %v5200 = vpop.f32.mrb[0].mxu0
    %v5201 = vadd.f32 0.0, %v5200
    %v5202 = vpop.f32.mrb[0].mxu0
    %5203 = vmatprep.mubr.f32.mxu0 0.0
    %5204 = vmatmul.mubr.f32.gmra.mrb[0].mxu0 %v5082
    %v5205 = vpop.f32.mrb[0].mxu0
    %v5206 = vadd.f32 0.0, %v5205
    %v5207 = vpop.f32.mrb[0].mxu0
    %5208 = vmatprep.mubr.f32.mxu0 0.0
    %5209 = vmatmul.mubr.f32.gmra.mrb[0].mxu0 %v5085
    %v5210 = vpop.f32.mrb[0].mxu0
    %v5211 = vadd.f32 0.0, %v5210
    %v5212 = vpop.f32.mrb[0].mxu0
    %5213 = vmatprep.mubr.f32.mxu0 0.0
    %5214 = vmatmul.mubr.f32.gmra.mrb[0].mxu0 %v5088
    %v5215 = vpop.f32.mrb[0].mxu0
    %v5216 = vadd.f32 0.0, %v5215
    %v5217 = vpop.f32.mrb[0].mxu0
    %5218 = vmatprep.mubr.f32.mxu0 0.0
    %5219 = vmatmul.mubr.f32.gmra.mrb[0].mxu0 %v5091
    %v5220 = vpop.f32.mrb[0].mxu0
    %v5221 = vadd.f32 0.0, %v5220
    %v5222 = vpop.f32.mrb[0].mxu0
    %5223 = vmatprep.mubr.f32.mxu0 0.0
    %5224 = vmatmul.mubr.f32.gmra.mrb[0].mxu0 %v5094
    %v5225 = vpop.f32.mrb[0].mxu0
    %v5226 = vadd.f32 0.0, %v5225
    %v5227 = vpop.f32.mrb[0].mxu0
    %5228 = vmatprep.mubr.f32.mxu0 0.0
    %5229 = vmatmul.mubr.f32.gmra.mrb[0].mxu0 %v5097
    %v5230 = vpop.f32.mrb[0].mxu0
    %v5231 = vadd.f32 0.0, %v5230
    %v5232 = vpop.f32.mrb[0].mxu0
    %5233 = vmatprep.mubr.f32.mxu0 0.0
    %5234 = vmatmul.mubr.f32.gmra.mrb[0].mxu0 %v5100
    %v5235 = vpop.f32.mrb[0].mxu0
    %v5236 = vadd.f32 0.0, %v5235
    %v5237 = vpop.f32.mrb[0].mxu0
    %5238 = vmatprep.mubr.f32.mxu0 0.0
    %5239 = vmatmul.mubr.f32.gmra.mrb[0].mxu0 %v5103
    %v5240 = vpop.f32.mrb[0].mxu0
    %v5241 = vadd.f32 0.0, %v5240
    %v5242 = vpop.f32.mrb[0].mxu0
    %5243 = vmatprep.mubr.f32.mxu0 0.0
    %5244 = vmatmul.mubr.f32.gmra.mrb[0].mxu0 %v5106
    %v5245 = vpop.f32.mrb[0].mxu0
    %v5246 = vadd.f32 0.0, %v5245
    %v5247 = vpop.f32.mrb[0].mxu0
    %5248 = vmatprep.mubr.f32.mxu0 0.0
    %5249 = vmatmul.mubr.f32.gmra.mrb[0].mxu0 %v5109
    %v5250 = vpop.f32.mrb[0].mxu0
    %v5251 = vadd.f32 0.0, %v5250
    %v5252 = vpop.f32.mrb[0].mxu0
    %5253 = vmatprep.mubr.f32.mxu0 0.0
    %5254 = vmatmul.mubr.f32.gmra.mrb[0].mxu0 %v5112
    %v5255 = vpop.f32.mrb[0].mxu0
    %v5256 = vadd.f32 0.0, %v5255
    %v5257 = vpop.f32.mrb[0].mxu0
    %5258 = vdwg.mxu0
    %v5259 = vadd.f32 %v5025, %v5181
    %v5260 = vadd.f32 %v5026, %v5186
    %v5261 = vadd.f32 %v5027, %v5191
    %v5262 = vadd.f32 %v5028, %v5196
    %v5263 = vadd.f32 %v5029, %v5201
    %v5264 = vadd.f32 %v5030, %v5206
    %v5265 = vadd.f32 %v5031, %v5211
    %v5266 = vadd.f32 %v5032, %v5216
    %v5267 = vadd.f32 %v5033, %v5221
    %v5268 = vadd.f32 %v5034, %v5226
    %v5269 = vadd.f32 %v5035, %v5231
    %v5270 = vadd.f32 %v5036, %v5236
    %v5271 = vadd.f32 %v5037, %v5241
    %v5272 = vadd.f32 %v5038, %v5246
    %v5273 = vadd.f32 %v5039, %v5251
    %v5274 = vadd.f32 %v5040, %v5256
    %v5275 = vsel %vm537, %v5259, 0.0
    %v5276 = vsel %vm537, %v5260, 0.0
    %v5277 = vadd.f32 %v5275, %v5276
    %v5278 = vsel %vm537, %v5261, 0.0
    %v5279 = vadd.f32 %v5277, %v5278
    %v5280 = vsel %vm537, %v5262, 0.0
    %v5281 = vadd.f32 %v5279, %v5280
    %v5282 = vsel %vm537, %v5263, 0.0
    %v5283 = vadd.f32 %v5281, %v5282
    %v5284 = vsel %vm537, %v5264, 0.0
    %v5285 = vadd.f32 %v5283, %v5284
    %v5286 = vsel %vm537, %v5265, 0.0
    %v5287 = vadd.f32 %v5285, %v5286
    %v5288 = vsel %vm537, %v5266, 0.0
    %v5289 = vadd.f32 %v5287, %v5288
    %v5290 = vsel %vm537, %v5267, 0.0
    %v5291 = vadd.f32 %v5289, %v5290
    %v5292 = vsel %vm537, %v5268, 0.0
    %v5293 = vadd.f32 %v5291, %v5292
    %v5294 = vsel %vm537, %v5269, 0.0
    %v5295 = vadd.f32 %v5293, %v5294
    %v5296 = vsel %vm537, %v5270, 0.0
    %v5297 = vadd.f32 %v5295, %v5296
    %v5298 = vsel %vm537, %v5271, 0.0
    %v5299 = vadd.f32 %v5297, %v5298
    %v5300 = vsel %vm537, %v5272, 0.0
    %v5301 = vadd.f32 %v5299, %v5300
    %v5302 = vsel %vm537, %v5273, 0.0
    %v5303 = vadd.f32 %v5301, %v5302
    %v5304 = vsel %vm537, %v5274, 0.0
    %v5305 = vadd.f32 %v5303, %v5304
    %v5306 = vrot.slane %v5305, 4
    %v5307 = vadd.f32 %v5305, %v5306
    %v5308 = vrot.slane %v5307, 2
    %v5309 = vadd.f32 %v5307, %v5308
    %v5310 = vrot.slane %v5309, 1
    %v5311 = vadd.f32 %v5309, %v5310
    %v5313 = vsel %vm537, %v5311, 0
    %5315 = vmatprep.subr.mxu0 0.0
    %5316 = vmatpush1.msra.mxu0 %v597
    %5317 = vmatprep.subr.mxu0 0.0
    %5318 = vmatpush1.msra.mxu0 %v598
    %5319 = vmatprep.subr.mxu0 0.0
    %5320 = vmatpush1.msra.mxu0 %v599
    %5321 = vmatprep.subr.mxu0 0.0
    %5322 = vmatpush1.msra.mxu0 %v600
    %5323 = vmatprep.subr.mxu0 0.0
    %5324 = vmatpush1.msra.mxu0 %v601
    %5325 = vmatprep.subr.mxu0 0.0
    %5326 = vmatpush1.msra.mxu0 %v602
    %5327 = vmatprep.subr.mxu0 0.0
    %5328 = vmatpush1.msra.mxu0 %v603
    %5329 = vmatprep.subr.mxu0 0.0
    %5330 = vmatpush1.msra.mxu0 %v604
    %5331 = vmatprep.subr.mxu0 0.0
    %5332 = vmatpush1.msra.mxu0 0.0
    %5333 = vmatprep.subr.mxu0 0.0
    %5334 = vmatpush1.msra.mxu0 0.0
    %5335 = vmatprep.subr.mxu0 0.0
    %5336 = vmatpush1.msra.mxu0 0.0
    %5337 = vmatprep.subr.mxu0 0.0
    %5338 = vmatpush1.msra.mxu0 0.0
    %5339 = vmatprep.subr.mxu0 0.0
    %5340 = vmatpush1.msra.mxu0 0.0
    %5341 = vmatprep.subr.mxu0 0.0
    %5342 = vmatpush1.msra.mxu0 0.0
    %5343 = vmatprep.subr.mxu0 0.0
    %5344 = vmatpush1.msra.mxu0 0.0
    %5345 = vmatprep.subr.mxu0 0.0
    %5346 = vmatpush1.msra.mxu0 0.0
    %5347 = vmatprep.subr.mxu0 0.0
    %5348 = vmatpush1.msra.mxu0 0.0
    %5349 = vmatprep.subr.mxu0 0.0
    %5350 = vmatpush1.msra.mxu0 0.0
    %5351 = vmatprep.subr.mxu0 0.0
    %5352 = vmatpush1.msra.mxu0 0.0
    %5353 = vmatprep.subr.mxu0 0.0
    %5354 = vmatpush1.msra.mxu0 0.0
    %5355 = vmatprep.subr.mxu0 0.0
    %5356 = vmatpush1.msra.mxu0 0.0
    %5357 = vmatprep.subr.mxu0 0.0
    %5358 = vmatpush1.msra.mxu0 0.0
    %5359 = vmatprep.subr.mxu0 0.0
    %5360 = vmatpush1.msra.mxu0 0.0
    %5361 = vmatprep.subr.mxu0 0.0
    %5362 = vmatpush1.msra.mxu0 0.0
    %5363 = vmatprep.subr.mxu0 0.0
    %5364 = vmatpush1.msra.mxu0 0.0
    %5365 = vmatprep.subr.mxu0 0.0
    %5366 = vmatpush1.msra.mxu0 0.0
    %5367 = vmatprep.subr.mxu0 0.0
    %5368 = vmatpush1.msra.mxu0 0.0
    %5369 = vmatprep.subr.mxu0 0.0
    %5370 = vmatpush1.msra.mxu0 0.0
    %5371 = vmatprep.subr.mxu0 0.0
    %5372 = vmatpush1.msra.mxu0 0.0
    %5373 = vmatprep.subr.mxu0 0.0
    %5374 = vmatpush1.msra.mxu0 0.0
    %5375 = vmatprep.subr.mxu0 0.0
    %5376 = vmatpush1.msra.mxu0 0.0
    %5377 = vmatprep.subr.mxu0 0.0
    %5378 = vmatpush1.msra.mxu0 0.0
    %5379 = vmatprep.mubr.f32.mxu0 0.0
    %5380 = vmatmul.mubr.f32.gmra.mrb[0].mxu0 %v5313
    %v5381 = vpop.f32.mrb[0].mxu0
    %v5382 = vadd.f32 0.0, %v5381
    %v5383 = vpop.f32.mrb[0].mxu0
    %5384 = vdwg.mxu0
    %v5385 = vmul.f32 %v5382, %v2756
    %v5387 = vsel %vm2758, %v5385, 0
    %5389 = vmatprep.subr.mxu0 0.0
    %5390 = vmatpush1.msra.mxu0 %v605
    %5391 = vmatprep.subr.mxu0 0.0
    %5392 = vmatpush1.msra.mxu0 0.0
    %5393 = vmatprep.subr.mxu0 0.0
    %5394 = vmatpush1.msra.mxu0 0.0
    %5395 = vmatprep.subr.mxu0 0.0
    %5396 = vmatpush1.msra.mxu0 0.0
    %5397 = vmatprep.subr.mxu0 0.0
    %5398 = vmatpush1.msra.mxu0 0.0
    %5399 = vmatprep.subr.mxu0 0.0
    %5400 = vmatpush1.msra.mxu0 0.0
    %5401 = vmatprep.subr.mxu0 0.0
    %5402 = vmatpush1.msra.mxu0 0.0
    %5403 = vmatprep.subr.mxu0 0.0
    %5404 = vmatpush1.msra.mxu0 0.0
    %5405 = vmatprep.subr.mxu0 0.0
    %5406 = vmatpush1.msra.mxu0 0.0
    %5407 = vmatprep.subr.mxu0 0.0
    %5408 = vmatpush1.msra.mxu0 0.0
    %5409 = vmatprep.subr.mxu0 0.0
    %5410 = vmatpush1.msra.mxu0 0.0
    %5411 = vmatprep.subr.mxu0 0.0
    %5412 = vmatpush1.msra.mxu0 0.0
    %5413 = vmatprep.subr.mxu0 0.0
    %5414 = vmatpush1.msra.mxu0 0.0
    %5415 = vmatprep.subr.mxu0 0.0
    %5416 = vmatpush1.msra.mxu0 0.0
    %5417 = vmatprep.subr.mxu0 0.0
    %5418 = vmatpush1.msra.mxu0 0.0
    %5419 = vmatprep.subr.mxu0 0.0
    %5420 = vmatpush1.msra.mxu0 0.0
    %5421 = vmatprep.subr.mxu0 0.0
    %5422 = vmatpush1.msra.mxu0 0.0
    %5423 = vmatprep.subr.mxu0 0.0
    %5424 = vmatpush1.msra.mxu0 0.0
    %5425 = vmatprep.subr.mxu0 0.0
    %5426 = vmatpush1.msra.mxu0 0.0
    %5427 = vmatprep.subr.mxu0 0.0
    %5428 = vmatpush1.msra.mxu0 0.0
    %5429 = vmatprep.subr.mxu0 0.0
    %5430 = vmatpush1.msra.mxu0 0.0
    %5431 = vmatprep.subr.mxu0 0.0
    %5432 = vmatpush1.msra.mxu0 0.0
    %5433 = vmatprep.subr.mxu0 0.0
    %5434 = vmatpush1.msra.mxu0 0.0
    %5435 = vmatprep.subr.mxu0 0.0
    %5436 = vmatpush1.msra.mxu0 0.0
    %5437 = vmatprep.subr.mxu0 0.0
    %5438 = vmatpush1.msra.mxu0 0.0
    %5439 = vmatprep.subr.mxu0 0.0
    %5440 = vmatpush1.msra.mxu0 0.0
    %5441 = vmatprep.subr.mxu0 0.0
    %5442 = vmatpush1.msra.mxu0 0.0
    %5443 = vmatprep.subr.mxu0 0.0
    %5444 = vmatpush1.msra.mxu0 0.0
    %5445 = vmatprep.subr.mxu0 0.0
    %5446 = vmatpush1.msra.mxu0 0.0
    %5447 = vmatprep.subr.mxu0 0.0
    %5448 = vmatpush1.msra.mxu0 0.0
    %5449 = vmatprep.subr.mxu0 0.0
    %5450 = vmatpush1.msra.mxu0 0.0
    %5451 = vmatprep.subr.mxu0 0.0
    %5452 = vmatpush1.msra.mxu0 0.0
    %5453 = vmatprep.mubr.f32.mxu0 0.0
    %5454 = vmatmul.mubr.f32.gmra.mrb[0].mxu0 %v5387
    %v5455 = vpop.f32.mrb[0].mxu0
    %v5456 = vadd.f32 0.0, %v5455
    %v5457 = vpop.f32.mrb[0].mxu0
    %5458 = vdwg.mxu0
    %v5459 = vlaneseq
    %v5460 = vshrl.u32 %v5459, 7
    %v5461 = vsub.s32 0, %v5460
    %v5462 = vrot.slane %v5456, %v5461
    %v5463 = vsub.f32 %v5259, %v5462
    %v5464 = vsub.f32 %v5260, %v5462
    %v5465 = vsub.f32 %v5261, %v5462
    %v5466 = vsub.f32 %v5262, %v5462
    %v5467 = vsub.f32 %v5263, %v5462
    %v5468 = vsub.f32 %v5264, %v5462
    %v5469 = vsub.f32 %v5265, %v5462
    %v5470 = vsub.f32 %v5266, %v5462
    %v5471 = vsub.f32 %v5267, %v5462
    %v5472 = vsub.f32 %v5268, %v5462
    %v5473 = vsub.f32 %v5269, %v5462
    %v5474 = vsub.f32 %v5270, %v5462
    %v5475 = vsub.f32 %v5271, %v5462
    %v5476 = vsub.f32 %v5272, %v5462
    %v5477 = vsub.f32 %v5273, %v5462
    %v5478 = vsub.f32 %v5274, %v5462
    %v5479 = vmul.f32 %v5463, %v5463
    %v5480 = vmul.f32 %v5464, %v5464
    %v5481 = vmul.f32 %v5465, %v5465
    %v5482 = vmul.f32 %v5466, %v5466
    %v5483 = vmul.f32 %v5467, %v5467
    %v5484 = vmul.f32 %v5468, %v5468
    %v5485 = vmul.f32 %v5469, %v5469
    %v5486 = vmul.f32 %v5470, %v5470
    %v5487 = vmul.f32 %v5471, %v5471
    %v5488 = vmul.f32 %v5472, %v5472
    %v5489 = vmul.f32 %v5473, %v5473
    %v5490 = vmul.f32 %v5474, %v5474
    %v5491 = vmul.f32 %v5475, %v5475
    %v5492 = vmul.f32 %v5476, %v5476
    %v5493 = vmul.f32 %v5477, %v5477
    %v5494 = vmul.f32 %v5478, %v5478
    %v5495 = vsel %vm537, %v5479, 0.0
    %v5496 = vsel %vm537, %v5480, 0.0
    %v5497 = vadd.f32 %v5495, %v5496
    %v5498 = vsel %vm537, %v5481, 0.0
    %v5499 = vadd.f32 %v5497, %v5498
    %v5500 = vsel %vm537, %v5482, 0.0
    %v5501 = vadd.f32 %v5499, %v5500
    %v5502 = vsel %vm537, %v5483, 0.0
    %v5503 = vadd.f32 %v5501, %v5502
    %v5504 = vsel %vm537, %v5484, 0.0
    %v5505 = vadd.f32 %v5503, %v5504
    %v5506 = vsel %vm537, %v5485, 0.0
    %v5507 = vadd.f32 %v5505, %v5506
    %v5508 = vsel %vm537, %v5486, 0.0
    %v5509 = vadd.f32 %v5507, %v5508
    %v5510 = vsel %vm537, %v5487, 0.0
    %v5511 = vadd.f32 %v5509, %v5510
    %v5512 = vsel %vm537, %v5488, 0.0
    %v5513 = vadd.f32 %v5511, %v5512
    %v5514 = vsel %vm537, %v5489, 0.0
    %v5515 = vadd.f32 %v5513, %v5514
    %v5516 = vsel %vm537, %v5490, 0.0
    %v5517 = vadd.f32 %v5515, %v5516
    %v5518 = vsel %vm537, %v5491, 0.0
    %v5519 = vadd.f32 %v5517, %v5518
    %v5520 = vsel %vm537, %v5492, 0.0
    %v5521 = vadd.f32 %v5519, %v5520
    %v5522 = vsel %vm537, %v5493, 0.0
    %v5523 = vadd.f32 %v5521, %v5522
    %v5524 = vsel %vm537, %v5494, 0.0
    %v5525 = vadd.f32 %v5523, %v5524
    %v5526 = vrot.slane %v5525, 4
    %v5527 = vadd.f32 %v5525, %v5526
    %v5528 = vrot.slane %v5527, 2
    %v5529 = vadd.f32 %v5527, %v5528
    %v5530 = vrot.slane %v5529, 1
    %v5531 = vadd.f32 %v5529, %v5530
    %v5533 = vsel %vm537, %v5531, 0
    %5535 = vmatprep.subr.mxu0 0.0
    %5536 = vmatpush1.msra.mxu0 %v597
    %5537 = vmatprep.subr.mxu0 0.0
    %5538 = vmatpush1.msra.mxu0 %v598
    %5539 = vmatprep.subr.mxu0 0.0
    %5540 = vmatpush1.msra.mxu0 %v599
    %5541 = vmatprep.subr.mxu0 0.0
    %5542 = vmatpush1.msra.mxu0 %v600
    %5543 = vmatprep.subr.mxu0 0.0
    %5544 = vmatpush1.msra.mxu0 %v601
    %5545 = vmatprep.subr.mxu0 0.0
    %5546 = vmatpush1.msra.mxu0 %v602
    %5547 = vmatprep.subr.mxu0 0.0
    %5548 = vmatpush1.msra.mxu0 %v603
    %5549 = vmatprep.subr.mxu0 0.0
    %5550 = vmatpush1.msra.mxu0 %v604
    %5551 = vmatprep.subr.mxu0 0.0
    %5552 = vmatpush1.msra.mxu0 0.0
    %5553 = vmatprep.subr.mxu0 0.0
    %5554 = vmatpush1.msra.mxu0 0.0
    %5555 = vmatprep.subr.mxu0 0.0
    %5556 = vmatpush1.msra.mxu0 0.0
    %5557 = vmatprep.subr.mxu0 0.0
    %5558 = vmatpush1.msra.mxu0 0.0
    %5559 = vmatprep.subr.mxu0 0.0
    %5560 = vmatpush1.msra.mxu0 0.0
    %5561 = vmatprep.subr.mxu0 0.0
    %5562 = vmatpush1.msra.mxu0 0.0
    %5563 = vmatprep.subr.mxu0 0.0
    %5564 = vmatpush1.msra.mxu0 0.0
    %5565 = vmatprep.subr.mxu0 0.0
    %5566 = vmatpush1.msra.mxu0 0.0
    %5567 = vmatprep.subr.mxu0 0.0
    %5568 = vmatpush1.msra.mxu0 0.0
    %5569 = vmatprep.subr.mxu0 0.0
    %5570 = vmatpush1.msra.mxu0 0.0
    %5571 = vmatprep.subr.mxu0 0.0
    %5572 = vmatpush1.msra.mxu0 0.0
    %5573 = vmatprep.subr.mxu0 0.0
    %5574 = vmatpush1.msra.mxu0 0.0
    %5575 = vmatprep.subr.mxu0 0.0
    %5576 = vmatpush1.msra.mxu0 0.0
    %5577 = vmatprep.subr.mxu0 0.0
    %5578 = vmatpush1.msra.mxu0 0.0
    %5579 = vmatprep.subr.mxu0 0.0
    %5580 = vmatpush1.msra.mxu0 0.0
    %5581 = vmatprep.subr.mxu0 0.0
    %5582 = vmatpush1.msra.mxu0 0.0
    %5583 = vmatprep.subr.mxu0 0.0
    %5584 = vmatpush1.msra.mxu0 0.0
    %5585 = vmatprep.subr.mxu0 0.0
    %5586 = vmatpush1.msra.mxu0 0.0
    %5587 = vmatprep.subr.mxu0 0.0
    %5588 = vmatpush1.msra.mxu0 0.0
    %5589 = vmatprep.subr.mxu0 0.0
    %5590 = vmatpush1.msra.mxu0 0.0
    %5591 = vmatprep.subr.mxu0 0.0
    %5592 = vmatpush1.msra.mxu0 0.0
    %5593 = vmatprep.subr.mxu0 0.0
    %5594 = vmatpush1.msra.mxu0 0.0
    %5595 = vmatprep.subr.mxu0 0.0
    %5596 = vmatpush1.msra.mxu0 0.0
    %5597 = vmatprep.subr.mxu0 0.0
    %5598 = vmatpush1.msra.mxu0 0.0
    %5599 = vmatprep.mubr.f32.mxu0 0.0
    %5600 = vmatmul.mubr.f32.gmra.mrb[0].mxu0 %v5533
    %v5601 = vpop.f32.mrb[0].mxu0
    %v5602 = vadd.f32 0.0, %v5601
    %v5603 = vpop.f32.mrb[0].mxu0
    %5604 = vdwg.mxu0
    %v5605 = vmul.f32 %v5602, %v2756
    %v5606 = vadd.f32 %v5605, 1e-05
    %v5607 = vrsqrt.pop %v5606
    %v5608 = vmul.f32 %v3200, %v5607
    %v5610 = vsel %vm2758, %v5608, 0
    %5612 = vmatprep.subr.mxu0 0.0
    %5613 = vmatpush1.msra.mxu0 %v605
    %5614 = vmatprep.subr.mxu0 0.0
    %5615 = vmatpush1.msra.mxu0 0.0
    %5616 = vmatprep.subr.mxu0 0.0
    %5617 = vmatpush1.msra.mxu0 0.0
    %5618 = vmatprep.subr.mxu0 0.0
    %5619 = vmatpush1.msra.mxu0 0.0
    %5620 = vmatprep.subr.mxu0 0.0
    %5621 = vmatpush1.msra.mxu0 0.0
    %5622 = vmatprep.subr.mxu0 0.0
    %5623 = vmatpush1.msra.mxu0 0.0
    %5624 = vmatprep.subr.mxu0 0.0
    %5625 = vmatpush1.msra.mxu0 0.0
    %5626 = vmatprep.subr.mxu0 0.0
    %5627 = vmatpush1.msra.mxu0 0.0
    %5628 = vmatprep.subr.mxu0 0.0
    %5629 = vmatpush1.msra.mxu0 0.0
    %5630 = vmatprep.subr.mxu0 0.0
    %5631 = vmatpush1.msra.mxu0 0.0
    %5632 = vmatprep.subr.mxu0 0.0
    %5633 = vmatpush1.msra.mxu0 0.0
    %5634 = vmatprep.subr.mxu0 0.0
    %5635 = vmatpush1.msra.mxu0 0.0
    %5636 = vmatprep.subr.mxu0 0.0
    %5637 = vmatpush1.msra.mxu0 0.0
    %5638 = vmatprep.subr.mxu0 0.0
    %5639 = vmatpush1.msra.mxu0 0.0
    %5640 = vmatprep.subr.mxu0 0.0
    %5641 = vmatpush1.msra.mxu0 0.0
    %5642 = vmatprep.subr.mxu0 0.0
    %5643 = vmatpush1.msra.mxu0 0.0
    %5644 = vmatprep.subr.mxu0 0.0
    %5645 = vmatpush1.msra.mxu0 0.0
    %5646 = vmatprep.subr.mxu0 0.0
    %5647 = vmatpush1.msra.mxu0 0.0
    %5648 = vmatprep.subr.mxu0 0.0
    %5649 = vmatpush1.msra.mxu0 0.0
    %5650 = vmatprep.subr.mxu0 0.0
    %5651 = vmatpush1.msra.mxu0 0.0
    %5652 = vmatprep.subr.mxu0 0.0
    %5653 = vmatpush1.msra.mxu0 0.0
    %5654 = vmatprep.subr.mxu0 0.0
    %5655 = vmatpush1.msra.mxu0 0.0
    %5656 = vmatprep.subr.mxu0 0.0
    %5657 = vmatpush1.msra.mxu0 0.0
    %5658 = vmatprep.subr.mxu0 0.0
    %5659 = vmatpush1.msra.mxu0 0.0
    %5660 = vmatprep.subr.mxu0 0.0
    %5661 = vmatpush1.msra.mxu0 0.0
    %5662 = vmatprep.subr.mxu0 0.0
    %5663 = vmatpush1.msra.mxu0 0.0
    %5664 = vmatprep.subr.mxu0 0.0
    %5665 = vmatpush1.msra.mxu0 0.0
    %5666 = vmatprep.subr.mxu0 0.0
    %5667 = vmatpush1.msra.mxu0 0.0
    %5668 = vmatprep.subr.mxu0 0.0
    %5669 = vmatpush1.msra.mxu0 0.0
    %5670 = vmatprep.subr.mxu0 0.0
    %5671 = vmatpush1.msra.mxu0 0.0
    %5672 = vmatprep.subr.mxu0 0.0
    %5673 = vmatpush1.msra.mxu0 0.0
    %5674 = vmatprep.subr.mxu0 0.0
    %5675 = vmatpush1.msra.mxu0 0.0
    %5676 = vmatprep.mubr.f32.mxu0 0.0
    %5677 = vmatmul.mubr.f32.gmra.mrb[0].mxu0 %v5610
    %v5678 = vpop.f32.mrb[0].mxu0
    %v5679 = vadd.f32 0.0, %v5678
    %v5680 = vpop.f32.mrb[0].mxu0
    %5681 = vdwg.mxu0
    %v5683 = vsel %vm2758, %v3201, 0
    %5685 = vmatprep.subr.mxu0 0.0
    %5686 = vmatpush1.msra.mxu0 %v605
    %5687 = vmatprep.subr.mxu0 0.0
    %5688 = vmatpush1.msra.mxu0 0.0
    %5689 = vmatprep.subr.mxu0 0.0
    %5690 = vmatpush1.msra.mxu0 0.0
    %5691 = vmatprep.subr.mxu0 0.0
    %5692 = vmatpush1.msra.mxu0 0.0
    %5693 = vmatprep.subr.mxu0 0.0
    %5694 = vmatpush1.msra.mxu0 0.0
    %5695 = vmatprep.subr.mxu0 0.0
    %5696 = vmatpush1.msra.mxu0 0.0
    %5697 = vmatprep.subr.mxu0 0.0
    %5698 = vmatpush1.msra.mxu0 0.0
    %5699 = vmatprep.subr.mxu0 0.0
    %5700 = vmatpush1.msra.mxu0 0.0
    %5701 = vmatprep.subr.mxu0 0.0
    %5702 = vmatpush1.msra.mxu0 0.0
    %5703 = vmatprep.subr.mxu0 0.0
    %5704 = vmatpush1.msra.mxu0 0.0
    %5705 = vmatprep.subr.mxu0 0.0
    %5706 = vmatpush1.msra.mxu0 0.0
    %5707 = vmatprep.subr.mxu0 0.0
    %5708 = vmatpush1.msra.mxu0 0.0
    %5709 = vmatprep.subr.mxu0 0.0
    %5710 = vmatpush1.msra.mxu0 0.0
    %5711 = vmatprep.subr.mxu0 0.0
    %5712 = vmatpush1.msra.mxu0 0.0
    %5713 = vmatprep.subr.mxu0 0.0
    %5714 = vmatpush1.msra.mxu0 0.0
    %5715 = vmatprep.subr.mxu0 0.0
    %5716 = vmatpush1.msra.mxu0 0.0
    %5717 = vmatprep.subr.mxu0 0.0
    %5718 = vmatpush1.msra.mxu0 0.0
    %5719 = vmatprep.subr.mxu0 0.0
    %5720 = vmatpush1.msra.mxu0 0.0
    %5721 = vmatprep.subr.mxu0 0.0
    %5722 = vmatpush1.msra.mxu0 0.0
    %5723 = vmatprep.subr.mxu0 0.0
    %5724 = vmatpush1.msra.mxu0 0.0
    %5725 = vmatprep.subr.mxu0 0.0
    %5726 = vmatpush1.msra.mxu0 0.0
    %5727 = vmatprep.subr.mxu0 0.0
    %5728 = vmatpush1.msra.mxu0 0.0
    %5729 = vmatprep.subr.mxu0 0.0
    %5730 = vmatpush1.msra.mxu0 0.0
    %5731 = vmatprep.subr.mxu0 0.0
    %5732 = vmatpush1.msra.mxu0 0.0
    %5733 = vmatprep.subr.mxu0 0.0
    %5734 = vmatpush1.msra.mxu0 0.0
    %5735 = vmatprep.subr.mxu0 0.0
    %5736 = vmatpush1.msra.mxu0 0.0
    %5737 = vmatprep.subr.mxu0 0.0
    %5738 = vmatpush1.msra.mxu0 0.0
    %5739 = vmatprep.subr.mxu0 0.0
    %5740 = vmatpush1.msra.mxu0 0.0
    %5741 = vmatprep.subr.mxu0 0.0
    %5742 = vmatpush1.msra.mxu0 0.0
    %5743 = vmatprep.subr.mxu0 0.0
    %5744 = vmatpush1.msra.mxu0 0.0
    %5745 = vmatprep.subr.mxu0 0.0
    %5746 = vmatpush1.msra.mxu0 0.0
    %5747 = vmatprep.subr.mxu0 0.0
    %5748 = vmatpush1.msra.mxu0 0.0
    %5749 = vmatprep.mubr.f32.mxu0 0.0
    %5750 = vmatmul.mubr.f32.gmra.mrb[0].mxu0 %v5683
    %v5751 = vpop.f32.mrb[0].mxu0
    %v5752 = vadd.f32 0.0, %v5751
    %v5753 = vpop.f32.mrb[0].mxu0
    %5754 = vdwg.mxu0
    %v5755 = vlaneseq
    %v5756 = vshrl.u32 %v5755, 7
    %v5757 = vsub.s32 0, %v5756
    %v5758 = vrot.slane %v5679, %v5757
    %v5759 = vmul.f32 %v5463, %v5758
    %v5760 = vmul.f32 %v5464, %v5758
    %v5761 = vmul.f32 %v5465, %v5758
    %v5762 = vmul.f32 %v5466, %v5758
    %v5763 = vmul.f32 %v5467, %v5758
    %v5764 = vmul.f32 %v5468, %v5758
    %v5765 = vmul.f32 %v5469, %v5758
    %v5766 = vmul.f32 %v5470, %v5758
    %v5767 = vmul.f32 %v5471, %v5758
    %v5768 = vmul.f32 %v5472, %v5758
    %v5769 = vmul.f32 %v5473, %v5758
    %v5770 = vmul.f32 %v5474, %v5758
    %v5771 = vmul.f32 %v5475, %v5758
    %v5772 = vmul.f32 %v5476, %v5758
    %v5773 = vmul.f32 %v5477, %v5758
    %v5774 = vmul.f32 %v5478, %v5758
    %v5775 = vlaneseq
    %v5776 = vshrl.u32 %v5775, 7
    %v5777 = vsub.s32 0, %v5776
    %v5778 = vrot.slane %v5752, %v5777
    %v5779 = vadd.f32 %v5759, %v5778
    %v5780 = vadd.f32 %v5760, %v5778
    %v5781 = vadd.f32 %v5761, %v5778
    %v5782 = vadd.f32 %v5762, %v5778
    %v5783 = vadd.f32 %v5763, %v5778
    %v5784 = vadd.f32 %v5764, %v5778
    %v5785 = vadd.f32 %v5765, %v5778
    %v5786 = vadd.f32 %v5766, %v5778
    %v5787 = vadd.f32 %v5767, %v5778
    %v5788 = vadd.f32 %v5768, %v5778
    %v5789 = vadd.f32 %v5769, %v5778
    %v5790 = vadd.f32 %v5770, %v5778
    %v5791 = vadd.f32 %v5771, %v5778
    %v5792 = vadd.f32 %v5772, %v5778
    %v5793 = vadd.f32 %v5773, %v5778
    %v5794 = vadd.f32 %v5774, %v5778
    %v5795 = vmax.f32 %v5779, 0.0
    %v5796 = vmax.f32 %v5780, 0.0
    %v5797 = vmax.f32 %v5781, 0.0
    %v5798 = vmax.f32 %v5782, 0.0
    %v5799 = vmax.f32 %v5783, 0.0
    %v5800 = vmax.f32 %v5784, 0.0
    %v5801 = vmax.f32 %v5785, 0.0
    %v5802 = vmax.f32 %v5786, 0.0
    %v5803 = vmax.f32 %v5787, 0.0
    %v5804 = vmax.f32 %v5788, 0.0
    %v5805 = vmax.f32 %v5789, 0.0
    %v5806 = vmax.f32 %v5790, 0.0
    %v5807 = vmax.f32 %v5791, 0.0
    %v5808 = vmax.f32 %v5792, 0.0
    %v5809 = vmax.f32 %v5793, 0.0
    %v5810 = vmax.f32 %v5794, 0.0
    %5811 = vst.msk [vmem:[%s9] sm:$0xff] %vm537, %v5795
    %5812 = vst.msk [vmem:[%s9 + $0x8] sm:$0xff] %vm537, %v5796
    %5813 = vst.msk [vmem:[%s9 + $0x10] sm:$0xff] %vm537, %v5797
    %5814 = vst.msk [vmem:[%s9 + $0x18] sm:$0xff] %vm537, %v5798
    %5815 = vst.msk [vmem:[%s9 + $0x20] sm:$0xff] %vm537, %v5799
    %5816 = vst.msk [vmem:[%s9 + $0x28] sm:$0xff] %vm537, %v5800
    %5817 = vst.msk [vmem:[%s9 + $0x30] sm:$0xff] %vm537, %v5801
    %5818 = vst.msk [vmem:[%s9 + $0x38] sm:$0xff] %vm537, %v5802
    %5819 = vst.msk [vmem:[%s9 + $0x40] sm:$0xff] %vm537, %v5803
    %5820 = vst.msk [vmem:[%s9 + $0x48] sm:$0xff] %vm537, %v5804
    %5821 = vst.msk [vmem:[%s9 + $0x50] sm:$0xff] %vm537, %v5805
    %5822 = vst.msk [vmem:[%s9 + $0x58] sm:$0xff] %vm537, %v5806
    %5823 = vst.msk [vmem:[%s9 + $0x60] sm:$0xff] %vm537, %v5807
    %5824 = vst.msk [vmem:[%s9 + $0x68] sm:$0xff] %vm537, %v5808
    %5825 = vst.msk [vmem:[%s9 + $0x70] sm:$0xff] %vm537, %v5809
    %5826 = vst.msk [vmem:[%s9 + $0x78] sm:$0xff] %vm537, %v5810
    // Predicated region
    $region50: #{tpu_custom_call.1} parent=1 // pred_check
      _
    $region51: #{tpu_custom_call.1} parent=1 // pred_check_branch
      %5828 = sbr.rel (0) target = $region53
    $region52: #{tpu_custom_call.1} parent=1 // pred_region
      _
    $region53: #{tpu_custom_call.1} parent=1 // pred_fallthru
      _
    // Predicated region
    $region54: #{tpu_custom_call.1} parent=1 // pred_check
      _
    $region55: #{tpu_custom_call.1} parent=1 // pred_check_branch
      %5830 = sbr.rel (0) target = $region57
    $region56: #{tpu_custom_call.1} parent=1 // pred_region
      _
    $region57: #{tpu_custom_call.1} parent=1 // pred_fallthru
      _
    %5831 = vsyncpa [#allocation4], 1
    %5832 = vsyncpa [#allocation6], 1

</llo_original>
